<compile_context>
chip_gen: v5e
topology: v5e:2x2
jax: 0.10.0
libtpu: 0.0.40
codegen_flags: <defaults>
</compile_context>

<pallas_src>
import functools

import jax
import jax.numpy as jnp
from jax import lax
from jax.experimental import pallas as pl
from jax.experimental.pallas import tpu as pltpu


# ----------------------------------------------------------------------------
# Pallas kernel: tiled  out = act( x @ w + b )  with f32 accumulation
# ----------------------------------------------------------------------------
def _dense_kernel(x_ref, w_ref, b_ref, o_ref, *scratch, n_k, relu):
    """x_ref: (m_t, k_t)  w_ref: (k_t, c_t)  b_ref: (1, c_t)  o_ref: (m_t, c_t).

    grid = (m tiles [parallel], cout tiles [parallel], k tiles [arbitrary]).
    Default MXU precision (single bf16 pass), f32 accumulation.
    """
    if n_k == 1:
        # Single K block: no VMEM scratch accumulator, write the output directly.
        out = jnp.dot(x_ref[...], w_ref[...],
                      preferred_element_type=jnp.float32) + b_ref[...]
        if relu:
            out = jnp.maximum(out, 0.0)
        o_ref[...] = out.astype(o_ref.dtype)
    else:
        acc_ref = scratch[0]
        k = pl.program_id(2)

        @pl.when(k == 0)
        def _():
            acc_ref[...] = jnp.zeros_like(acc_ref)

        acc_ref[...] += jnp.dot(x_ref[...], w_ref[...],
                                preferred_element_type=jnp.float32)

        @pl.when(k == n_k - 1)
        def _():
            out = acc_ref[...] + b_ref[...]
            if relu:
                out = jnp.maximum(out, 0.0)
            o_ref[...] = out.astype(o_ref.dtype)


def _round_up(x, m):
    return (x + m - 1) // m * m


def _pick_k_tile(kp, cap=2048):
    """Largest multiple-of-128 divisor of kp that is <= cap (kp % 128 == 0)."""
    best, t = 128, 128
    while t <= min(kp, cap):
        if kp % t == 0:
            best = t
        t += 128
    return best


def _matmul_bias_act(x2, w2, b2, *, relu):
    """x2: (M, Kp), w2: (Kp, Cp), b2: (1, Cp); Kp, Cp are multiples of 128."""
    M, Kp = x2.shape
    Cp = w2.shape[1]

    if M % 256 == 0:
        m_t = 256
    elif M % 128 == 0:
        m_t = 128
    else:
        m_t = M                      # full-extent block (allowed by Pallas)
    c_t = 128                        # lane-clean output tiles, parallel extent >= 2
    k_t = _pick_k_tile(Kp)           # big-K reduction blocks (full MXU depth)
    n_m, n_c, n_k = M // m_t, Cp // c_t, Kp // k_t

    kernel = functools.partial(_dense_kernel, n_k=n_k, relu=relu)
    scratch = [pltpu.VMEM((m_t, c_t), jnp.float32)] if n_k > 1 else []

    return pl.pallas_call(
        kernel,
        out_shape=jax.ShapeDtypeStruct((M, Cp), jnp.float32),
        grid=(n_m, n_c, n_k),
        in_specs=[
            pl.BlockSpec((m_t, k_t), lambda m, c, k: (m, k)),
            pl.BlockSpec((k_t, c_t), lambda m, c, k: (k, c)),
            pl.BlockSpec((1, c_t), lambda m, c, k: (0, c)),
        ],
        out_specs=pl.BlockSpec((m_t, c_t), lambda m, c, k: (m, c)),
        scratch_shapes=scratch,
        compiler_params=pltpu.CompilerParams(
            dimension_semantics=("parallel", "parallel", "arbitrary")),
    )(x2, w2, b2)


# ----------------------------------------------------------------------------
# Wrapper glue: conv2d(padding='same') + nearest-neighbour x(1/stride) downsample
# ----------------------------------------------------------------------------
def _im2col_nearest_ds(x, KH, KW, stride):
    """5x5 'same'-conv patches, evaluated only at the output rows/cols kept by
    nearest-neighbour downsampling (index 2*h', 2*w' for stride=2).
    Pure index shuffling (no FLOPs) -> done in the XLA wrapper.
    x: (N, H, W, C) -> (N, H//stride, W//stride, KH*KW*C)."""
    N, H, W, C = x.shape
    ph, pw = KH // 2, KW // 2
    xp = jnp.pad(x, ((0, 0), (ph, ph), (pw, pw), (0, 0)))   # zero pad == 'same'
    cols = []
    for kh in range(KH):
        for kw in range(KW):
            cols.append(xp[:, kh:kh + H:stride, kw:kw + W:stride, :])
    return jnp.concatenate(cols, axis=-1)


def conv2d_same_nearest_ds(x, w, b, *, stride=1, relu=False):
    """NHWC equivalent of
        F.interpolate(nn.Conv2d(Cin, Cout, k, padding='same')(x),
                      scale_factor=1/stride, mode='nearest')
    with an optional fused ReLU (ReLU commutes with nearest subsampling).
    x: (N,H,W,Cin), w: (KH,KW,Cin,Cout), b: (Cout,)."""
    N, H, W, Cin = x.shape
    KH, KW, _, Cout = w.shape
    Ho, Wo = H // stride, W // stride

    K = KH * KW * Cin
    Kp = _round_up(K, 128)           # lane-dense K (75 -> 128 for the Cin=3 layer)
    Cp = _round_up(Cout, 128)        # lane-dense Cout (576 -> 640)

    xc = _im2col_nearest_ds(x, KH, KW, stride).reshape(N * Ho * Wo, K)
    xc = jnp.pad(xc, ((0, 0), (0, Kp - K)))
    w2 = jnp.pad(w.reshape(K, Cout), ((0, Kp - K), (0, Cp - Cout)))
    b2 = jnp.pad(b, (0, Cp - Cout)).reshape(1, Cp)

    out = _matmul_bias_act(xc, w2, b2, relu=relu)
    return out[:, :Cout].reshape(N, Ho, Wo, Cout)


# ----------------------------------------------------------------------------
# Encoder forward (NCHW in / NCHW out, matching the PyTorch module)
# ----------------------------------------------------------------------------
def encoder_forward(x_nchw, params):
    x = jnp.transpose(x_nchw, (0, 2, 3, 1))                  # NCHW -> NHWC
    # hidden layer: relu(interp(conv(x), 0.5, nearest)); ReLU + downsample fused.
    h = conv2d_same_nearest_ds(x, *params["hidden"], stride=2, relu=True)
    # final layer: interp(conv(h), 0.5, nearest)
    y = conv2d_same_nearest_ds(h, *params["final"], stride=2, relu=False)
    return jnp.transpose(y, (0, 3, 1, 2))                    # NHWC -> NCHW


# ----------------------------------------------------------------------------
# Parameters (nn.Conv2d default-style uniform init, deterministic)
# ----------------------------------------------------------------------------
def _conv_init(key, cin, cout, ks):
    wk, bk = jax.random.split(key)
    bound = 1.0 / float((cin * ks * ks) ** 0.5)
    w = jax.random.uniform(wk, (ks, ks, cin, cout), jnp.float32, -bound, bound)
    b = jax.random.uniform(bk, (cout,), jnp.float32, -bound, bound)
    return w, b


def init_encoder_params(key):
    k1, k2 = jax.random.split(key)
    return {
        "hidden": _conv_init(k1, 3, 128 * 3, 5),      # Conv2dWithSampling #1
        "final": _conv_init(k2, 128 * 3, 192 * 3, 5), # Conv2dWithSampling #2
    }


# ----------------------------------------------------------------------------
# Pure-JAX reference (numeric sanity check of the Pallas path)
# ----------------------------------------------------------------------------
def _encoder_ref(x_nchw, params):
    x = jnp.transpose(x_nchw, (0, 2, 3, 1))

    def conv(t, w, b):
        return lax.conv_general_dilated(
            t, w, window_strides=(1, 1), padding="SAME",
            dimension_numbers=("NHWC", "HWIO", "NHWC")) + b

    h = jnp.maximum(conv(x, *params["hidden"]), 0.0)[:, ::2, ::2, :]
    y = conv(h, *params["final"])[:, ::2, ::2, :]
    return jnp.transpose(y, (0, 3, 1, 2))


if __name__ == "__main__":
    key = jax.random.PRNGKey(0)
    kp_, kx_ = jax.random.split(key)
    params = init_encoder_params(kp_)

    # Small but module-consistent input: batch=2, 3 channels, 32x32 spatial.
    x = jax.random.normal(kx_, (2, 3, 32, 32), dtype=jnp.float32)

    fwd = jax.jit(encoder_forward)
    y = jax.block_until_ready(fwd(x, params))

    # Shape / sanity checks: 3 -> 384 -> 576 channels, spatial /2 twice.
    assert y.shape == (2, 576, 8, 8), y.shape
    assert bool(jnp.all(jnp.isfinite(y)))

    # Numeric check against lax.conv at default precision.
    y_ref = jax.block_until_ready(_encoder_ref(x, params))
    max_err = float(jnp.max(jnp.abs(y - y_ref)))
    assert jnp.allclose(y, y_ref, atol=5e-2, rtol=5e-2), max_err

    print("KERNEL_OK")
</pallas_src>

<mosaic_0001>
module attributes {stable_mosaic.version = 11 : i64} {
  func.func @_dense_kernel(%arg0: i32, %arg1: i32, %arg2: i32, %arg3: memref<256x128xf32, #tpu.memory_space<vmem>>, %arg4: memref<128x128xf32, #tpu.memory_space<vmem>>, %arg5: memref<1x128xf32, #tpu.memory_space<vmem>>, %arg6: memref<256x128xf32, #tpu.memory_space<vmem>>) attributes {dimension_semantics = [#tpu.dimension_semantics<parallel>, #tpu.dimension_semantics<parallel>, #tpu.dimension_semantics<arbitrary>], iteration_bounds = array<i64: 2, 3, 1>, scalar_prefetch = 0 : i64, scratch_operands = 0 : i64, tpu.core_type = #tpu.core_type<tc>, window_params = [{transform_indices = @transform_0, window_bounds = array<i64: 256, 128>}, {transform_indices = @transform_1, window_bounds = array<i64: 128, 128>}, {transform_indices = @transform_2, window_bounds = array<i64: 1, 128>}, {transform_indices = @transform_3, window_bounds = array<i64: 256, 128>}]} {
    %c0 = arith.constant 0 : index
    %c0_0 = arith.constant 0 : index
    %0 = vector.load %arg3[%c0, %c0_0] : memref<256x128xf32, #tpu.memory_space<vmem>>, vector<256x128xf32>
    %c0_1 = arith.constant 0 : index
    %c0_2 = arith.constant 0 : index
    %1 = vector.load %arg4[%c0_1, %c0_2] : memref<128x128xf32, #tpu.memory_space<vmem>>, vector<128x128xf32>
    %cst = arith.constant dense<0.000000e+00> : vector<256x128xf32>
    %2 = tpu.matmul %0, %1, %cst {dimension_numbers = #tpu.dot_dimension_numbers<[1], [0], [0], [1], [0, 0, 1, 1], [], []>} : vector<256x128xf32>, vector<128x128xf32>, vector<256x128xf32> -> vector<256x128xf32>
    %c0_3 = arith.constant 0 : index
    %c0_4 = arith.constant 0 : index
    %3 = vector.load %arg5[%c0_3, %c0_4] : memref<1x128xf32, #tpu.memory_space<vmem>>, vector<1x128xf32>
    %4 = vector.broadcast %3 : vector<1x128xf32> to vector<256x128xf32>
    %5 = arith.addf %2, %4 : vector<256x128xf32>
    %cst_5 = arith.constant 0.000000e+00 : f32
    %6 = vector.broadcast %cst_5 : f32 to vector<256x128xf32>
    %7 = arith.maximumf %5, %6 : vector<256x128xf32>
    %c0_6 = arith.constant 0 : index
    %c0_7 = arith.constant 0 : index
    %8 = vector.load %arg6[%c0_6, %c0_7] : memref<256x128xf32, #tpu.memory_space<vmem>>, vector<256x128xf32>
    tpu.vector_store %arg6[%c0_6, %c0_7], %7 {strides = array<i32>} : memref<256x128xf32, #tpu.memory_space<vmem>>, vector<256x128xf32>,
    return
  }
  func.func @transform_0(%arg0: i32, %arg1: i32, %arg2: i32) -> (i32, i32) {
    %c0_i32 = arith.constant 0 : i32
    return %arg0, %arg2 : i32, i32
  }
  func.func @transform_1(%arg0: i32, %arg1: i32, %arg2: i32) -> (i32, i32) {
    %c0_i32 = arith.constant 0 : i32
    return %arg2, %arg1 : i32, i32
  }
  func.func @transform_2(%arg0: i32, %arg1: i32, %arg2: i32) -> (i32, i32) {
    %c0_i32 = arith.constant 0 : i32
    %c0_i32_0 = arith.constant 0 : i32
    return %c0_i32, %arg1 : i32, i32
  }
  func.func @transform_3(%arg0: i32, %arg1: i32, %arg2: i32) -> (i32, i32) {
    %c0_i32 = arith.constant 0 : i32
    return %arg0, %arg1 : i32, i32
  }
}

module attributes {stable_mosaic.version = 11 : i64} {
  func.func @_dense_kernel(%arg0: i32, %arg1: i32, %arg2: i32, %arg3: memref<128x1920xf32, #tpu.memory_space<vmem>>, %arg4: memref<1920x128xf32, #tpu.memory_space<vmem>>, %arg5: memref<1x128xf32, #tpu.memory_space<vmem>>, %arg6: memref<128x128xf32, #tpu.memory_space<vmem>>, %arg7: memref<128x128xf32, #tpu.memory_space<vmem>>) attributes {dimension_semantics = [#tpu.dimension_semantics<parallel>, #tpu.dimension_semantics<parallel>, #tpu.dimension_semantics<arbitrary>], iteration_bounds = array<i64: 1, 5, 5>, scalar_prefetch = 0 : i64, scratch_operands = 1 : i64, tpu.core_type = #tpu.core_type<tc>, window_params = [{transform_indices = @transform_0, window_bounds = array<i64: 128, 1920>}, {transform_indices = @transform_1, window_bounds = array<i64: 1920, 128>}, {transform_indices = @transform_2, window_bounds = array<i64: 1, 128>}, {transform_indices = @transform_3, window_bounds = array<i64: 128, 128>}]} {
    %c0_i32 = arith.constant 0 : i32
    %0 = arith.cmpi eq, %arg2, %c0_i32 : i32
    %1 = arith.extui %0 : i1 to i32
    %c0_i32_0 = arith.constant 0 : i32
    %2 = arith.cmpi ne, %1, %c0_i32_0 : i32
    scf.if %2 {
      %cst_9 = arith.constant 0.000000e+00 : f32
      %12 = vector.broadcast %cst_9 : f32 to vector<128x128xf32>
      %c0_10 = arith.constant 0 : index
      %c0_11 = arith.constant 0 : index
      %13 = vector.load %arg7[%c0_10, %c0_11] : memref<128x128xf32, #tpu.memory_space<vmem>>, vector<128x128xf32>
      tpu.vector_store %arg7[%c0_10, %c0_11], %12 {strides = array<i32>} : memref<128x128xf32, #tpu.memory_space<vmem>>, vector<128x128xf32>,
    } else {
    }
    %c0 = arith.constant 0 : index
    %c0_1 = arith.constant 0 : index
    %3 = vector.load %arg7[%c0, %c0_1] : memref<128x128xf32, #tpu.memory_space<vmem>>, vector<128x128xf32>
    %c0_2 = arith.constant 0 : index
    %c0_3 = arith.constant 0 : index
    %4 = vector.load %arg3[%c0_2, %c0_3] : memref<128x1920xf32, #tpu.memory_space<vmem>>, vector<128x1920xf32>
    %c0_4 = arith.constant 0 : index
    %c0_5 = arith.constant 0 : index
    %5 = vector.load %arg4[%c0_4, %c0_5] : memref<1920x128xf32, #tpu.memory_space<vmem>>, vector<1920x128xf32>
    %cst = arith.constant dense<0.000000e+00> : vector<128x128xf32>
    %6 = tpu.matmul %4, %5, %cst {dimension_numbers = #tpu.dot_dimension_numbers<[1], [0], [0], [1], [0, 0, 1, 1], [], []>} : vector<128x1920xf32>, vector<1920x128xf32>, vector<128x128xf32> -> vector<128x128xf32>
    %7 = arith.addf %3, %6 : vector<128x128xf32>
    %c0_6 = arith.constant 0 : index
    %c0_7 = arith.constant 0 : index
    %8 = vector.load %arg7[%c0_6, %c0_7] : memref<128x128xf32, #tpu.memory_space<vmem>>, vector<128x128xf32>
    tpu.vector_store %arg7[%c0_6, %c0_7], %7 {strides = array<i32>} : memref<128x128xf32, #tpu.memory_space<vmem>>, vector<128x128xf32>,
    %c4_i32 = arith.constant 4 : i32
    %9 = arith.cmpi eq, %arg2, %c4_i32 : i32
    %10 = arith.extui %9 : i1 to i32
    %c0_i32_8 = arith.constant 0 : i32
    %11 = arith.cmpi ne, %10, %c0_i32_8 : i32
    scf.if %11 {
      %c0_9 = arith.constant 0 : index
      %c0_10 = arith.constant 0 : index
      %12 = vector.load %arg7[%c0_9, %c0_10] : memref<128x128xf32, #tpu.memory_space<vmem>>, vector<128x128xf32>
      %c0_11 = arith.constant 0 : index
      %c0_12 = arith.constant 0 : index
      %13 = vector.load %arg5[%c0_11, %c0_12] : memref<1x128xf32, #tpu.memory_space<vmem>>, vector<1x128xf32>
      %14 = vector.broadcast %13 : vector<1x128xf32> to vector<128x128xf32>
      %15 = arith.addf %12, %14 : vector<128x128xf32>
      %c0_13 = arith.constant 0 : index
      %c0_14 = arith.constant 0 : index
      %16 = vector.load %arg6[%c0_13, %c0_14] : memref<128x128xf32, #tpu.memory_space<vmem>>, vector<128x128xf32>
      tpu.vector_store %arg6[%c0_13, %c0_14], %15 {strides = array<i32>} : memref<128x128xf32, #tpu.memory_space<vmem>>, vector<128x128xf32>,
    } else {
    }
    return
  }
  func.func @transform_0(%arg0: i32, %arg1: i32, %arg2: i32) -> (i32, i32) {
    %c0_i32 = arith.constant 0 : i32
    return %arg0, %arg2 : i32, i32
  }
  func.func @transform_1(%arg0: i32, %arg1: i32, %arg2: i32) -> (i32, i32) {
    %c0_i32 = arith.constant 0 : i32
    return %arg2, %arg1 : i32, i32
  }
  func.func @transform_2(%arg0: i32, %arg1: i32, %arg2: i32) -> (i32, i32) {
    %c0_i32 = arith.constant 0 : i32
    %c0_i32_0 = arith.constant 0 : i32
    return %c0_i32, %arg1 : i32, i32
  }
  func.func @transform_3(%arg0: i32, %arg1: i32, %arg2: i32) -> (i32, i32) {
    %c0_i32 = arith.constant 0 : i32
    return %arg0, %arg1 : i32, i32
  }
}

</mosaic_0001>

<llo_original>
// kernel: encoder_forward.2
$region0: #{encoder_forward.2}
  #allocation0 [shape = 'u32[]', space=smem, size = 0x4, offset = 0x4, fixed_abs, tag = 'smem constant byte address 0x4 - core index']
  #allocation1 [shape = 'u32[72,128]{1,0:T(1,128)}', space=vmem, size = 0x9000, scoped, tag = 'internal scratch']
  %s0 = inlined_call_operand.vmem [shape: f32[512,128], index: 0, kind: input, shape index: {}]
  %s1 = inlined_call_operand.vmem [shape: f32[128,384], index: 1, kind: input, shape index: {}]
  %s2 = inlined_call_operand.vmem [shape: f32[1,384], index: 2, kind: input, shape index: {}]
  %s3 = inlined_call_operand.vmem [shape: f32[512,384], index: 3, kind: output, shape index: {}]
  %s4 = sld [smem:[#allocation0]]
  $region117: #{encoder_forward.2} parent=0
    _
  %s6 = ssub.s32 1, %s4
  %s7 = scalar_select 0, %s6, %s4
  $region1: #{encoder_forward.2} parent=0
    #allocation2 [shape = 'u8[131072]{0}', space=vmem, size = 0x20000, scoped, tag = 'input window, operand 1']
    #allocation3 [shape = 'u8[262144]{0}', space=vmem, size = 0x40000, scoped, tag = 'output window, operand 0']
    loop: start=0, step=1, limit=8
    $region2: #{encoder_forward.2} parent=1 // loop_pre_header
      _
    $region3: #{encoder_forward.2} parent=1 // loop_header
      %s9 = sphi 0, %s13
      %p10 = scmp.ge.s32.totalorder %s9, 8
      %s16 = sphi 0, %s35
      %s17 = sphi 0, %s31
      %s18 = sphi 0, %s27
      %s19 = sphi 0, %s16
      %s20 = sphi 0, %s17
      %s21 = sphi 0, %s18
      %s22 = sphi 0, %s19
      %s23 = sphi 0, %s20
      %s24 = sphi 0, %s21
      %s40 = sphi 0, %s42
      %s43 = sphi 0, %s40
      %s44 = sphi 0, %s43
      %s60 = sphi 0, %s44
      %s68 = sphi 0, %s70
      %s71 = sphi 0, %s68
      %s72 = sphi 0, %s71
      %s88 = sphi 0, %s72
      %s94 = sphi 0, %s96
      %s97 = sphi 0, %s94
      %s98 = sphi 0, %s97
      %s114 = sphi 0, %s98
      %s122 = sphi 0, %s124
      %s125 = sphi 0, %s122
      %s126 = sphi 0, %s125
      %s142 = sphi 0, %s126
    $region4: #{encoder_forward.2} parent=1 // loop_header_branch
      %12 = sbr.rel (%p10) target = $region8
    $region5: #{encoder_forward.2} parent=1 // loop_body
      %s14 = ssub.s32 %s9, 1
      %s15 = ssub.s32 %s9, 2
      %s25 = sadd.s32 1, %s18
      %p26 = scmp.ge.s32.totalorder %s25, 1
      %s27 = scalar_select %p26, 0, %s25
      %s28 = sadd.s32 1, %s17
      %s29 = scalar_select %p26, %s28, %s17
      %p30 = scmp.ge.s32.totalorder %s29, 3
      %s31 = scalar_select %p30, 0, %s29
      %s32 = sadd.s32 1, %s16
      %s33 = scalar_select %p30, %s32, %s16
      %p34 = scmp.ge.s32.totalorder %s33, 2
      %s35 = scalar_select %p34, 0, %s33
      %s36 = ssub.s32 %s16, %s35
      %s37 = ssub.s32 %s18, %s27
      %s38 = sor.u32 %s36, %s37
      %p39 = scmp.eq.s32.totalorder %s38, 0
      %s41 = sadd.s32 %s40, 1
      %s42 = scalar_select %p39, %s40, %s41
      %p45 = pneg %p39
      %p46 = scmp.eq.s32.totalorder %s9, 5
      %p47 = por %p45, %p46
      %p48 = scmp.ne.s32.totalorder %s40, %s43
      %p49 = scmp.eq.s32.totalorder %s9, 0
      %p50 = por %p48, %p49
      %p51 = scmp.ne.s32.totalorder %s40, %s43
      %p52 = scmp.eq.s32.totalorder %s14, 5
      %p53 = por %p51, %p52
      %p54 = scmp.ne.s32.totalorder %s43, %s44
      %p55 = scmp.eq.s32.totalorder %s14, 0
      %p56 = por %p54, %p55
      %p57 = scmp.ne.s32.totalorder %s43, %s44
      %p58 = scmp.eq.s32.totalorder %s15, 5
      %p59 = por %p57, %p58
      %p61 = scmp.ne.s32.totalorder %s44, %s60
      %p62 = scmp.eq.s32.totalorder %s15, 0
      %p63 = por %p61, %p62
      %s64 = ssub.s32 %s18, %s27
      %s65 = ssub.s32 %s17, %s31
      %s66 = sor.u32 %s64, %s65
      %p67 = scmp.eq.s32.totalorder %s66, 0
      %s69 = sadd.s32 %s68, 1
      %s70 = scalar_select %p67, %s68, %s69
      %p73 = pneg %p67
      %p74 = scmp.eq.s32.totalorder %s9, 5
      %p75 = por %p73, %p74
      %p76 = scmp.ne.s32.totalorder %s68, %s71
      %p77 = scmp.eq.s32.totalorder %s9, 0
      %p78 = por %p76, %p77
      %p79 = scmp.ne.s32.totalorder %s68, %s71
      %p80 = scmp.eq.s32.totalorder %s14, 5
      %p81 = por %p79, %p80
      %p82 = scmp.ne.s32.totalorder %s71, %s72
      %p83 = scmp.eq.s32.totalorder %s14, 0
      %p84 = por %p82, %p83
      %p85 = scmp.ne.s32.totalorder %s71, %s72
      %p86 = scmp.eq.s32.totalorder %s15, 5
      %p87 = por %p85, %p86
      %p89 = scmp.ne.s32.totalorder %s72, %s88
      %p90 = scmp.eq.s32.totalorder %s15, 0
      %p91 = por %p89, %p90
      %s92 = ssub.s32 %s17, %s31
      %p93 = scmp.eq.s32.totalorder %s92, 0
      %s95 = sadd.s32 %s94, 1
      %s96 = scalar_select %p93, %s94, %s95
      %p99 = pneg %p93
      %p100 = scmp.eq.s32.totalorder %s9, 5
      %p101 = por %p99, %p100
      %p102 = scmp.ne.s32.totalorder %s94, %s97
      %p103 = scmp.eq.s32.totalorder %s9, 0
      %p104 = por %p102, %p103
      %p105 = scmp.ne.s32.totalorder %s94, %s97
      %p106 = scmp.eq.s32.totalorder %s14, 5
      %p107 = por %p105, %p106
      %p108 = scmp.ne.s32.totalorder %s97, %s98
      %p109 = scmp.eq.s32.totalorder %s14, 0
      %p110 = por %p108, %p109
      %p111 = scmp.ne.s32.totalorder %s97, %s98
      %p112 = scmp.eq.s32.totalorder %s15, 5
      %p113 = por %p111, %p112
      %p115 = scmp.ne.s32.totalorder %s98, %s114
      %p116 = scmp.eq.s32.totalorder %s15, 0
      %p117 = por %p115, %p116
      %s118 = ssub.s32 %s16, %s35
      %s119 = ssub.s32 %s17, %s31
      %s120 = sor.u32 %s118, %s119
      %p121 = scmp.eq.s32.totalorder %s120, 0
      %s123 = sadd.s32 %s122, 1
      %s124 = scalar_select %p121, %s122, %s123
      %p127 = pneg %p121
      %p128 = scmp.eq.s32.totalorder %s9, 5
      %p129 = por %p127, %p128
      %p130 = scmp.ne.s32.totalorder %s122, %s125
      %p131 = scmp.eq.s32.totalorder %s9, 0
      %p132 = por %p130, %p131
      %p133 = scmp.ne.s32.totalorder %s122, %s125
      %p134 = scmp.eq.s32.totalorder %s14, 5
      %p135 = por %p133, %p134
      %p136 = scmp.ne.s32.totalorder %s125, %s126
      %p137 = scmp.eq.s32.totalorder %s14, 0
      %p138 = por %p136, %p137
      %p139 = scmp.ne.s32.totalorder %s125, %s126
      %p140 = scmp.eq.s32.totalorder %s15, 5
      %p141 = por %p139, %p140
      %p143 = scmp.ne.s32.totalorder %s126, %s142
      %p144 = scmp.eq.s32.totalorder %s15, 0
      %p145 = por %p143, %p144
      %p146 = scmp.le.s32.totalorder 1, %s9
      %p147 = scmp.lt.s32.totalorder %s9, 7
      %p148 = pnand %p146, %p147
      %p149 = pneg %p148
      // Predicated region
      $region9: #{encoder_forward.2} parent=5 // pred_check
        _
      $region10: #{encoder_forward.2} parent=5 // pred_check_branch
        %151 = sbr.rel (%p148) target = $region12
      $region11: #{encoder_forward.2} parent=5 // pred_region
        %s152 = ssub.s32 %s9, 1
      $region12: #{encoder_forward.2} parent=5 // pred_fallthru
        _
      %p153 = scmp.lt.s32.totalorder %s9, 6
      // Predicated region
      $region13: #{encoder_forward.2} parent=5 // pred_check
        %p154 = pneg %p153
      $region14: #{encoder_forward.2} parent=5 // pred_check_branch
        %156 = sbr.rel (%p154) target = $region16
      $region15: #{encoder_forward.2} parent=5 // pred_region
        // Predicated region
        $region17: #{encoder_forward.2} parent=15 // pred_check
          %p157 = pneg %p50
        $region18: #{encoder_forward.2} parent=15 // pred_check_branch
          %159 = sbr.rel (%p157) target = $region20
        $region19: #{encoder_forward.2} parent=15 // pred_region
          %s160 = smul.u32 32, %s16
          %p161 = scmp.lt.s32.totalorder %s160, 63
          %s162 = scalar_select %p161, %s160, 63
          %p163 = scmp.lt.s32.totalorder %s18, 0
          %s164 = scalar_select %p163, %s18, 0
          %s165 = sadd.s32 %s164, %s162
          %s166 = smul.addr %s165, 8
          %s167 = scalar_lea.vmem %s0, %s166
          %s168 = smul.u32 32, %s16
        $region20: #{encoder_forward.2} parent=15 // pred_fallthru
          _
        // Predicated region
        $region21: #{encoder_forward.2} parent=15 // pred_check
          %p169 = pneg %p78
        $region22: #{encoder_forward.2} parent=15 // pred_check_branch
          %171 = sbr.rel (%p169) target = $region24
        $region23: #{encoder_forward.2} parent=15 // pred_region
          %s172 = sand.u32 %s68, 1
          %s173 = sand.u32 %s68, 1
          %s174 = smul.addr %s173, 128
          %s175 = scalar_lea.vmem [#allocation2], %s174
          %s176 = smul.u32 16, %s18
          %s177 = smul.addr %s176, 3
          %s178 = sadd.s32 %s17, %s177
          %s179 = smul.addr %s178, 8
          %s180 = scalar_lea.vmem %s1, %s179
          // Predicated region
          $region25: #{encoder_forward.2} parent=23 // pred_check
            _
          $region26: #{encoder_forward.2} parent=23 // pred_check_branch
            %182 = sbr.rel (0) target = $region28
          $region27: #{encoder_forward.2} parent=23 // pred_region
            // Predicated region
            $region29: #{encoder_forward.2} parent=27 // pred_check
              _
            $region30: #{encoder_forward.2} parent=27 // pred_check_branch
              %184 = sbr.rel (0) target = $region32
            $region31: #{encoder_forward.2} parent=27 // pred_region
              // Predicated region
              $region44: #{encoder_forward.2} parent=31 // pred_check
                _
              $region45: #{encoder_forward.2} parent=31 // pred_check_branch
                %230 = sbr.rel (0) target = $region47
              $region46: #{encoder_forward.2} parent=31 // pred_region
                loop: start=0, step=1, limit=1
                $region48: #{encoder_forward.2} parent=46 // loop_pre_header
                  _
                $region49: #{encoder_forward.2} parent=46 // loop_header
                  %s232 = sphi 0, %s236
                  %p233 = scmp.ge.s32.totalorder %s232, 1
                  %s237 = sphi %s180, %s180
                  %s238 = sphi %s175, %s175
                $region50: #{encoder_forward.2} parent=46 // loop_header_branch
                  %235 = sbr.rel (%p233) target = $region54
                $region51: #{encoder_forward.2} parent=46 // loop_body
                  %v239 = vld [vmem:[%s237] sm:$0xff]
                  %240 = vst [vmem:[%s238] sm:$0xff] %v239
                  %v241 = vld [vmem:[%s237 + $0x18] sm:$0xff]
                  %242 = vst [vmem:[%s238 + $0x8] sm:$0xff] %v241
                  %v243 = vld [vmem:[%s237 + $0x30] sm:$0xff]
                  %244 = vst [vmem:[%s238 + $0x10] sm:$0xff] %v243
                  %v245 = vld [vmem:[%s237 + $0x48] sm:$0xff]
                  %246 = vst [vmem:[%s238 + $0x18] sm:$0xff] %v245
                  %v247 = vld [vmem:[%s237 + $0x60] sm:$0xff]
                  %248 = vst [vmem:[%s238 + $0x20] sm:$0xff] %v247
                  %v249 = vld [vmem:[%s237 + $0x78] sm:$0xff]
                  %250 = vst [vmem:[%s238 + $0x28] sm:$0xff] %v249
                  %v251 = vld [vmem:[%s237 + $0x90] sm:$0xff]
                  %252 = vst [vmem:[%s238 + $0x30] sm:$0xff] %v251
                  %v253 = vld [vmem:[%s237 + $0xa8] sm:$0xff]
                  %254 = vst [vmem:[%s238 + $0x38] sm:$0xff] %v253
                  %v255 = vld [vmem:[%s237 + $0xc0] sm:$0xff]
                  %256 = vst [vmem:[%s238 + $0x40] sm:$0xff] %v255
                  %v257 = vld [vmem:[%s237 + $0xd8] sm:$0xff]
                  %258 = vst [vmem:[%s238 + $0x48] sm:$0xff] %v257
                  %v259 = vld [vmem:[%s237 + $0xf0] sm:$0xff]
                  %260 = vst [vmem:[%s238 + $0x50] sm:$0xff] %v259
                  %v261 = vld [vmem:[%s237 + $0x108] sm:$0xff]
                  %262 = vst [vmem:[%s238 + $0x58] sm:$0xff] %v261
                  %v263 = vld [vmem:[%s237 + $0x120] sm:$0xff]
                  %264 = vst [vmem:[%s238 + $0x60] sm:$0xff] %v263
                  %v265 = vld [vmem:[%s237 + $0x138] sm:$0xff]
                  %266 = vst [vmem:[%s238 + $0x68] sm:$0xff] %v265
                  %v267 = vld [vmem:[%s237 + $0x150] sm:$0xff]
                  %268 = vst [vmem:[%s238 + $0x70] sm:$0xff] %v267
                  %v269 = vld [vmem:[%s237 + $0x168] sm:$0xff]
                  %270 = vst [vmem:[%s238 + $0x78] sm:$0xff] %v269
                $region52: #{encoder_forward.2} parent=46 // loop_footer
                  %s236 = sadd.s32 1, %s232
                $region53: #{encoder_forward.2} parent=46 // loop_footer_branch
                  %231 = sbr.rel target = $region49
                $region54: #{encoder_forward.2} parent=46 // loop_exit
                  _
              $region47: #{encoder_forward.2} parent=31 // pred_fallthru
                _
              // Predicated region
              $region55: #{encoder_forward.2} parent=31 // pred_check
                _
              $region56: #{encoder_forward.2} parent=31 // pred_check_branch
                %272 = sbr.rel target = $region58
              $region57: #{encoder_forward.2} parent=31 // pred_region
                _
              $region58: #{encoder_forward.2} parent=31 // pred_fallthru
                _
            $region32: #{encoder_forward.2} parent=27 // pred_fallthru
              _
            // Predicated region
            $region33: #{encoder_forward.2} parent=27 // pred_check
              _
            $region34: #{encoder_forward.2} parent=27 // pred_check_branch
              %186 = sbr.rel target = $region36
            $region35: #{encoder_forward.2} parent=27 // pred_region
              %s188 = ssub.s32 256, 1
              loop: start=0, step=1, limit=1
              $region37: #{encoder_forward.2} parent=35 // loop_pre_header
                _
              $region38: #{encoder_forward.2} parent=35 // loop_header
                %s190 = sphi 0, %s194
                %p191 = scmp.ge.s32.totalorder %s190, 1
                %s195 = sphi %s180, %s180
                %s196 = sphi %s175, %s175
              $region39: #{encoder_forward.2} parent=35 // loop_header_branch
                %193 = sbr.rel (%p191) target = $region43
              $region40: #{encoder_forward.2} parent=35 // loop_body
                %v197 = vld [vmem:[%s195] sm:%s188]
                %198 = vst [vmem:[%s196] sm:%s188] %v197
                %v199 = vld [vmem:[%s195 + $0x18] sm:%s188]
                %200 = vst [vmem:[%s196 + $0x8] sm:%s188] %v199
                %v201 = vld [vmem:[%s195 + $0x30] sm:%s188]
                %202 = vst [vmem:[%s196 + $0x10] sm:%s188] %v201
                %v203 = vld [vmem:[%s195 + $0x48] sm:%s188]
                %204 = vst [vmem:[%s196 + $0x18] sm:%s188] %v203
                %v205 = vld [vmem:[%s195 + $0x60] sm:%s188]
                %206 = vst [vmem:[%s196 + $0x20] sm:%s188] %v205
                %v207 = vld [vmem:[%s195 + $0x78] sm:%s188]
                %208 = vst [vmem:[%s196 + $0x28] sm:%s188] %v207
                %v209 = vld [vmem:[%s195 + $0x90] sm:%s188]
                %210 = vst [vmem:[%s196 + $0x30] sm:%s188] %v209
                %v211 = vld [vmem:[%s195 + $0xa8] sm:%s188]
                %212 = vst [vmem:[%s196 + $0x38] sm:%s188] %v211
                %v213 = vld [vmem:[%s195 + $0xc0] sm:%s188]
                %214 = vst [vmem:[%s196 + $0x40] sm:%s188] %v213
                %v215 = vld [vmem:[%s195 + $0xd8] sm:%s188]
                %216 = vst [vmem:[%s196 + $0x48] sm:%s188] %v215
                %v217 = vld [vmem:[%s195 + $0xf0] sm:%s188]
                %218 = vst [vmem:[%s196 + $0x50] sm:%s188] %v217
                %v219 = vld [vmem:[%s195 + $0x108] sm:%s188]
                %220 = vst [vmem:[%s196 + $0x58] sm:%s188] %v219
                %v221 = vld [vmem:[%s195 + $0x120] sm:%s188]
                %222 = vst [vmem:[%s196 + $0x60] sm:%s188] %v221
                %v223 = vld [vmem:[%s195 + $0x138] sm:%s188]
                %224 = vst [vmem:[%s196 + $0x68] sm:%s188] %v223
                %v225 = vld [vmem:[%s195 + $0x150] sm:%s188]
                %226 = vst [vmem:[%s196 + $0x70] sm:%s188] %v225
                %v227 = vld [vmem:[%s195 + $0x168] sm:%s188]
                %228 = vst [vmem:[%s196 + $0x78] sm:%s188] %v227
              $region41: #{encoder_forward.2} parent=35 // loop_footer
                %s194 = sadd.s32 1, %s190
              $region42: #{encoder_forward.2} parent=35 // loop_footer_branch
                %189 = sbr.rel target = $region38
              $region43: #{encoder_forward.2} parent=35 // loop_exit
                _
            $region36: #{encoder_forward.2} parent=27 // pred_fallthru
              _
          $region28: #{encoder_forward.2} parent=23 // pred_fallthru
            _
          %273 = vnop
        $region24: #{encoder_forward.2} parent=15 // pred_fallthru
          _
        // Predicated region
        $region59: #{encoder_forward.2} parent=15 // pred_check
          %p274 = pneg %p104
        $region60: #{encoder_forward.2} parent=15 // pred_check_branch
          %276 = sbr.rel (%p274) target = $region62
        $region61: #{encoder_forward.2} parent=15 // pred_region
          %p277 = scmp.lt.s32.totalorder %s17, 2
          %s278 = scalar_select %p277, %s17, 2
          %s279 = scalar_lea.vmem %s2, %s278
        $region62: #{encoder_forward.2} parent=15 // pred_fallthru
          _
      $region16: #{encoder_forward.2} parent=5 // pred_fallthru
        _
      %p280 = scmp.le.s32.totalorder 1, %s9
      %p281 = scmp.lt.s32.totalorder %s9, 7
      %p282 = pnand %p280, %p281
      %p283 = pneg %p282
      // Predicated region
      $region63: #{encoder_forward.2} parent=5 // pred_check
        _
      $region64: #{encoder_forward.2} parent=5 // pred_check_branch
        %285 = sbr.rel (%p282) target = $region66
      $region65: #{encoder_forward.2} parent=5 // pred_region
        %s286 = ssub.s32 %s9, 1
        %s287 = sand.u32 %s71, 1
        %s288 = sand.u32 %s71, 1
        %s289 = smul.addr %s288, 128
        %s290 = scalar_lea.vmem [#allocation2], %s289
        // Predicated region
        $region67: #{encoder_forward.2} parent=65 // pred_check
          %p291 = pneg %p84
        $region68: #{encoder_forward.2} parent=65 // pred_check_branch
          %293 = sbr.rel (%p291) target = $region70
        $region69: #{encoder_forward.2} parent=65 // pred_region
          _
        $region70: #{encoder_forward.2} parent=65 // pred_fallthru
          _
        %s294 = smul.u32 32, %s19
        %p295 = scmp.lt.s32.totalorder %s294, 63
        %s296 = scalar_select %p295, %s294, 63
        %p297 = scmp.lt.s32.totalorder %s21, 0
        %s298 = scalar_select %p297, %s21, 0
        %s299 = sadd.s32 %s298, %s296
        %s300 = smul.addr %s299, 8
        %s301 = scalar_lea.vmem %s0, %s300
        %p302 = pneg %p56
        %p303 = pneg %p53
        %s304 = sand.u32 %s71, 1
        %s305 = sand.u32 %s71, 1
        %s306 = smul.addr %s305, 128
        %s307 = scalar_lea.vmem [#allocation2], %s306
        %p308 = pneg %p84
        %p309 = pneg %p81
        %p310 = scmp.lt.s32.totalorder %s20, 2
        %s311 = scalar_select %p310, %s20, 2
        %s312 = scalar_lea.vmem %s2, %s311
        %p313 = pneg %p110
        %p314 = pneg %p107
        %p315 = pneg %p138
        %p316 = pneg %p135
        %s317 = sand.u32 %s125, 1
        %s318 = sand.u32 %s125, 1
        %s319 = smul.addr %s318, 256
        %s320 = scalar_lea.vmem [#allocation3], %s319
        %s321 = smul.u32 32, %s19
        %p322 = scmp.lt.s32.totalorder %s321, 63
        %s323 = scalar_select %p322, %s321, 63
        %p324 = scmp.lt.s32.totalorder %s21, 0
        %s325 = scalar_select %p324, %s21, 0
        %s326 = sadd.s32 %s325, %s323
        %s327 = smul.addr %s326, 8
        %s328 = scalar_lea.vmem %s0, %s327
        %s329 = smul.u32 32, %s19
        %s330 = smul.u32 16, %s21
        %p331 = scmp.lt.s32.totalorder %s20, 2
        %s332 = scalar_select %p331, %s20, 2
        %s333 = scalar_lea.vmem %s2, %s332
        %s334 = smul.u32 32, %s19
        %v335 = vld [vmem:[%s328] sm:$0xff]
        %v336 = vld [vmem:[%s328 + $0x8] sm:$0xff]
        %v337 = vld [vmem:[%s328 + $0x10] sm:$0xff]
        %v338 = vld [vmem:[%s328 + $0x18] sm:$0xff]
        %v339 = vld [vmem:[%s328 + $0x20] sm:$0xff]
        %v340 = vld [vmem:[%s328 + $0x28] sm:$0xff]
        %v341 = vld [vmem:[%s328 + $0x30] sm:$0xff]
        %v342 = vld [vmem:[%s328 + $0x38] sm:$0xff]
        %v343 = vld [vmem:[%s328 + $0x40] sm:$0xff]
        %v344 = vld [vmem:[%s328 + $0x48] sm:$0xff]
        %v345 = vld [vmem:[%s328 + $0x50] sm:$0xff]
        %v346 = vld [vmem:[%s328 + $0x58] sm:$0xff]
        %v347 = vld [vmem:[%s328 + $0x60] sm:$0xff]
        %v348 = vld [vmem:[%s328 + $0x68] sm:$0xff]
        %v349 = vld [vmem:[%s328 + $0x70] sm:$0xff]
        %v350 = vld [vmem:[%s328 + $0x78] sm:$0xff]
        %v351 = vld [vmem:[%s328 + $0x80] sm:$0xff]
        %v352 = vld [vmem:[%s328 + $0x88] sm:$0xff]
        %v353 = vld [vmem:[%s328 + $0x90] sm:$0xff]
        %v354 = vld [vmem:[%s328 + $0x98] sm:$0xff]
        %v355 = vld [vmem:[%s328 + $0xa0] sm:$0xff]
        %v356 = vld [vmem:[%s328 + $0xa8] sm:$0xff]
        %v357 = vld [vmem:[%s328 + $0xb0] sm:$0xff]
        %v358 = vld [vmem:[%s328 + $0xb8] sm:$0xff]
        %v359 = vld [vmem:[%s328 + $0xc0] sm:$0xff]
        %v360 = vld [vmem:[%s328 + $0xc8] sm:$0xff]
        %v361 = vld [vmem:[%s328 + $0xd0] sm:$0xff]
        %v362 = vld [vmem:[%s328 + $0xd8] sm:$0xff]
        %v363 = vld [vmem:[%s328 + $0xe0] sm:$0xff]
        %v364 = vld [vmem:[%s328 + $0xe8] sm:$0xff]
        %v365 = vld [vmem:[%s328 + $0xf0] sm:$0xff]
        %v366 = vld [vmem:[%s328 + $0xf8] sm:$0xff]
        %v367 = vld [vmem:[%s290] sm:$0xff]
        %v368 = vld [vmem:[%s290 + $0x8] sm:$0xff]
        %v369 = vld [vmem:[%s290 + $0x10] sm:$0xff]
        %v370 = vld [vmem:[%s290 + $0x18] sm:$0xff]
        %v371 = vld [vmem:[%s290 + $0x20] sm:$0xff]
        %v372 = vld [vmem:[%s290 + $0x28] sm:$0xff]
        %v373 = vld [vmem:[%s290 + $0x30] sm:$0xff]
        %v374 = vld [vmem:[%s290 + $0x38] sm:$0xff]
        %v375 = vld [vmem:[%s290 + $0x40] sm:$0xff]
        %v376 = vld [vmem:[%s290 + $0x48] sm:$0xff]
        %v377 = vld [vmem:[%s290 + $0x50] sm:$0xff]
        %v378 = vld [vmem:[%s290 + $0x58] sm:$0xff]
        %v379 = vld [vmem:[%s290 + $0x60] sm:$0xff]
        %v380 = vld [vmem:[%s290 + $0x68] sm:$0xff]
        %v381 = vld [vmem:[%s290 + $0x70] sm:$0xff]
        %v382 = vld [vmem:[%s290 + $0x78] sm:$0xff]
        %v383 = vld [vmem:[%s333] sm:$0x1]
        %v385 = vperm.slane %v383, 0
        %387 = vmatpush.msra.mxu0 %v382
        %388 = vmatpush.msra.mxu0 %v381
        %389 = vmatpush.msra.mxu0 %v380
        %390 = vmatpush.msra.mxu0 %v379
        %391 = vmatpush.msra.mxu0 %v378
        %392 = vmatpush.msra.mxu0 %v377
        %393 = vmatpush.msra.mxu0 %v376
        %394 = vmatpush.msra.mxu0 %v375
        %395 = vmatpush.msra.mxu0 %v374
        %396 = vmatpush.msra.mxu0 %v373
        %397 = vmatpush.msra.mxu0 %v372
        %398 = vmatpush.msra.mxu0 %v371
        %399 = vmatpush.msra.mxu0 %v370
        %400 = vmatpush.msra.mxu0 %v369
        %401 = vmatpush.msra.mxu0 %v368
        %402 = vmatpush.msra.mxu0 %v367
        %403 = vmatmul.f32.gmra.mxu0 %v335
        %v404 = vpop.f32.mrf.mxu0
        %v405 = vadd.f32 %v385, %v404
        %406 = vmatmul.f32.gmra.mxu0 %v336
        %v407 = vpop.f32.mrf.mxu0
        %v408 = vadd.f32 %v385, %v407
        %409 = vmatmul.f32.gmra.mxu0 %v337
        %v410 = vpop.f32.mrf.mxu0
        %v411 = vadd.f32 %v385, %v410
        %412 = vmatmul.f32.gmra.mxu0 %v338
        %v413 = vpop.f32.mrf.mxu0
        %v414 = vadd.f32 %v385, %v413
        %415 = vmatmul.f32.gmra.mxu0 %v339
        %v416 = vpop.f32.mrf.mxu0
        %v417 = vadd.f32 %v385, %v416
        %418 = vmatmul.f32.gmra.mxu0 %v340
        %v419 = vpop.f32.mrf.mxu0
        %v420 = vadd.f32 %v385, %v419
        %421 = vmatmul.f32.gmra.mxu0 %v341
        %v422 = vpop.f32.mrf.mxu0
        %v423 = vadd.f32 %v385, %v422
        %424 = vmatmul.f32.gmra.mxu0 %v342
        %v425 = vpop.f32.mrf.mxu0
        %v426 = vadd.f32 %v385, %v425
        %427 = vmatmul.f32.gmra.mxu0 %v343
        %v428 = vpop.f32.mrf.mxu0
        %v429 = vadd.f32 %v385, %v428
        %430 = vmatmul.f32.gmra.mxu0 %v344
        %v431 = vpop.f32.mrf.mxu0
        %v432 = vadd.f32 %v385, %v431
        %433 = vmatmul.f32.gmra.mxu0 %v345
        %v434 = vpop.f32.mrf.mxu0
        %v435 = vadd.f32 %v385, %v434
        %436 = vmatmul.f32.gmra.mxu0 %v346
        %v437 = vpop.f32.mrf.mxu0
        %v438 = vadd.f32 %v385, %v437
        %439 = vmatmul.f32.gmra.mxu0 %v347
        %v440 = vpop.f32.mrf.mxu0
        %v441 = vadd.f32 %v385, %v440
        %442 = vmatmul.f32.gmra.mxu0 %v348
        %v443 = vpop.f32.mrf.mxu0
        %v444 = vadd.f32 %v385, %v443
        %445 = vmatmul.f32.gmra.mxu0 %v349
        %v446 = vpop.f32.mrf.mxu0
        %v447 = vadd.f32 %v385, %v446
        %448 = vmatmul.f32.gmra.mxu0 %v350
        %v449 = vpop.f32.mrf.mxu0
        %v450 = vadd.f32 %v385, %v449
        %451 = vmatmul.f32.gmra.mxu0 %v351
        %v452 = vpop.f32.mrf.mxu0
        %v453 = vadd.f32 %v385, %v452
        %454 = vmatmul.f32.gmra.mxu0 %v352
        %v455 = vpop.f32.mrf.mxu0
        %v456 = vadd.f32 %v385, %v455
        %457 = vmatmul.f32.gmra.mxu0 %v353
        %v458 = vpop.f32.mrf.mxu0
        %v459 = vadd.f32 %v385, %v458
        %460 = vmatmul.f32.gmra.mxu0 %v354
        %v461 = vpop.f32.mrf.mxu0
        %v462 = vadd.f32 %v385, %v461
        %463 = vmatmul.f32.gmra.mxu0 %v355
        %v464 = vpop.f32.mrf.mxu0
        %v465 = vadd.f32 %v385, %v464
        %466 = vmatmul.f32.gmra.mxu0 %v356
        %v467 = vpop.f32.mrf.mxu0
        %v468 = vadd.f32 %v385, %v467
        %469 = vmatmul.f32.gmra.mxu0 %v357
        %v470 = vpop.f32.mrf.mxu0
        %v471 = vadd.f32 %v385, %v470
        %472 = vmatmul.f32.gmra.mxu0 %v358
        %v473 = vpop.f32.mrf.mxu0
        %v474 = vadd.f32 %v385, %v473
        %475 = vmatmul.f32.gmra.mxu0 %v359
        %v476 = vpop.f32.mrf.mxu0
        %v477 = vadd.f32 %v385, %v476
        %478 = vmatmul.f32.gmra.mxu0 %v360
        %v479 = vpop.f32.mrf.mxu0
        %v480 = vadd.f32 %v385, %v479
        %481 = vmatmul.f32.gmra.mxu0 %v361
        %v482 = vpop.f32.mrf.mxu0
        %v483 = vadd.f32 %v385, %v482
        %484 = vmatmul.f32.gmra.mxu0 %v362
        %v485 = vpop.f32.mrf.mxu0
        %v486 = vadd.f32 %v385, %v485
        %487 = vmatmul.f32.gmra.mxu0 %v363
        %v488 = vpop.f32.mrf.mxu0
        %v489 = vadd.f32 %v385, %v488
        %490 = vmatmul.f32.gmra.mxu0 %v364
        %v491 = vpop.f32.mrf.mxu0
        %v492 = vadd.f32 %v385, %v491
        %493 = vmatmul.f32.gmra.mxu0 %v365
        %v494 = vpop.f32.mrf.mxu0
        %v495 = vadd.f32 %v385, %v494
        %496 = vmatmul.f32.gmra.mxu0 %v366
        %v497 = vpop.f32.mrf.mxu0
        %v498 = vadd.f32 %v385, %v497
        %499 = vdwg.mxu0
        %v500 = vmax.f32 %v405, 0.0
        %v501 = vmax.f32 %v408, 0.0
        %v502 = vmax.f32 %v411, 0.0
        %v503 = vmax.f32 %v414, 0.0
        %v504 = vmax.f32 %v417, 0.0
        %v505 = vmax.f32 %v420, 0.0
        %v506 = vmax.f32 %v423, 0.0
        %v507 = vmax.f32 %v426, 0.0
        %v508 = vmax.f32 %v429, 0.0
        %v509 = vmax.f32 %v432, 0.0
        %v510 = vmax.f32 %v435, 0.0
        %v511 = vmax.f32 %v438, 0.0
        %v512 = vmax.f32 %v441, 0.0
        %v513 = vmax.f32 %v444, 0.0
        %v514 = vmax.f32 %v447, 0.0
        %v515 = vmax.f32 %v450, 0.0
        %v516 = vmax.f32 %v453, 0.0
        %v517 = vmax.f32 %v456, 0.0
        %v518 = vmax.f32 %v459, 0.0
        %v519 = vmax.f32 %v462, 0.0
        %v520 = vmax.f32 %v465, 0.0
        %v521 = vmax.f32 %v468, 0.0
        %v522 = vmax.f32 %v471, 0.0
        %v523 = vmax.f32 %v474, 0.0
        %v524 = vmax.f32 %v477, 0.0
        %v525 = vmax.f32 %v480, 0.0
        %v526 = vmax.f32 %v483, 0.0
        %v527 = vmax.f32 %v486, 0.0
        %v528 = vmax.f32 %v489, 0.0
        %v529 = vmax.f32 %v492, 0.0
        %v530 = vmax.f32 %v495, 0.0
        %v531 = vmax.f32 %v498, 0.0
        %532 = vst [vmem:[%s320] sm:$0xff] %v500
        %533 = vst [vmem:[%s320 + $0x8] sm:$0xff] %v501
        %534 = vst [vmem:[%s320 + $0x10] sm:$0xff] %v502
        %535 = vst [vmem:[%s320 + $0x18] sm:$0xff] %v503
        %536 = vst [vmem:[%s320 + $0x20] sm:$0xff] %v504
        %537 = vst [vmem:[%s320 + $0x28] sm:$0xff] %v505
        %538 = vst [vmem:[%s320 + $0x30] sm:$0xff] %v506
        %539 = vst [vmem:[%s320 + $0x38] sm:$0xff] %v507
        %540 = vst [vmem:[%s320 + $0x40] sm:$0xff] %v508
        %541 = vst [vmem:[%s320 + $0x48] sm:$0xff] %v509
        %542 = vst [vmem:[%s320 + $0x50] sm:$0xff] %v510
        %543 = vst [vmem:[%s320 + $0x58] sm:$0xff] %v511
        %544 = vst [vmem:[%s320 + $0x60] sm:$0xff] %v512
        %545 = vst [vmem:[%s320 + $0x68] sm:$0xff] %v513
        %546 = vst [vmem:[%s320 + $0x70] sm:$0xff] %v514
        %547 = vst [vmem:[%s320 + $0x78] sm:$0xff] %v515
        %548 = vst [vmem:[%s320 + $0x80] sm:$0xff] %v516
        %549 = vst [vmem:[%s320 + $0x88] sm:$0xff] %v517
        %550 = vst [vmem:[%s320 + $0x90] sm:$0xff] %v518
        %551 = vst [vmem:[%s320 + $0x98] sm:$0xff] %v519
        %552 = vst [vmem:[%s320 + $0xa0] sm:$0xff] %v520
        %553 = vst [vmem:[%s320 + $0xa8] sm:$0xff] %v521
        %554 = vst [vmem:[%s320 + $0xb0] sm:$0xff] %v522
        %555 = vst [vmem:[%s320 + $0xb8] sm:$0xff] %v523
        %556 = vst [vmem:[%s320 + $0xc0] sm:$0xff] %v524
        %557 = vst [vmem:[%s320 + $0xc8] sm:$0xff] %v525
        %558 = vst [vmem:[%s320 + $0xd0] sm:$0xff] %v526
        %559 = vst [vmem:[%s320 + $0xd8] sm:$0xff] %v527
        %560 = vst [vmem:[%s320 + $0xe0] sm:$0xff] %v528
        %561 = vst [vmem:[%s320 + $0xe8] sm:$0xff] %v529
        %562 = vst [vmem:[%s320 + $0xf0] sm:$0xff] %v530
        %563 = vst [vmem:[%s320 + $0xf8] sm:$0xff] %v531
        %s564 = sand.u32 %s125, 1
        %s565 = sand.u32 %s125, 1
        %s566 = smul.addr %s565, 256
        %s567 = scalar_lea.vmem [#allocation3], %s566
        // Predicated region
        $region71: #{encoder_forward.2} parent=65 // pred_check
          %p568 = pneg %p135
        $region72: #{encoder_forward.2} parent=65 // pred_check_branch
          %570 = sbr.rel (%p568) target = $region74
        $region73: #{encoder_forward.2} parent=65 // pred_region
          %s571 = smul.u32 32, %s19
          %s572 = smul.addr %s571, 3
          %s573 = sadd.s32 %s20, %s572
          %s574 = smul.addr %s573, 8
          %s575 = scalar_lea.vmem %s3, %s574
          // Predicated region
          $region75: #{encoder_forward.2} parent=73 // pred_check
            _
          $region76: #{encoder_forward.2} parent=73 // pred_check_branch
            %577 = sbr.rel (0) target = $region78
          $region77: #{encoder_forward.2} parent=73 // pred_region
            // Predicated region
            $region79: #{encoder_forward.2} parent=77 // pred_check
              _
            $region80: #{encoder_forward.2} parent=77 // pred_check_branch
              %579 = sbr.rel (0) target = $region82
            $region81: #{encoder_forward.2} parent=77 // pred_region
              // Predicated region
              $region94: #{encoder_forward.2} parent=81 // pred_check
                _
              $region95: #{encoder_forward.2} parent=81 // pred_check_branch
                %657 = sbr.rel (0) target = $region97
              $region96: #{encoder_forward.2} parent=81 // pred_region
                loop: start=0, step=1, limit=1
                $region98: #{encoder_forward.2} parent=96 // loop_pre_header
                  _
                $region99: #{encoder_forward.2} parent=96 // loop_header
                  %s659 = sphi 0, %s663
                  %p660 = scmp.ge.s32.totalorder %s659, 1
                  %s664 = sphi %s567, %s567
                  %s665 = sphi %s575, %s575
                $region100: #{encoder_forward.2} parent=96 // loop_header_branch
                  %662 = sbr.rel (%p660) target = $region104
                $region101: #{encoder_forward.2} parent=96 // loop_body
                  %v666 = vld [vmem:[%s664] sm:$0xff]
                  %667 = vst [vmem:[%s665] sm:$0xff] %v666
                  %v668 = vld [vmem:[%s664 + $0x8] sm:$0xff]
                  %669 = vst [vmem:[%s665 + $0x18] sm:$0xff] %v668
                  %v670 = vld [vmem:[%s664 + $0x10] sm:$0xff]
                  %671 = vst [vmem:[%s665 + $0x30] sm:$0xff] %v670
                  %v672 = vld [vmem:[%s664 + $0x18] sm:$0xff]
                  %673 = vst [vmem:[%s665 + $0x48] sm:$0xff] %v672
                  %v674 = vld [vmem:[%s664 + $0x20] sm:$0xff]
                  %675 = vst [vmem:[%s665 + $0x60] sm:$0xff] %v674
                  %v676 = vld [vmem:[%s664 + $0x28] sm:$0xff]
                  %677 = vst [vmem:[%s665 + $0x78] sm:$0xff] %v676
                  %v678 = vld [vmem:[%s664 + $0x30] sm:$0xff]
                  %679 = vst [vmem:[%s665 + $0x90] sm:$0xff] %v678
                  %v680 = vld [vmem:[%s664 + $0x38] sm:$0xff]
                  %681 = vst [vmem:[%s665 + $0xa8] sm:$0xff] %v680
                  %v682 = vld [vmem:[%s664 + $0x40] sm:$0xff]
                  %683 = vst [vmem:[%s665 + $0xc0] sm:$0xff] %v682
                  %v684 = vld [vmem:[%s664 + $0x48] sm:$0xff]
                  %685 = vst [vmem:[%s665 + $0xd8] sm:$0xff] %v684
                  %v686 = vld [vmem:[%s664 + $0x50] sm:$0xff]
                  %687 = vst [vmem:[%s665 + $0xf0] sm:$0xff] %v686
                  %v688 = vld [vmem:[%s664 + $0x58] sm:$0xff]
                  %689 = vst [vmem:[%s665 + $0x108] sm:$0xff] %v688
                  %v690 = vld [vmem:[%s664 + $0x60] sm:$0xff]
                  %691 = vst [vmem:[%s665 + $0x120] sm:$0xff] %v690
                  %v692 = vld [vmem:[%s664 + $0x68] sm:$0xff]
                  %693 = vst [vmem:[%s665 + $0x138] sm:$0xff] %v692
                  %v694 = vld [vmem:[%s664 + $0x70] sm:$0xff]
                  %695 = vst [vmem:[%s665 + $0x150] sm:$0xff] %v694
                  %v696 = vld [vmem:[%s664 + $0x78] sm:$0xff]
                  %697 = vst [vmem:[%s665 + $0x168] sm:$0xff] %v696
                  %v698 = vld [vmem:[%s664 + $0x80] sm:$0xff]
                  %699 = vst [vmem:[%s665 + $0x180] sm:$0xff] %v698
                  %v700 = vld [vmem:[%s664 + $0x88] sm:$0xff]
                  %701 = vst [vmem:[%s665 + $0x198] sm:$0xff] %v700
                  %v702 = vld [vmem:[%s664 + $0x90] sm:$0xff]
                  %703 = vst [vmem:[%s665 + $0x1b0] sm:$0xff] %v702
                  %v704 = vld [vmem:[%s664 + $0x98] sm:$0xff]
                  %705 = vst [vmem:[%s665 + $0x1c8] sm:$0xff] %v704
                  %v706 = vld [vmem:[%s664 + $0xa0] sm:$0xff]
                  %707 = vst [vmem:[%s665 + $0x1e0] sm:$0xff] %v706
                  %v708 = vld [vmem:[%s664 + $0xa8] sm:$0xff]
                  %709 = vst [vmem:[%s665 + $0x1f8] sm:$0xff] %v708
                  %v710 = vld [vmem:[%s664 + $0xb0] sm:$0xff]
                  %711 = vst [vmem:[%s665 + $0x210] sm:$0xff] %v710
                  %v712 = vld [vmem:[%s664 + $0xb8] sm:$0xff]
                  %713 = vst [vmem:[%s665 + $0x228] sm:$0xff] %v712
                  %v714 = vld [vmem:[%s664 + $0xc0] sm:$0xff]
                  %715 = vst [vmem:[%s665 + $0x240] sm:$0xff] %v714
                  %v716 = vld [vmem:[%s664 + $0xc8] sm:$0xff]
                  %717 = vst [vmem:[%s665 + $0x258] sm:$0xff] %v716
                  %v718 = vld [vmem:[%s664 + $0xd0] sm:$0xff]
                  %719 = vst [vmem:[%s665 + $0x270] sm:$0xff] %v718
                  %v720 = vld [vmem:[%s664 + $0xd8] sm:$0xff]
                  %721 = vst [vmem:[%s665 + $0x288] sm:$0xff] %v720
                  %v722 = vld [vmem:[%s664 + $0xe0] sm:$0xff]
                  %723 = vst [vmem:[%s665 + $0x2a0] sm:$0xff] %v722
                  %v724 = vld [vmem:[%s664 + $0xe8] sm:$0xff]
                  %725 = vst [vmem:[%s665 + $0x2b8] sm:$0xff] %v724
                  %v726 = vld [vmem:[%s664 + $0xf0] sm:$0xff]
                  %727 = vst [vmem:[%s665 + $0x2d0] sm:$0xff] %v726
                  %v728 = vld [vmem:[%s664 + $0xf8] sm:$0xff]
                  %729 = vst [vmem:[%s665 + $0x2e8] sm:$0xff] %v728
                $region102: #{encoder_forward.2} parent=96 // loop_footer
                  %s663 = sadd.s32 1, %s659
                $region103: #{encoder_forward.2} parent=96 // loop_footer_branch
                  %658 = sbr.rel target = $region99
                $region104: #{encoder_forward.2} parent=96 // loop_exit
                  _
              $region97: #{encoder_forward.2} parent=81 // pred_fallthru
                _
              // Predicated region
              $region105: #{encoder_forward.2} parent=81 // pred_check
                _
              $region106: #{encoder_forward.2} parent=81 // pred_check_branch
                %731 = sbr.rel target = $region108
              $region107: #{encoder_forward.2} parent=81 // pred_region
                _
              $region108: #{encoder_forward.2} parent=81 // pred_fallthru
                _
            $region82: #{encoder_forward.2} parent=77 // pred_fallthru
              _
            // Predicated region
            $region83: #{encoder_forward.2} parent=77 // pred_check
              _
            $region84: #{encoder_forward.2} parent=77 // pred_check_branch
              %581 = sbr.rel target = $region86
            $region85: #{encoder_forward.2} parent=77 // pred_region
              %s583 = ssub.s32 256, 1
              loop: start=0, step=1, limit=1
              $region87: #{encoder_forward.2} parent=85 // loop_pre_header
                _
              $region88: #{encoder_forward.2} parent=85 // loop_header
                %s585 = sphi 0, %s589
                %p586 = scmp.ge.s32.totalorder %s585, 1
                %s590 = sphi %s567, %s567
                %s591 = sphi %s575, %s575
              $region89: #{encoder_forward.2} parent=85 // loop_header_branch
                %588 = sbr.rel (%p586) target = $region93
              $region90: #{encoder_forward.2} parent=85 // loop_body
                %v592 = vld [vmem:[%s590] sm:%s583]
                %593 = vst [vmem:[%s591] sm:%s583] %v592
                %v594 = vld [vmem:[%s590 + $0x8] sm:%s583]
                %595 = vst [vmem:[%s591 + $0x18] sm:%s583] %v594
                %v596 = vld [vmem:[%s590 + $0x10] sm:%s583]
                %597 = vst [vmem:[%s591 + $0x30] sm:%s583] %v596
                %v598 = vld [vmem:[%s590 + $0x18] sm:%s583]
                %599 = vst [vmem:[%s591 + $0x48] sm:%s583] %v598
                %v600 = vld [vmem:[%s590 + $0x20] sm:%s583]
                %601 = vst [vmem:[%s591 + $0x60] sm:%s583] %v600
                %v602 = vld [vmem:[%s590 + $0x28] sm:%s583]
                %603 = vst [vmem:[%s591 + $0x78] sm:%s583] %v602
                %v604 = vld [vmem:[%s590 + $0x30] sm:%s583]
                %605 = vst [vmem:[%s591 + $0x90] sm:%s583] %v604
                %v606 = vld [vmem:[%s590 + $0x38] sm:%s583]
                %607 = vst [vmem:[%s591 + $0xa8] sm:%s583] %v606
                %v608 = vld [vmem:[%s590 + $0x40] sm:%s583]
                %609 = vst [vmem:[%s591 + $0xc0] sm:%s583] %v608
                %v610 = vld [vmem:[%s590 + $0x48] sm:%s583]
                %611 = vst [vmem:[%s591 + $0xd8] sm:%s583] %v610
                %v612 = vld [vmem:[%s590 + $0x50] sm:%s583]
                %613 = vst [vmem:[%s591 + $0xf0] sm:%s583] %v612
                %v614 = vld [vmem:[%s590 + $0x58] sm:%s583]
                %615 = vst [vmem:[%s591 + $0x108] sm:%s583] %v614
                %v616 = vld [vmem:[%s590 + $0x60] sm:%s583]
                %617 = vst [vmem:[%s591 + $0x120] sm:%s583] %v616
                %v618 = vld [vmem:[%s590 + $0x68] sm:%s583]
                %619 = vst [vmem:[%s591 + $0x138] sm:%s583] %v618
                %v620 = vld [vmem:[%s590 + $0x70] sm:%s583]
                %621 = vst [vmem:[%s591 + $0x150] sm:%s583] %v620
                %v622 = vld [vmem:[%s590 + $0x78] sm:%s583]
                %623 = vst [vmem:[%s591 + $0x168] sm:%s583] %v622
                %v624 = vld [vmem:[%s590 + $0x80] sm:%s583]
                %625 = vst [vmem:[%s591 + $0x180] sm:%s583] %v624
                %v626 = vld [vmem:[%s590 + $0x88] sm:%s583]
                %627 = vst [vmem:[%s591 + $0x198] sm:%s583] %v626
                %v628 = vld [vmem:[%s590 + $0x90] sm:%s583]
                %629 = vst [vmem:[%s591 + $0x1b0] sm:%s583] %v628
                %v630 = vld [vmem:[%s590 + $0x98] sm:%s583]
                %631 = vst [vmem:[%s591 + $0x1c8] sm:%s583] %v630
                %v632 = vld [vmem:[%s590 + $0xa0] sm:%s583]
                %633 = vst [vmem:[%s591 + $0x1e0] sm:%s583] %v632
                %v634 = vld [vmem:[%s590 + $0xa8] sm:%s583]
                %635 = vst [vmem:[%s591 + $0x1f8] sm:%s583] %v634
                %v636 = vld [vmem:[%s590 + $0xb0] sm:%s583]
                %637 = vst [vmem:[%s591 + $0x210] sm:%s583] %v636
                %v638 = vld [vmem:[%s590 + $0xb8] sm:%s583]
                %639 = vst [vmem:[%s591 + $0x228] sm:%s583] %v638
                %v640 = vld [vmem:[%s590 + $0xc0] sm:%s583]
                %641 = vst [vmem:[%s591 + $0x240] sm:%s583] %v640
                %v642 = vld [vmem:[%s590 + $0xc8] sm:%s583]
                %643 = vst [vmem:[%s591 + $0x258] sm:%s583] %v642
                %v644 = vld [vmem:[%s590 + $0xd0] sm:%s583]
                %645 = vst [vmem:[%s591 + $0x270] sm:%s583] %v644
                %v646 = vld [vmem:[%s590 + $0xd8] sm:%s583]
                %647 = vst [vmem:[%s591 + $0x288] sm:%s583] %v646
                %v648 = vld [vmem:[%s590 + $0xe0] sm:%s583]
                %649 = vst [vmem:[%s591 + $0x2a0] sm:%s583] %v648
                %v650 = vld [vmem:[%s590 + $0xe8] sm:%s583]
                %651 = vst [vmem:[%s591 + $0x2b8] sm:%s583] %v650
                %v652 = vld [vmem:[%s590 + $0xf0] sm:%s583]
                %653 = vst [vmem:[%s591 + $0x2d0] sm:%s583] %v652
                %v654 = vld [vmem:[%s590 + $0xf8] sm:%s583]
                %655 = vst [vmem:[%s591 + $0x2e8] sm:%s583] %v654
              $region91: #{encoder_forward.2} parent=85 // loop_footer
                %s589 = sadd.s32 1, %s585
              $region92: #{encoder_forward.2} parent=85 // loop_footer_branch
                %584 = sbr.rel target = $region88
              $region93: #{encoder_forward.2} parent=85 // loop_exit
                _
            $region86: #{encoder_forward.2} parent=77 // pred_fallthru
              _
          $region78: #{encoder_forward.2} parent=73 // pred_fallthru
            _
          %732 = vnop
        $region74: #{encoder_forward.2} parent=65 // pred_fallthru
          _
      $region66: #{encoder_forward.2} parent=5 // pred_fallthru
        _
      %p733 = scmp.le.s32.totalorder 2, %s9
      // Predicated region
      $region109: #{encoder_forward.2} parent=5 // pred_check
        %p734 = pneg %p733
      $region110: #{encoder_forward.2} parent=5 // pred_check_branch
        %736 = sbr.rel (%p734) target = $region112
      $region111: #{encoder_forward.2} parent=5 // pred_region
        %s737 = ssub.s32 %s9, 2
        // Predicated region
        $region113: #{encoder_forward.2} parent=111 // pred_check
          %p738 = pneg %p141
        $region114: #{encoder_forward.2} parent=111 // pred_check_branch
          %740 = sbr.rel (%p738) target = $region116
        $region115: #{encoder_forward.2} parent=111 // pred_region
          %s741 = sand.u32 %s126, 1
          %s742 = sand.u32 %s126, 1
          %s743 = smul.addr %s742, 256
          %s744 = scalar_lea.vmem [#allocation3], %s743
        $region116: #{encoder_forward.2} parent=111 // pred_fallthru
          _
      $region112: #{encoder_forward.2} parent=5 // pred_fallthru
        _
    $region6: #{encoder_forward.2} parent=1 // loop_footer
      %s13 = sadd.s32 1, %s9
    $region7: #{encoder_forward.2} parent=1 // loop_footer_branch
      %8 = sbr.rel target = $region3
    $region8: #{encoder_forward.2} parent=1 // loop_exit
      _

// kernel: encoder_forward.3
$region0: #{encoder_forward.3}
  #allocation0 [shape = 'u32[]', space=smem, size = 0x4, offset = 0x4, fixed_abs, tag = 'smem constant byte address 0x4 - core index']
  #allocation1 [shape = 'u32[72,128]{1,0:T(1,128)}', space=vmem, size = 0x9000, scoped, tag = 'internal scratch']
  #allocation2 [shape = 'f32[128,128]{1,0:T(8,128)}', space=vmem, size = 0x10000, scoped, tag = 'scratch operand']
  %s0 = inlined_call_operand.vmem [shape: f32[128,9600], index: 0, kind: input, shape index: {}]
  %s1 = inlined_call_operand.vmem [shape: f32[9600,640], index: 1, kind: input, shape index: {}]
  %s2 = inlined_call_operand.vmem [shape: f32[1,640], index: 2, kind: input, shape index: {}]
  %s3 = inlined_call_operand.hbm [shape: f32[128,640], index: 3, kind: output, shape index: {}]
  %s4 = sld [smem:[#allocation0]]
  $region114: #{encoder_forward.3} parent=0
    _
  %s6 = ssub.s32 1, %s4
  %s7 = scalar_select 0, %s6, %s4
  $region1: #{encoder_forward.3} parent=0
    #allocation3 [shape = 'u8[1966080]{0}', space=vmem, size = 0x1e0000, scoped, tag = 'input window, operand 0']
    #allocation4 [shape = 'u8[1966080]{0}', space=vmem, size = 0x1e0000, scoped, tag = 'input window, operand 1']
    #allocation5 [shape = 'u8[131072]{0}', space=vmem, size = 0x20000, scoped, tag = 'output window, operand 0']
    #allocation6 [shape = 's32[2]{0}', space=sflag, size = 0x8, scoped, tag = 'scoped memory for encoder_forward.3']
    %8 = vsyncpa [#allocation6], 0
    %s9 = scalar_lea.sflag [#allocation6], 1
    %10 = vsyncpa %s9, 0
    loop: start=0, step=1, limit=27
    $region2: #{encoder_forward.3} parent=1 // loop_pre_header
      _
    $region3: #{encoder_forward.3} parent=1 // loop_header
      %s12 = sphi 0, %s16
      %p13 = scmp.ge.s32.totalorder %s12, 27
      %s19 = sphi 0, %s38
      %s20 = sphi 0, %s34
      %s21 = sphi 0, %s30
      %s22 = sphi 0, %s19
      %s23 = sphi 0, %s20
      %s24 = sphi 0, %s21
      %s25 = sphi 0, %s22
      %s26 = sphi 0, %s23
      %s27 = sphi 0, %s24
      %s43 = sphi 0, %s45
      %s46 = sphi 0, %s43
      %s47 = sphi 0, %s46
      %s63 = sphi 0, %s47
      %s71 = sphi 0, %s73
      %s74 = sphi 0, %s71
      %s75 = sphi 0, %s74
      %s91 = sphi 0, %s75
      %s97 = sphi 0, %s99
      %s100 = sphi 0, %s97
      %s101 = sphi 0, %s100
      %s117 = sphi 0, %s101
      %s125 = sphi 0, %s127
      %s128 = sphi 0, %s125
      %s129 = sphi 0, %s128
      %s145 = sphi 0, %s129
    $region4: #{encoder_forward.3} parent=1 // loop_header_branch
      %15 = sbr.rel (%p13) target = $region8
    $region5: #{encoder_forward.3} parent=1 // loop_body
      %s17 = ssub.s32 %s12, 1
      %s18 = ssub.s32 %s12, 2
      %s28 = sadd.s32 1, %s21
      %p29 = scmp.ge.s32.totalorder %s28, 5
      %s30 = scalar_select %p29, 0, %s28
      %s31 = sadd.s32 1, %s20
      %s32 = scalar_select %p29, %s31, %s20
      %p33 = scmp.ge.s32.totalorder %s32, 5
      %s34 = scalar_select %p33, 0, %s32
      %s35 = sadd.s32 1, %s19
      %s36 = scalar_select %p33, %s35, %s19
      %p37 = scmp.ge.s32.totalorder %s36, 1
      %s38 = scalar_select %p37, 0, %s36
      %s39 = ssub.s32 %s19, %s38
      %s40 = ssub.s32 %s21, %s30
      %s41 = sor.u32 %s39, %s40
      %p42 = scmp.eq.s32.totalorder %s41, 0
      %s44 = sadd.s32 %s43, 1
      %s45 = scalar_select %p42, %s43, %s44
      %p48 = pneg %p42
      %p49 = scmp.eq.s32.totalorder %s12, 24
      %p50 = por %p48, %p49
      %p51 = scmp.ne.s32.totalorder %s43, %s46
      %p52 = scmp.eq.s32.totalorder %s12, 0
      %p53 = por %p51, %p52
      %p54 = scmp.ne.s32.totalorder %s43, %s46
      %p55 = scmp.eq.s32.totalorder %s17, 24
      %p56 = por %p54, %p55
      %p57 = scmp.ne.s32.totalorder %s46, %s47
      %p58 = scmp.eq.s32.totalorder %s17, 0
      %p59 = por %p57, %p58
      %p60 = scmp.ne.s32.totalorder %s46, %s47
      %p61 = scmp.eq.s32.totalorder %s18, 24
      %p62 = por %p60, %p61
      %p64 = scmp.ne.s32.totalorder %s47, %s63
      %p65 = scmp.eq.s32.totalorder %s18, 0
      %p66 = por %p64, %p65
      %s67 = ssub.s32 %s21, %s30
      %s68 = ssub.s32 %s20, %s34
      %s69 = sor.u32 %s67, %s68
      %p70 = scmp.eq.s32.totalorder %s69, 0
      %s72 = sadd.s32 %s71, 1
      %s73 = scalar_select %p70, %s71, %s72
      %p76 = pneg %p70
      %p77 = scmp.eq.s32.totalorder %s12, 24
      %p78 = por %p76, %p77
      %p79 = scmp.ne.s32.totalorder %s71, %s74
      %p80 = scmp.eq.s32.totalorder %s12, 0
      %p81 = por %p79, %p80
      %p82 = scmp.ne.s32.totalorder %s71, %s74
      %p83 = scmp.eq.s32.totalorder %s17, 24
      %p84 = por %p82, %p83
      %p85 = scmp.ne.s32.totalorder %s74, %s75
      %p86 = scmp.eq.s32.totalorder %s17, 0
      %p87 = por %p85, %p86
      %p88 = scmp.ne.s32.totalorder %s74, %s75
      %p89 = scmp.eq.s32.totalorder %s18, 24
      %p90 = por %p88, %p89
      %p92 = scmp.ne.s32.totalorder %s75, %s91
      %p93 = scmp.eq.s32.totalorder %s18, 0
      %p94 = por %p92, %p93
      %s95 = ssub.s32 %s20, %s34
      %p96 = scmp.eq.s32.totalorder %s95, 0
      %s98 = sadd.s32 %s97, 1
      %s99 = scalar_select %p96, %s97, %s98
      %p102 = pneg %p96
      %p103 = scmp.eq.s32.totalorder %s12, 24
      %p104 = por %p102, %p103
      %p105 = scmp.ne.s32.totalorder %s97, %s100
      %p106 = scmp.eq.s32.totalorder %s12, 0
      %p107 = por %p105, %p106
      %p108 = scmp.ne.s32.totalorder %s97, %s100
      %p109 = scmp.eq.s32.totalorder %s17, 24
      %p110 = por %p108, %p109
      %p111 = scmp.ne.s32.totalorder %s100, %s101
      %p112 = scmp.eq.s32.totalorder %s17, 0
      %p113 = por %p111, %p112
      %p114 = scmp.ne.s32.totalorder %s100, %s101
      %p115 = scmp.eq.s32.totalorder %s18, 24
      %p116 = por %p114, %p115
      %p118 = scmp.ne.s32.totalorder %s101, %s117
      %p119 = scmp.eq.s32.totalorder %s18, 0
      %p120 = por %p118, %p119
      %s121 = ssub.s32 %s19, %s38
      %s122 = ssub.s32 %s20, %s34
      %s123 = sor.u32 %s121, %s122
      %p124 = scmp.eq.s32.totalorder %s123, 0
      %s126 = sadd.s32 %s125, 1
      %s127 = scalar_select %p124, %s125, %s126
      %p130 = pneg %p124
      %p131 = scmp.eq.s32.totalorder %s12, 24
      %p132 = por %p130, %p131
      %p133 = scmp.ne.s32.totalorder %s125, %s128
      %p134 = scmp.eq.s32.totalorder %s12, 0
      %p135 = por %p133, %p134
      %p136 = scmp.ne.s32.totalorder %s125, %s128
      %p137 = scmp.eq.s32.totalorder %s17, 24
      %p138 = por %p136, %p137
      %p139 = scmp.ne.s32.totalorder %s128, %s129
      %p140 = scmp.eq.s32.totalorder %s17, 0
      %p141 = por %p139, %p140
      %p142 = scmp.ne.s32.totalorder %s128, %s129
      %p143 = scmp.eq.s32.totalorder %s18, 24
      %p144 = por %p142, %p143
      %p146 = scmp.ne.s32.totalorder %s129, %s145
      %p147 = scmp.eq.s32.totalorder %s18, 0
      %p148 = por %p146, %p147
      %p149 = scmp.le.s32.totalorder 1, %s12
      %p150 = scmp.lt.s32.totalorder %s12, 26
      %p151 = pnand %p149, %p150
      %p152 = pneg %p151
      // Predicated region
      $region9: #{encoder_forward.3} parent=5 // pred_check
        _
      $region10: #{encoder_forward.3} parent=5 // pred_check_branch
        %154 = sbr.rel (%p151) target = $region12
      $region11: #{encoder_forward.3} parent=5 // pred_region
        %s155 = ssub.s32 %s12, 1
      $region12: #{encoder_forward.3} parent=5 // pred_fallthru
        _
      %p156 = scmp.lt.s32.totalorder %s12, 25
      // Predicated region
      $region13: #{encoder_forward.3} parent=5 // pred_check
        %p157 = pneg %p156
      $region14: #{encoder_forward.3} parent=5 // pred_check_branch
        %159 = sbr.rel (%p157) target = $region16
      $region15: #{encoder_forward.3} parent=5 // pred_region
        // Predicated region
        $region17: #{encoder_forward.3} parent=15 // pred_check
          %p160 = pneg %p53
        $region18: #{encoder_forward.3} parent=15 // pred_check_branch
          %162 = sbr.rel (%p160) target = $region20
        $region19: #{encoder_forward.3} parent=15 // pred_region
          %s163 = sand.u32 %s43, 1
          %s164 = sand.u32 %s43, 1
          %s165 = smul.addr %s164, 1920
          %s166 = scalar_lea.vmem [#allocation3], %s165
          %s167 = smul.u32 16, %s19
          %s168 = smul.u32 15, %s21
          %s169 = smul.addr %s167, 75
          %s170 = sadd.s32 %s168, %s169
          %s171 = smul.addr %s170, 8
          %s172 = scalar_lea.vmem %s0, %s171
          // Predicated region
          $region21: #{encoder_forward.3} parent=19 // pred_check
            _
          $region22: #{encoder_forward.3} parent=19 // pred_check_branch
            %174 = sbr.rel (0) target = $region24
          $region23: #{encoder_forward.3} parent=19 // pred_region
            // Predicated region
            $region25: #{encoder_forward.3} parent=23 // pred_check
              _
            $region26: #{encoder_forward.3} parent=23 // pred_check_branch
              %176 = sbr.rel (0) target = $region28
            $region27: #{encoder_forward.3} parent=23 // pred_region
              loop: start=0, step=1, limit=1
              $region29: #{encoder_forward.3} parent=27 // loop_pre_header
                _
              $region30: #{encoder_forward.3} parent=27 // loop_header
                %s178 = sphi 0, %s182
                %p179 = scmp.ge.s32.totalorder %s178, 1
                %s183 = sphi %s172, %s172
                %s184 = sphi %s166, %s166
              $region31: #{encoder_forward.3} parent=27 // loop_header_branch
                %181 = sbr.rel (%p179) target = $region35
              $region32: #{encoder_forward.3} parent=27 // loop_body
                %v185 = vld [vmem:[%s183] sm:$0xff]
                %186 = vst [vmem:[%s184] sm:$0xff] %v185
                %v187 = vld [vmem:[%s183 + $0x8] sm:$0xff]
                %188 = vst [vmem:[%s184 + $0x8] sm:$0xff] %v187
                %v189 = vld [vmem:[%s183 + $0x10] sm:$0xff]
                %190 = vst [vmem:[%s184 + $0x10] sm:$0xff] %v189
                %v191 = vld [vmem:[%s183 + $0x18] sm:$0xff]
                %192 = vst [vmem:[%s184 + $0x18] sm:$0xff] %v191
                %v193 = vld [vmem:[%s183 + $0x20] sm:$0xff]
                %194 = vst [vmem:[%s184 + $0x20] sm:$0xff] %v193
                %v195 = vld [vmem:[%s183 + $0x28] sm:$0xff]
                %196 = vst [vmem:[%s184 + $0x28] sm:$0xff] %v195
                %v197 = vld [vmem:[%s183 + $0x30] sm:$0xff]
                %198 = vst [vmem:[%s184 + $0x30] sm:$0xff] %v197
                %v199 = vld [vmem:[%s183 + $0x38] sm:$0xff]
                %200 = vst [vmem:[%s184 + $0x38] sm:$0xff] %v199
                %v201 = vld [vmem:[%s183 + $0x40] sm:$0xff]
                %202 = vst [vmem:[%s184 + $0x40] sm:$0xff] %v201
                %v203 = vld [vmem:[%s183 + $0x48] sm:$0xff]
                %204 = vst [vmem:[%s184 + $0x48] sm:$0xff] %v203
                %v205 = vld [vmem:[%s183 + $0x50] sm:$0xff]
                %206 = vst [vmem:[%s184 + $0x50] sm:$0xff] %v205
                %v207 = vld [vmem:[%s183 + $0x58] sm:$0xff]
                %208 = vst [vmem:[%s184 + $0x58] sm:$0xff] %v207
                %v209 = vld [vmem:[%s183 + $0x60] sm:$0xff]
                %210 = vst [vmem:[%s184 + $0x60] sm:$0xff] %v209
                %v211 = vld [vmem:[%s183 + $0x68] sm:$0xff]
                %212 = vst [vmem:[%s184 + $0x68] sm:$0xff] %v211
                %v213 = vld [vmem:[%s183 + $0x70] sm:$0xff]
                %214 = vst [vmem:[%s184 + $0x70] sm:$0xff] %v213
                %v215 = vld [vmem:[%s183 + $0x258] sm:$0xff]
                %216 = vst [vmem:[%s184 + $0x78] sm:$0xff] %v215
                %v217 = vld [vmem:[%s183 + $0x260] sm:$0xff]
                %218 = vst [vmem:[%s184 + $0x80] sm:$0xff] %v217
                %v219 = vld [vmem:[%s183 + $0x268] sm:$0xff]
                %220 = vst [vmem:[%s184 + $0x88] sm:$0xff] %v219
                %v221 = vld [vmem:[%s183 + $0x270] sm:$0xff]
                %222 = vst [vmem:[%s184 + $0x90] sm:$0xff] %v221
                %v223 = vld [vmem:[%s183 + $0x278] sm:$0xff]
                %224 = vst [vmem:[%s184 + $0x98] sm:$0xff] %v223
                %v225 = vld [vmem:[%s183 + $0x280] sm:$0xff]
                %226 = vst [vmem:[%s184 + $0xa0] sm:$0xff] %v225
                %v227 = vld [vmem:[%s183 + $0x288] sm:$0xff]
                %228 = vst [vmem:[%s184 + $0xa8] sm:$0xff] %v227
                %v229 = vld [vmem:[%s183 + $0x290] sm:$0xff]
                %230 = vst [vmem:[%s184 + $0xb0] sm:$0xff] %v229
                %v231 = vld [vmem:[%s183 + $0x298] sm:$0xff]
                %232 = vst [vmem:[%s184 + $0xb8] sm:$0xff] %v231
                %v233 = vld [vmem:[%s183 + $0x2a0] sm:$0xff]
                %234 = vst [vmem:[%s184 + $0xc0] sm:$0xff] %v233
                %v235 = vld [vmem:[%s183 + $0x2a8] sm:$0xff]
                %236 = vst [vmem:[%s184 + $0xc8] sm:$0xff] %v235
                %v237 = vld [vmem:[%s183 + $0x2b0] sm:$0xff]
                %238 = vst [vmem:[%s184 + $0xd0] sm:$0xff] %v237
                %v239 = vld [vmem:[%s183 + $0x2b8] sm:$0xff]
                %240 = vst [vmem:[%s184 + $0xd8] sm:$0xff] %v239
                %v241 = vld [vmem:[%s183 + $0x2c0] sm:$0xff]
                %242 = vst [vmem:[%s184 + $0xe0] sm:$0xff] %v241
                %v243 = vld [vmem:[%s183 + $0x2c8] sm:$0xff]
                %244 = vst [vmem:[%s184 + $0xe8] sm:$0xff] %v243
                %v245 = vld [vmem:[%s183 + $0x4b0] sm:$0xff]
                %246 = vst [vmem:[%s184 + $0xf0] sm:$0xff] %v245
                %v247 = vld [vmem:[%s183 + $0x4b8] sm:$0xff]
                %248 = vst [vmem:[%s184 + $0xf8] sm:$0xff] %v247
                %v249 = vld [vmem:[%s183 + $0x4c0] sm:$0xff]
                %250 = vst [vmem:[%s184 + $0x100] sm:$0xff] %v249
                %v251 = vld [vmem:[%s183 + $0x4c8] sm:$0xff]
                %252 = vst [vmem:[%s184 + $0x108] sm:$0xff] %v251
                %v253 = vld [vmem:[%s183 + $0x4d0] sm:$0xff]
                %254 = vst [vmem:[%s184 + $0x110] sm:$0xff] %v253
                %v255 = vld [vmem:[%s183 + $0x4d8] sm:$0xff]
                %256 = vst [vmem:[%s184 + $0x118] sm:$0xff] %v255
                %v257 = vld [vmem:[%s183 + $0x4e0] sm:$0xff]
                %258 = vst [vmem:[%s184 + $0x120] sm:$0xff] %v257
                %v259 = vld [vmem:[%s183 + $0x4e8] sm:$0xff]
                %260 = vst [vmem:[%s184 + $0x128] sm:$0xff] %v259
                %v261 = vld [vmem:[%s183 + $0x4f0] sm:$0xff]
                %262 = vst [vmem:[%s184 + $0x130] sm:$0xff] %v261
                %v263 = vld [vmem:[%s183 + $0x4f8] sm:$0xff]
                %264 = vst [vmem:[%s184 + $0x138] sm:$0xff] %v263
                %v265 = vld [vmem:[%s183 + $0x500] sm:$0xff]
                %266 = vst [vmem:[%s184 + $0x140] sm:$0xff] %v265
                %v267 = vld [vmem:[%s183 + $0x508] sm:$0xff]
                %268 = vst [vmem:[%s184 + $0x148] sm:$0xff] %v267
                %v269 = vld [vmem:[%s183 + $0x510] sm:$0xff]
                %270 = vst [vmem:[%s184 + $0x150] sm:$0xff] %v269
                %v271 = vld [vmem:[%s183 + $0x518] sm:$0xff]
                %272 = vst [vmem:[%s184 + $0x158] sm:$0xff] %v271
                %v273 = vld [vmem:[%s183 + $0x520] sm:$0xff]
                %274 = vst [vmem:[%s184 + $0x160] sm:$0xff] %v273
                %v275 = vld [vmem:[%s183 + $0x708] sm:$0xff]
                %276 = vst [vmem:[%s184 + $0x168] sm:$0xff] %v275
                %v277 = vld [vmem:[%s183 + $0x710] sm:$0xff]
                %278 = vst [vmem:[%s184 + $0x170] sm:$0xff] %v277
                %v279 = vld [vmem:[%s183 + $0x718] sm:$0xff]
                %280 = vst [vmem:[%s184 + $0x178] sm:$0xff] %v279
                %v281 = vld [vmem:[%s183 + $0x720] sm:$0xff]
                %282 = vst [vmem:[%s184 + $0x180] sm:$0xff] %v281
                %v283 = vld [vmem:[%s183 + $0x728] sm:$0xff]
                %284 = vst [vmem:[%s184 + $0x188] sm:$0xff] %v283
                %v285 = vld [vmem:[%s183 + $0x730] sm:$0xff]
                %286 = vst [vmem:[%s184 + $0x190] sm:$0xff] %v285
                %v287 = vld [vmem:[%s183 + $0x738] sm:$0xff]
                %288 = vst [vmem:[%s184 + $0x198] sm:$0xff] %v287
                %v289 = vld [vmem:[%s183 + $0x740] sm:$0xff]
                %290 = vst [vmem:[%s184 + $0x1a0] sm:$0xff] %v289
                %v291 = vld [vmem:[%s183 + $0x748] sm:$0xff]
                %292 = vst [vmem:[%s184 + $0x1a8] sm:$0xff] %v291
                %v293 = vld [vmem:[%s183 + $0x750] sm:$0xff]
                %294 = vst [vmem:[%s184 + $0x1b0] sm:$0xff] %v293
                %v295 = vld [vmem:[%s183 + $0x758] sm:$0xff]
                %296 = vst [vmem:[%s184 + $0x1b8] sm:$0xff] %v295
                %v297 = vld [vmem:[%s183 + $0x760] sm:$0xff]
                %298 = vst [vmem:[%s184 + $0x1c0] sm:$0xff] %v297
                %v299 = vld [vmem:[%s183 + $0x768] sm:$0xff]
                %300 = vst [vmem:[%s184 + $0x1c8] sm:$0xff] %v299
                %v301 = vld [vmem:[%s183 + $0x770] sm:$0xff]
                %302 = vst [vmem:[%s184 + $0x1d0] sm:$0xff] %v301
                %v303 = vld [vmem:[%s183 + $0x778] sm:$0xff]
                %304 = vst [vmem:[%s184 + $0x1d8] sm:$0xff] %v303
                %v305 = vld [vmem:[%s183 + $0x960] sm:$0xff]
                %306 = vst [vmem:[%s184 + $0x1e0] sm:$0xff] %v305
                %v307 = vld [vmem:[%s183 + $0x968] sm:$0xff]
                %308 = vst [vmem:[%s184 + $0x1e8] sm:$0xff] %v307
                %v309 = vld [vmem:[%s183 + $0x970] sm:$0xff]
                %310 = vst [vmem:[%s184 + $0x1f0] sm:$0xff] %v309
                %v311 = vld [vmem:[%s183 + $0x978] sm:$0xff]
                %312 = vst [vmem:[%s184 + $0x1f8] sm:$0xff] %v311
                %v313 = vld [vmem:[%s183 + $0x980] sm:$0xff]
                %314 = vst [vmem:[%s184 + $0x200] sm:$0xff] %v313
                %v315 = vld [vmem:[%s183 + $0x988] sm:$0xff]
                %316 = vst [vmem:[%s184 + $0x208] sm:$0xff] %v315
                %v317 = vld [vmem:[%s183 + $0x990] sm:$0xff]
                %318 = vst [vmem:[%s184 + $0x210] sm:$0xff] %v317
                %v319 = vld [vmem:[%s183 + $0x998] sm:$0xff]
                %320 = vst [vmem:[%s184 + $0x218] sm:$0xff] %v319
                %v321 = vld [vmem:[%s183 + $0x9a0] sm:$0xff]
                %322 = vst [vmem:[%s184 + $0x220] sm:$0xff] %v321
                %v323 = vld [vmem:[%s183 + $0x9a8] sm:$0xff]
                %324 = vst [vmem:[%s184 + $0x228] sm:$0xff] %v323
                %v325 = vld [vmem:[%s183 + $0x9b0] sm:$0xff]
                %326 = vst [vmem:[%s184 + $0x230] sm:$0xff] %v325
                %v327 = vld [vmem:[%s183 + $0x9b8] sm:$0xff]
                %328 = vst [vmem:[%s184 + $0x238] sm:$0xff] %v327
                %v329 = vld [vmem:[%s183 + $0x9c0] sm:$0xff]
                %330 = vst [vmem:[%s184 + $0x240] sm:$0xff] %v329
                %v331 = vld [vmem:[%s183 + $0x9c8] sm:$0xff]
                %332 = vst [vmem:[%s184 + $0x248] sm:$0xff] %v331
                %v333 = vld [vmem:[%s183 + $0x9d0] sm:$0xff]
                %334 = vst [vmem:[%s184 + $0x250] sm:$0xff] %v333
                %v335 = vld [vmem:[%s183 + $0xbb8] sm:$0xff]
                %336 = vst [vmem:[%s184 + $0x258] sm:$0xff] %v335
                %v337 = vld [vmem:[%s183 + $0xbc0] sm:$0xff]
                %338 = vst [vmem:[%s184 + $0x260] sm:$0xff] %v337
                %v339 = vld [vmem:[%s183 + $0xbc8] sm:$0xff]
                %340 = vst [vmem:[%s184 + $0x268] sm:$0xff] %v339
                %v341 = vld [vmem:[%s183 + $0xbd0] sm:$0xff]
                %342 = vst [vmem:[%s184 + $0x270] sm:$0xff] %v341
                %v343 = vld [vmem:[%s183 + $0xbd8] sm:$0xff]
                %344 = vst [vmem:[%s184 + $0x278] sm:$0xff] %v343
                %v345 = vld [vmem:[%s183 + $0xbe0] sm:$0xff]
                %346 = vst [vmem:[%s184 + $0x280] sm:$0xff] %v345
                %v347 = vld [vmem:[%s183 + $0xbe8] sm:$0xff]
                %348 = vst [vmem:[%s184 + $0x288] sm:$0xff] %v347
                %v349 = vld [vmem:[%s183 + $0xbf0] sm:$0xff]
                %350 = vst [vmem:[%s184 + $0x290] sm:$0xff] %v349
                %v351 = vld [vmem:[%s183 + $0xbf8] sm:$0xff]
                %352 = vst [vmem:[%s184 + $0x298] sm:$0xff] %v351
                %v353 = vld [vmem:[%s183 + $0xc00] sm:$0xff]
                %354 = vst [vmem:[%s184 + $0x2a0] sm:$0xff] %v353
                %v355 = vld [vmem:[%s183 + $0xc08] sm:$0xff]
                %356 = vst [vmem:[%s184 + $0x2a8] sm:$0xff] %v355
                %v357 = vld [vmem:[%s183 + $0xc10] sm:$0xff]
                %358 = vst [vmem:[%s184 + $0x2b0] sm:$0xff] %v357
                %v359 = vld [vmem:[%s183 + $0xc18] sm:$0xff]
                %360 = vst [vmem:[%s184 + $0x2b8] sm:$0xff] %v359
                %v361 = vld [vmem:[%s183 + $0xc20] sm:$0xff]
                %362 = vst [vmem:[%s184 + $0x2c0] sm:$0xff] %v361
                %v363 = vld [vmem:[%s183 + $0xc28] sm:$0xff]
                %364 = vst [vmem:[%s184 + $0x2c8] sm:$0xff] %v363
                %v365 = vld [vmem:[%s183 + $0xe10] sm:$0xff]
                %366 = vst [vmem:[%s184 + $0x2d0] sm:$0xff] %v365
                %v367 = vld [vmem:[%s183 + $0xe18] sm:$0xff]
                %368 = vst [vmem:[%s184 + $0x2d8] sm:$0xff] %v367
                %v369 = vld [vmem:[%s183 + $0xe20] sm:$0xff]
                %370 = vst [vmem:[%s184 + $0x2e0] sm:$0xff] %v369
                %v371 = vld [vmem:[%s183 + $0xe28] sm:$0xff]
                %372 = vst [vmem:[%s184 + $0x2e8] sm:$0xff] %v371
                %v373 = vld [vmem:[%s183 + $0xe30] sm:$0xff]
                %374 = vst [vmem:[%s184 + $0x2f0] sm:$0xff] %v373
                %v375 = vld [vmem:[%s183 + $0xe38] sm:$0xff]
                %376 = vst [vmem:[%s184 + $0x2f8] sm:$0xff] %v375
                %v377 = vld [vmem:[%s183 + $0xe40] sm:$0xff]
                %378 = vst [vmem:[%s184 + $0x300] sm:$0xff] %v377
                %v379 = vld [vmem:[%s183 + $0xe48] sm:$0xff]
                %380 = vst [vmem:[%s184 + $0x308] sm:$0xff] %v379
                %v381 = vld [vmem:[%s183 + $0xe50] sm:$0xff]
                %382 = vst [vmem:[%s184 + $0x310] sm:$0xff] %v381
                %v383 = vld [vmem:[%s183 + $0xe58] sm:$0xff]
                %384 = vst [vmem:[%s184 + $0x318] sm:$0xff] %v383
                %v385 = vld [vmem:[%s183 + $0xe60] sm:$0xff]
                %386 = vst [vmem:[%s184 + $0x320] sm:$0xff] %v385
                %v387 = vld [vmem:[%s183 + $0xe68] sm:$0xff]
                %388 = vst [vmem:[%s184 + $0x328] sm:$0xff] %v387
                %v389 = vld [vmem:[%s183 + $0xe70] sm:$0xff]
                %390 = vst [vmem:[%s184 + $0x330] sm:$0xff] %v389
                %v391 = vld [vmem:[%s183 + $0xe78] sm:$0xff]
                %392 = vst [vmem:[%s184 + $0x338] sm:$0xff] %v391
                %v393 = vld [vmem:[%s183 + $0xe80] sm:$0xff]
                %394 = vst [vmem:[%s184 + $0x340] sm:$0xff] %v393
                %v395 = vld [vmem:[%s183 + $0x1068] sm:$0xff]
                %396 = vst [vmem:[%s184 + $0x348] sm:$0xff] %v395
                %v397 = vld [vmem:[%s183 + $0x1070] sm:$0xff]
                %398 = vst [vmem:[%s184 + $0x350] sm:$0xff] %v397
                %v399 = vld [vmem:[%s183 + $0x1078] sm:$0xff]
                %400 = vst [vmem:[%s184 + $0x358] sm:$0xff] %v399
                %v401 = vld [vmem:[%s183 + $0x1080] sm:$0xff]
                %402 = vst [vmem:[%s184 + $0x360] sm:$0xff] %v401
                %v403 = vld [vmem:[%s183 + $0x1088] sm:$0xff]
                %404 = vst [vmem:[%s184 + $0x368] sm:$0xff] %v403
                %v405 = vld [vmem:[%s183 + $0x1090] sm:$0xff]
                %406 = vst [vmem:[%s184 + $0x370] sm:$0xff] %v405
                %v407 = vld [vmem:[%s183 + $0x1098] sm:$0xff]
                %408 = vst [vmem:[%s184 + $0x378] sm:$0xff] %v407
                %v409 = vld [vmem:[%s183 + $0x10a0] sm:$0xff]
                %410 = vst [vmem:[%s184 + $0x380] sm:$0xff] %v409
                %v411 = vld [vmem:[%s183 + $0x10a8] sm:$0xff]
                %412 = vst [vmem:[%s184 + $0x388] sm:$0xff] %v411
                %v413 = vld [vmem:[%s183 + $0x10b0] sm:$0xff]
                %414 = vst [vmem:[%s184 + $0x390] sm:$0xff] %v413
                %v415 = vld [vmem:[%s183 + $0x10b8] sm:$0xff]
                %416 = vst [vmem:[%s184 + $0x398] sm:$0xff] %v415
                %v417 = vld [vmem:[%s183 + $0x10c0] sm:$0xff]
                %418 = vst [vmem:[%s184 + $0x3a0] sm:$0xff] %v417
                %v419 = vld [vmem:[%s183 + $0x10c8] sm:$0xff]
                %420 = vst [vmem:[%s184 + $0x3a8] sm:$0xff] %v419
                %v421 = vld [vmem:[%s183 + $0x10d0] sm:$0xff]
                %422 = vst [vmem:[%s184 + $0x3b0] sm:$0xff] %v421
                %v423 = vld [vmem:[%s183 + $0x10d8] sm:$0xff]
                %424 = vst [vmem:[%s184 + $0x3b8] sm:$0xff] %v423
                %v425 = vld [vmem:[%s183 + $0x12c0] sm:$0xff]
                %426 = vst [vmem:[%s184 + $0x3c0] sm:$0xff] %v425
                %v427 = vld [vmem:[%s183 + $0x12c8] sm:$0xff]
                %428 = vst [vmem:[%s184 + $0x3c8] sm:$0xff] %v427
                %v429 = vld [vmem:[%s183 + $0x12d0] sm:$0xff]
                %430 = vst [vmem:[%s184 + $0x3d0] sm:$0xff] %v429
                %v431 = vld [vmem:[%s183 + $0x12d8] sm:$0xff]
                %432 = vst [vmem:[%s184 + $0x3d8] sm:$0xff] %v431
                %v433 = vld [vmem:[%s183 + $0x12e0] sm:$0xff]
                %434 = vst [vmem:[%s184 + $0x3e0] sm:$0xff] %v433
                %v435 = vld [vmem:[%s183 + $0x12e8] sm:$0xff]
                %436 = vst [vmem:[%s184 + $0x3e8] sm:$0xff] %v435
                %v437 = vld [vmem:[%s183 + $0x12f0] sm:$0xff]
                %438 = vst [vmem:[%s184 + $0x3f0] sm:$0xff] %v437
                %v439 = vld [vmem:[%s183 + $0x12f8] sm:$0xff]
                %440 = vst [vmem:[%s184 + $0x3f8] sm:$0xff] %v439
                %v441 = vld [vmem:[%s183 + $0x1300] sm:$0xff]
                %442 = vst [vmem:[%s184 + $0x400] sm:$0xff] %v441
                %v443 = vld [vmem:[%s183 + $0x1308] sm:$0xff]
                %444 = vst [vmem:[%s184 + $0x408] sm:$0xff] %v443
                %v445 = vld [vmem:[%s183 + $0x1310] sm:$0xff]
                %446 = vst [vmem:[%s184 + $0x410] sm:$0xff] %v445
                %v447 = vld [vmem:[%s183 + $0x1318] sm:$0xff]
                %448 = vst [vmem:[%s184 + $0x418] sm:$0xff] %v447
                %v449 = vld [vmem:[%s183 + $0x1320] sm:$0xff]
                %450 = vst [vmem:[%s184 + $0x420] sm:$0xff] %v449
                %v451 = vld [vmem:[%s183 + $0x1328] sm:$0xff]
                %452 = vst [vmem:[%s184 + $0x428] sm:$0xff] %v451
                %v453 = vld [vmem:[%s183 + $0x1330] sm:$0xff]
                %454 = vst [vmem:[%s184 + $0x430] sm:$0xff] %v453
                %v455 = vld [vmem:[%s183 + $0x1518] sm:$0xff]
                %456 = vst [vmem:[%s184 + $0x438] sm:$0xff] %v455
                %v457 = vld [vmem:[%s183 + $0x1520] sm:$0xff]
                %458 = vst [vmem:[%s184 + $0x440] sm:$0xff] %v457
                %v459 = vld [vmem:[%s183 + $0x1528] sm:$0xff]
                %460 = vst [vmem:[%s184 + $0x448] sm:$0xff] %v459
                %v461 = vld [vmem:[%s183 + $0x1530] sm:$0xff]
                %462 = vst [vmem:[%s184 + $0x450] sm:$0xff] %v461
                %v463 = vld [vmem:[%s183 + $0x1538] sm:$0xff]
                %464 = vst [vmem:[%s184 + $0x458] sm:$0xff] %v463
                %v465 = vld [vmem:[%s183 + $0x1540] sm:$0xff]
                %466 = vst [vmem:[%s184 + $0x460] sm:$0xff] %v465
                %v467 = vld [vmem:[%s183 + $0x1548] sm:$0xff]
                %468 = vst [vmem:[%s184 + $0x468] sm:$0xff] %v467
                %v469 = vld [vmem:[%s183 + $0x1550] sm:$0xff]
                %470 = vst [vmem:[%s184 + $0x470] sm:$0xff] %v469
                %v471 = vld [vmem:[%s183 + $0x1558] sm:$0xff]
                %472 = vst [vmem:[%s184 + $0x478] sm:$0xff] %v471
                %v473 = vld [vmem:[%s183 + $0x1560] sm:$0xff]
                %474 = vst [vmem:[%s184 + $0x480] sm:$0xff] %v473
                %v475 = vld [vmem:[%s183 + $0x1568] sm:$0xff]
                %476 = vst [vmem:[%s184 + $0x488] sm:$0xff] %v475
                %v477 = vld [vmem:[%s183 + $0x1570] sm:$0xff]
                %478 = vst [vmem:[%s184 + $0x490] sm:$0xff] %v477
                %v479 = vld [vmem:[%s183 + $0x1578] sm:$0xff]
                %480 = vst [vmem:[%s184 + $0x498] sm:$0xff] %v479
                %v481 = vld [vmem:[%s183 + $0x1580] sm:$0xff]
                %482 = vst [vmem:[%s184 + $0x4a0] sm:$0xff] %v481
                %v483 = vld [vmem:[%s183 + $0x1588] sm:$0xff]
                %484 = vst [vmem:[%s184 + $0x4a8] sm:$0xff] %v483
                %v485 = vld [vmem:[%s183 + $0x1770] sm:$0xff]
                %486 = vst [vmem:[%s184 + $0x4b0] sm:$0xff] %v485
                %v487 = vld [vmem:[%s183 + $0x1778] sm:$0xff]
                %488 = vst [vmem:[%s184 + $0x4b8] sm:$0xff] %v487
                %v489 = vld [vmem:[%s183 + $0x1780] sm:$0xff]
                %490 = vst [vmem:[%s184 + $0x4c0] sm:$0xff] %v489
                %v491 = vld [vmem:[%s183 + $0x1788] sm:$0xff]
                %492 = vst [vmem:[%s184 + $0x4c8] sm:$0xff] %v491
                %v493 = vld [vmem:[%s183 + $0x1790] sm:$0xff]
                %494 = vst [vmem:[%s184 + $0x4d0] sm:$0xff] %v493
                %v495 = vld [vmem:[%s183 + $0x1798] sm:$0xff]
                %496 = vst [vmem:[%s184 + $0x4d8] sm:$0xff] %v495
                %v497 = vld [vmem:[%s183 + $0x17a0] sm:$0xff]
                %498 = vst [vmem:[%s184 + $0x4e0] sm:$0xff] %v497
                %v499 = vld [vmem:[%s183 + $0x17a8] sm:$0xff]
                %500 = vst [vmem:[%s184 + $0x4e8] sm:$0xff] %v499
                %v501 = vld [vmem:[%s183 + $0x17b0] sm:$0xff]
                %502 = vst [vmem:[%s184 + $0x4f0] sm:$0xff] %v501
                %v503 = vld [vmem:[%s183 + $0x17b8] sm:$0xff]
                %504 = vst [vmem:[%s184 + $0x4f8] sm:$0xff] %v503
                %v505 = vld [vmem:[%s183 + $0x17c0] sm:$0xff]
                %506 = vst [vmem:[%s184 + $0x500] sm:$0xff] %v505
                %v507 = vld [vmem:[%s183 + $0x17c8] sm:$0xff]
                %508 = vst [vmem:[%s184 + $0x508] sm:$0xff] %v507
                %v509 = vld [vmem:[%s183 + $0x17d0] sm:$0xff]
                %510 = vst [vmem:[%s184 + $0x510] sm:$0xff] %v509
                %v511 = vld [vmem:[%s183 + $0x17d8] sm:$0xff]
                %512 = vst [vmem:[%s184 + $0x518] sm:$0xff] %v511
                %v513 = vld [vmem:[%s183 + $0x17e0] sm:$0xff]
                %514 = vst [vmem:[%s184 + $0x520] sm:$0xff] %v513
                %v515 = vld [vmem:[%s183 + $0x19c8] sm:$0xff]
                %516 = vst [vmem:[%s184 + $0x528] sm:$0xff] %v515
                %v517 = vld [vmem:[%s183 + $0x19d0] sm:$0xff]
                %518 = vst [vmem:[%s184 + $0x530] sm:$0xff] %v517
                %v519 = vld [vmem:[%s183 + $0x19d8] sm:$0xff]
                %520 = vst [vmem:[%s184 + $0x538] sm:$0xff] %v519
                %v521 = vld [vmem:[%s183 + $0x19e0] sm:$0xff]
                %522 = vst [vmem:[%s184 + $0x540] sm:$0xff] %v521
                %v523 = vld [vmem:[%s183 + $0x19e8] sm:$0xff]
                %524 = vst [vmem:[%s184 + $0x548] sm:$0xff] %v523
                %v525 = vld [vmem:[%s183 + $0x19f0] sm:$0xff]
                %526 = vst [vmem:[%s184 + $0x550] sm:$0xff] %v525
                %v527 = vld [vmem:[%s183 + $0x19f8] sm:$0xff]
                %528 = vst [vmem:[%s184 + $0x558] sm:$0xff] %v527
                %v529 = vld [vmem:[%s183 + $0x1a00] sm:$0xff]
                %530 = vst [vmem:[%s184 + $0x560] sm:$0xff] %v529
                %v531 = vld [vmem:[%s183 + $0x1a08] sm:$0xff]
                %532 = vst [vmem:[%s184 + $0x568] sm:$0xff] %v531
                %v533 = vld [vmem:[%s183 + $0x1a10] sm:$0xff]
                %534 = vst [vmem:[%s184 + $0x570] sm:$0xff] %v533
                %v535 = vld [vmem:[%s183 + $0x1a18] sm:$0xff]
                %536 = vst [vmem:[%s184 + $0x578] sm:$0xff] %v535
                %v537 = vld [vmem:[%s183 + $0x1a20] sm:$0xff]
                %538 = vst [vmem:[%s184 + $0x580] sm:$0xff] %v537
                %v539 = vld [vmem:[%s183 + $0x1a28] sm:$0xff]
                %540 = vst [vmem:[%s184 + $0x588] sm:$0xff] %v539
                %v541 = vld [vmem:[%s183 + $0x1a30] sm:$0xff]
                %542 = vst [vmem:[%s184 + $0x590] sm:$0xff] %v541
                %v543 = vld [vmem:[%s183 + $0x1a38] sm:$0xff]
                %544 = vst [vmem:[%s184 + $0x598] sm:$0xff] %v543
                %v545 = vld [vmem:[%s183 + $0x1c20] sm:$0xff]
                %546 = vst [vmem:[%s184 + $0x5a0] sm:$0xff] %v545
                %v547 = vld [vmem:[%s183 + $0x1c28] sm:$0xff]
                %548 = vst [vmem:[%s184 + $0x5a8] sm:$0xff] %v547
                %v549 = vld [vmem:[%s183 + $0x1c30] sm:$0xff]
                %550 = vst [vmem:[%s184 + $0x5b0] sm:$0xff] %v549
                %v551 = vld [vmem:[%s183 + $0x1c38] sm:$0xff]
                %552 = vst [vmem:[%s184 + $0x5b8] sm:$0xff] %v551
                %v553 = vld [vmem:[%s183 + $0x1c40] sm:$0xff]
                %554 = vst [vmem:[%s184 + $0x5c0] sm:$0xff] %v553
                %v555 = vld [vmem:[%s183 + $0x1c48] sm:$0xff]
                %556 = vst [vmem:[%s184 + $0x5c8] sm:$0xff] %v555
                %v557 = vld [vmem:[%s183 + $0x1c50] sm:$0xff]
                %558 = vst [vmem:[%s184 + $0x5d0] sm:$0xff] %v557
                %v559 = vld [vmem:[%s183 + $0x1c58] sm:$0xff]
                %560 = vst [vmem:[%s184 + $0x5d8] sm:$0xff] %v559
                %v561 = vld [vmem:[%s183 + $0x1c60] sm:$0xff]
                %562 = vst [vmem:[%s184 + $0x5e0] sm:$0xff] %v561
                %v563 = vld [vmem:[%s183 + $0x1c68] sm:$0xff]
                %564 = vst [vmem:[%s184 + $0x5e8] sm:$0xff] %v563
                %v565 = vld [vmem:[%s183 + $0x1c70] sm:$0xff]
                %566 = vst [vmem:[%s184 + $0x5f0] sm:$0xff] %v565
                %v567 = vld [vmem:[%s183 + $0x1c78] sm:$0xff]
                %568 = vst [vmem:[%s184 + $0x5f8] sm:$0xff] %v567
                %v569 = vld [vmem:[%s183 + $0x1c80] sm:$0xff]
                %570 = vst [vmem:[%s184 + $0x600] sm:$0xff] %v569
                %v571 = vld [vmem:[%s183 + $0x1c88] sm:$0xff]
                %572 = vst [vmem:[%s184 + $0x608] sm:$0xff] %v571
                %v573 = vld [vmem:[%s183 + $0x1c90] sm:$0xff]
                %574 = vst [vmem:[%s184 + $0x610] sm:$0xff] %v573
                %v575 = vld [vmem:[%s183 + $0x1e78] sm:$0xff]
                %576 = vst [vmem:[%s184 + $0x618] sm:$0xff] %v575
                %v577 = vld [vmem:[%s183 + $0x1e80] sm:$0xff]
                %578 = vst [vmem:[%s184 + $0x620] sm:$0xff] %v577
                %v579 = vld [vmem:[%s183 + $0x1e88] sm:$0xff]
                %580 = vst [vmem:[%s184 + $0x628] sm:$0xff] %v579
                %v581 = vld [vmem:[%s183 + $0x1e90] sm:$0xff]
                %582 = vst [vmem:[%s184 + $0x630] sm:$0xff] %v581
                %v583 = vld [vmem:[%s183 + $0x1e98] sm:$0xff]
                %584 = vst [vmem:[%s184 + $0x638] sm:$0xff] %v583
                %v585 = vld [vmem:[%s183 + $0x1ea0] sm:$0xff]
                %586 = vst [vmem:[%s184 + $0x640] sm:$0xff] %v585
                %v587 = vld [vmem:[%s183 + $0x1ea8] sm:$0xff]
                %588 = vst [vmem:[%s184 + $0x648] sm:$0xff] %v587
                %v589 = vld [vmem:[%s183 + $0x1eb0] sm:$0xff]
                %590 = vst [vmem:[%s184 + $0x650] sm:$0xff] %v589
                %v591 = vld [vmem:[%s183 + $0x1eb8] sm:$0xff]
                %592 = vst [vmem:[%s184 + $0x658] sm:$0xff] %v591
                %v593 = vld [vmem:[%s183 + $0x1ec0] sm:$0xff]
                %594 = vst [vmem:[%s184 + $0x660] sm:$0xff] %v593
                %v595 = vld [vmem:[%s183 + $0x1ec8] sm:$0xff]
                %596 = vst [vmem:[%s184 + $0x668] sm:$0xff] %v595
                %v597 = vld [vmem:[%s183 + $0x1ed0] sm:$0xff]
                %598 = vst [vmem:[%s184 + $0x670] sm:$0xff] %v597
                %v599 = vld [vmem:[%s183 + $0x1ed8] sm:$0xff]
                %600 = vst [vmem:[%s184 + $0x678] sm:$0xff] %v599
                %v601 = vld [vmem:[%s183 + $0x1ee0] sm:$0xff]
                %602 = vst [vmem:[%s184 + $0x680] sm:$0xff] %v601
                %v603 = vld [vmem:[%s183 + $0x1ee8] sm:$0xff]
                %604 = vst [vmem:[%s184 + $0x688] sm:$0xff] %v603
                %v605 = vld [vmem:[%s183 + $0x20d0] sm:$0xff]
                %606 = vst [vmem:[%s184 + $0x690] sm:$0xff] %v605
                %v607 = vld [vmem:[%s183 + $0x20d8] sm:$0xff]
                %608 = vst [vmem:[%s184 + $0x698] sm:$0xff] %v607
                %v609 = vld [vmem:[%s183 + $0x20e0] sm:$0xff]
                %610 = vst [vmem:[%s184 + $0x6a0] sm:$0xff] %v609
                %v611 = vld [vmem:[%s183 + $0x20e8] sm:$0xff]
                %612 = vst [vmem:[%s184 + $0x6a8] sm:$0xff] %v611
                %v613 = vld [vmem:[%s183 + $0x20f0] sm:$0xff]
                %614 = vst [vmem:[%s184 + $0x6b0] sm:$0xff] %v613
                %v615 = vld [vmem:[%s183 + $0x20f8] sm:$0xff]
                %616 = vst [vmem:[%s184 + $0x6b8] sm:$0xff] %v615
                %v617 = vld [vmem:[%s183 + $0x2100] sm:$0xff]
                %618 = vst [vmem:[%s184 + $0x6c0] sm:$0xff] %v617
                %v619 = vld [vmem:[%s183 + $0x2108] sm:$0xff]
                %620 = vst [vmem:[%s184 + $0x6c8] sm:$0xff] %v619
                %v621 = vld [vmem:[%s183 + $0x2110] sm:$0xff]
                %622 = vst [vmem:[%s184 + $0x6d0] sm:$0xff] %v621
                %v623 = vld [vmem:[%s183 + $0x2118] sm:$0xff]
                %624 = vst [vmem:[%s184 + $0x6d8] sm:$0xff] %v623
                %v625 = vld [vmem:[%s183 + $0x2120] sm:$0xff]
                %626 = vst [vmem:[%s184 + $0x6e0] sm:$0xff] %v625
                %v627 = vld [vmem:[%s183 + $0x2128] sm:$0xff]
                %628 = vst [vmem:[%s184 + $0x6e8] sm:$0xff] %v627
                %v629 = vld [vmem:[%s183 + $0x2130] sm:$0xff]
                %630 = vst [vmem:[%s184 + $0x6f0] sm:$0xff] %v629
                %v631 = vld [vmem:[%s183 + $0x2138] sm:$0xff]
                %632 = vst [vmem:[%s184 + $0x6f8] sm:$0xff] %v631
                %v633 = vld [vmem:[%s183 + $0x2140] sm:$0xff]
                %634 = vst [vmem:[%s184 + $0x700] sm:$0xff] %v633
                %v635 = vld [vmem:[%s183 + $0x2328] sm:$0xff]
                %636 = vst [vmem:[%s184 + $0x708] sm:$0xff] %v635
                %v637 = vld [vmem:[%s183 + $0x2330] sm:$0xff]
                %638 = vst [vmem:[%s184 + $0x710] sm:$0xff] %v637
                %v639 = vld [vmem:[%s183 + $0x2338] sm:$0xff]
                %640 = vst [vmem:[%s184 + $0x718] sm:$0xff] %v639
                %v641 = vld [vmem:[%s183 + $0x2340] sm:$0xff]
                %642 = vst [vmem:[%s184 + $0x720] sm:$0xff] %v641
                %v643 = vld [vmem:[%s183 + $0x2348] sm:$0xff]
                %644 = vst [vmem:[%s184 + $0x728] sm:$0xff] %v643
                %v645 = vld [vmem:[%s183 + $0x2350] sm:$0xff]
                %646 = vst [vmem:[%s184 + $0x730] sm:$0xff] %v645
                %v647 = vld [vmem:[%s183 + $0x2358] sm:$0xff]
                %648 = vst [vmem:[%s184 + $0x738] sm:$0xff] %v647
                %v649 = vld [vmem:[%s183 + $0x2360] sm:$0xff]
                %650 = vst [vmem:[%s184 + $0x740] sm:$0xff] %v649
                %v651 = vld [vmem:[%s183 + $0x2368] sm:$0xff]
                %652 = vst [vmem:[%s184 + $0x748] sm:$0xff] %v651
                %v653 = vld [vmem:[%s183 + $0x2370] sm:$0xff]
                %654 = vst [vmem:[%s184 + $0x750] sm:$0xff] %v653
                %v655 = vld [vmem:[%s183 + $0x2378] sm:$0xff]
                %656 = vst [vmem:[%s184 + $0x758] sm:$0xff] %v655
                %v657 = vld [vmem:[%s183 + $0x2380] sm:$0xff]
                %658 = vst [vmem:[%s184 + $0x760] sm:$0xff] %v657
                %v659 = vld [vmem:[%s183 + $0x2388] sm:$0xff]
                %660 = vst [vmem:[%s184 + $0x768] sm:$0xff] %v659
                %v661 = vld [vmem:[%s183 + $0x2390] sm:$0xff]
                %662 = vst [vmem:[%s184 + $0x770] sm:$0xff] %v661
                %v663 = vld [vmem:[%s183 + $0x2398] sm:$0xff]
                %664 = vst [vmem:[%s184 + $0x778] sm:$0xff] %v663
              $region33: #{encoder_forward.3} parent=27 // loop_footer
                %s182 = sadd.s32 1, %s178
              $region34: #{encoder_forward.3} parent=27 // loop_footer_branch
                %177 = sbr.rel target = $region30
              $region35: #{encoder_forward.3} parent=27 // loop_exit
                _
            $region28: #{encoder_forward.3} parent=23 // pred_fallthru
              _
            // Predicated region
            $region36: #{encoder_forward.3} parent=23 // pred_check
              _
            $region37: #{encoder_forward.3} parent=23 // pred_check_branch
              %666 = sbr.rel target = $region39
            $region38: #{encoder_forward.3} parent=23 // pred_region
              _
            $region39: #{encoder_forward.3} parent=23 // pred_fallthru
              _
          $region24: #{encoder_forward.3} parent=19 // pred_fallthru
            _
          %667 = vnop
        $region20: #{encoder_forward.3} parent=15 // pred_fallthru
          _
        // Predicated region
        $region40: #{encoder_forward.3} parent=15 // pred_check
          %p668 = pneg %p81
        $region41: #{encoder_forward.3} parent=15 // pred_check_branch
          %670 = sbr.rel (%p668) target = $region43
        $region42: #{encoder_forward.3} parent=15 // pred_region
          %s671 = sand.u32 %s71, 1
          %s672 = sand.u32 %s71, 1
          %s673 = smul.addr %s672, 1920
          %s674 = scalar_lea.vmem [#allocation4], %s673
          %s675 = smul.u32 240, %s21
          %s676 = smul.addr %s675, 5
          %s677 = sadd.s32 %s20, %s676
          %s678 = smul.addr %s677, 8
          %s679 = scalar_lea.vmem %s1, %s678
          // Predicated region
          $region44: #{encoder_forward.3} parent=42 // pred_check
            _
          $region45: #{encoder_forward.3} parent=42 // pred_check_branch
            %681 = sbr.rel (0) target = $region47
          $region46: #{encoder_forward.3} parent=42 // pred_region
            // Predicated region
            $region48: #{encoder_forward.3} parent=46 // pred_check
              _
            $region49: #{encoder_forward.3} parent=46 // pred_check_branch
              %683 = sbr.rel (0) target = $region51
            $region50: #{encoder_forward.3} parent=46 // pred_region
              // Predicated region
              $region63: #{encoder_forward.3} parent=50 // pred_check
                _
              $region64: #{encoder_forward.3} parent=50 // pred_check_branch
                %1177 = sbr.rel (0) target = $region66
              $region65: #{encoder_forward.3} parent=50 // pred_region
                loop: start=0, step=1, limit=1
                $region67: #{encoder_forward.3} parent=65 // loop_pre_header
                  _
                $region68: #{encoder_forward.3} parent=65 // loop_header
                  %s1179 = sphi 0, %s1183
                  %p1180 = scmp.ge.s32.totalorder %s1179, 1
                  %s1184 = sphi %s679, %s679
                  %s1185 = sphi %s674, %s674
                $region69: #{encoder_forward.3} parent=65 // loop_header_branch
                  %1182 = sbr.rel (%p1180) target = $region73
                $region70: #{encoder_forward.3} parent=65 // loop_body
                  %v1186 = vld [vmem:[%s1184] sm:$0xff]
                  %1187 = vst [vmem:[%s1185] sm:$0xff] %v1186
                  %v1188 = vld [vmem:[%s1184 + $0x28] sm:$0xff]
                  %1189 = vst [vmem:[%s1185 + $0x8] sm:$0xff] %v1188
                  %v1190 = vld [vmem:[%s1184 + $0x50] sm:$0xff]
                  %1191 = vst [vmem:[%s1185 + $0x10] sm:$0xff] %v1190
                  %v1192 = vld [vmem:[%s1184 + $0x78] sm:$0xff]
                  %1193 = vst [vmem:[%s1185 + $0x18] sm:$0xff] %v1192
                  %v1194 = vld [vmem:[%s1184 + $0xa0] sm:$0xff]
                  %1195 = vst [vmem:[%s1185 + $0x20] sm:$0xff] %v1194
                  %v1196 = vld [vmem:[%s1184 + $0xc8] sm:$0xff]
                  %1197 = vst [vmem:[%s1185 + $0x28] sm:$0xff] %v1196
                  %v1198 = vld [vmem:[%s1184 + $0xf0] sm:$0xff]
                  %1199 = vst [vmem:[%s1185 + $0x30] sm:$0xff] %v1198
                  %v1200 = vld [vmem:[%s1184 + $0x118] sm:$0xff]
                  %1201 = vst [vmem:[%s1185 + $0x38] sm:$0xff] %v1200
                  %v1202 = vld [vmem:[%s1184 + $0x140] sm:$0xff]
                  %1203 = vst [vmem:[%s1185 + $0x40] sm:$0xff] %v1202
                  %v1204 = vld [vmem:[%s1184 + $0x168] sm:$0xff]
                  %1205 = vst [vmem:[%s1185 + $0x48] sm:$0xff] %v1204
                  %v1206 = vld [vmem:[%s1184 + $0x190] sm:$0xff]
                  %1207 = vst [vmem:[%s1185 + $0x50] sm:$0xff] %v1206
                  %v1208 = vld [vmem:[%s1184 + $0x1b8] sm:$0xff]
                  %1209 = vst [vmem:[%s1185 + $0x58] sm:$0xff] %v1208
                  %v1210 = vld [vmem:[%s1184 + $0x1e0] sm:$0xff]
                  %1211 = vst [vmem:[%s1185 + $0x60] sm:$0xff] %v1210
                  %v1212 = vld [vmem:[%s1184 + $0x208] sm:$0xff]
                  %1213 = vst [vmem:[%s1185 + $0x68] sm:$0xff] %v1212
                  %v1214 = vld [vmem:[%s1184 + $0x230] sm:$0xff]
                  %1215 = vst [vmem:[%s1185 + $0x70] sm:$0xff] %v1214
                  %v1216 = vld [vmem:[%s1184 + $0x258] sm:$0xff]
                  %1217 = vst [vmem:[%s1185 + $0x78] sm:$0xff] %v1216
                  %v1218 = vld [vmem:[%s1184 + $0x280] sm:$0xff]
                  %1219 = vst [vmem:[%s1185 + $0x80] sm:$0xff] %v1218
                  %v1220 = vld [vmem:[%s1184 + $0x2a8] sm:$0xff]
                  %1221 = vst [vmem:[%s1185 + $0x88] sm:$0xff] %v1220
                  %v1222 = vld [vmem:[%s1184 + $0x2d0] sm:$0xff]
                  %1223 = vst [vmem:[%s1185 + $0x90] sm:$0xff] %v1222
                  %v1224 = vld [vmem:[%s1184 + $0x2f8] sm:$0xff]
                  %1225 = vst [vmem:[%s1185 + $0x98] sm:$0xff] %v1224
                  %v1226 = vld [vmem:[%s1184 + $0x320] sm:$0xff]
                  %1227 = vst [vmem:[%s1185 + $0xa0] sm:$0xff] %v1226
                  %v1228 = vld [vmem:[%s1184 + $0x348] sm:$0xff]
                  %1229 = vst [vmem:[%s1185 + $0xa8] sm:$0xff] %v1228
                  %v1230 = vld [vmem:[%s1184 + $0x370] sm:$0xff]
                  %1231 = vst [vmem:[%s1185 + $0xb0] sm:$0xff] %v1230
                  %v1232 = vld [vmem:[%s1184 + $0x398] sm:$0xff]
                  %1233 = vst [vmem:[%s1185 + $0xb8] sm:$0xff] %v1232
                  %v1234 = vld [vmem:[%s1184 + $0x3c0] sm:$0xff]
                  %1235 = vst [vmem:[%s1185 + $0xc0] sm:$0xff] %v1234
                  %v1236 = vld [vmem:[%s1184 + $0x3e8] sm:$0xff]
                  %1237 = vst [vmem:[%s1185 + $0xc8] sm:$0xff] %v1236
                  %v1238 = vld [vmem:[%s1184 + $0x410] sm:$0xff]
                  %1239 = vst [vmem:[%s1185 + $0xd0] sm:$0xff] %v1238
                  %v1240 = vld [vmem:[%s1184 + $0x438] sm:$0xff]
                  %1241 = vst [vmem:[%s1185 + $0xd8] sm:$0xff] %v1240
                  %v1242 = vld [vmem:[%s1184 + $0x460] sm:$0xff]
                  %1243 = vst [vmem:[%s1185 + $0xe0] sm:$0xff] %v1242
                  %v1244 = vld [vmem:[%s1184 + $0x488] sm:$0xff]
                  %1245 = vst [vmem:[%s1185 + $0xe8] sm:$0xff] %v1244
                  %v1246 = vld [vmem:[%s1184 + $0x4b0] sm:$0xff]
                  %1247 = vst [vmem:[%s1185 + $0xf0] sm:$0xff] %v1246
                  %v1248 = vld [vmem:[%s1184 + $0x4d8] sm:$0xff]
                  %1249 = vst [vmem:[%s1185 + $0xf8] sm:$0xff] %v1248
                  %v1250 = vld [vmem:[%s1184 + $0x500] sm:$0xff]
                  %1251 = vst [vmem:[%s1185 + $0x100] sm:$0xff] %v1250
                  %v1252 = vld [vmem:[%s1184 + $0x528] sm:$0xff]
                  %1253 = vst [vmem:[%s1185 + $0x108] sm:$0xff] %v1252
                  %v1254 = vld [vmem:[%s1184 + $0x550] sm:$0xff]
                  %1255 = vst [vmem:[%s1185 + $0x110] sm:$0xff] %v1254
                  %v1256 = vld [vmem:[%s1184 + $0x578] sm:$0xff]
                  %1257 = vst [vmem:[%s1185 + $0x118] sm:$0xff] %v1256
                  %v1258 = vld [vmem:[%s1184 + $0x5a0] sm:$0xff]
                  %1259 = vst [vmem:[%s1185 + $0x120] sm:$0xff] %v1258
                  %v1260 = vld [vmem:[%s1184 + $0x5c8] sm:$0xff]
                  %1261 = vst [vmem:[%s1185 + $0x128] sm:$0xff] %v1260
                  %v1262 = vld [vmem:[%s1184 + $0x5f0] sm:$0xff]
                  %1263 = vst [vmem:[%s1185 + $0x130] sm:$0xff] %v1262
                  %v1264 = vld [vmem:[%s1184 + $0x618] sm:$0xff]
                  %1265 = vst [vmem:[%s1185 + $0x138] sm:$0xff] %v1264
                  %v1266 = vld [vmem:[%s1184 + $0x640] sm:$0xff]
                  %1267 = vst [vmem:[%s1185 + $0x140] sm:$0xff] %v1266
                  %v1268 = vld [vmem:[%s1184 + $0x668] sm:$0xff]
                  %1269 = vst [vmem:[%s1185 + $0x148] sm:$0xff] %v1268
                  %v1270 = vld [vmem:[%s1184 + $0x690] sm:$0xff]
                  %1271 = vst [vmem:[%s1185 + $0x150] sm:$0xff] %v1270
                  %v1272 = vld [vmem:[%s1184 + $0x6b8] sm:$0xff]
                  %1273 = vst [vmem:[%s1185 + $0x158] sm:$0xff] %v1272
                  %v1274 = vld [vmem:[%s1184 + $0x6e0] sm:$0xff]
                  %1275 = vst [vmem:[%s1185 + $0x160] sm:$0xff] %v1274
                  %v1276 = vld [vmem:[%s1184 + $0x708] sm:$0xff]
                  %1277 = vst [vmem:[%s1185 + $0x168] sm:$0xff] %v1276
                  %v1278 = vld [vmem:[%s1184 + $0x730] sm:$0xff]
                  %1279 = vst [vmem:[%s1185 + $0x170] sm:$0xff] %v1278
                  %v1280 = vld [vmem:[%s1184 + $0x758] sm:$0xff]
                  %1281 = vst [vmem:[%s1185 + $0x178] sm:$0xff] %v1280
                  %v1282 = vld [vmem:[%s1184 + $0x780] sm:$0xff]
                  %1283 = vst [vmem:[%s1185 + $0x180] sm:$0xff] %v1282
                  %v1284 = vld [vmem:[%s1184 + $0x7a8] sm:$0xff]
                  %1285 = vst [vmem:[%s1185 + $0x188] sm:$0xff] %v1284
                  %v1286 = vld [vmem:[%s1184 + $0x7d0] sm:$0xff]
                  %1287 = vst [vmem:[%s1185 + $0x190] sm:$0xff] %v1286
                  %v1288 = vld [vmem:[%s1184 + $0x7f8] sm:$0xff]
                  %1289 = vst [vmem:[%s1185 + $0x198] sm:$0xff] %v1288
                  %v1290 = vld [vmem:[%s1184 + $0x820] sm:$0xff]
                  %1291 = vst [vmem:[%s1185 + $0x1a0] sm:$0xff] %v1290
                  %v1292 = vld [vmem:[%s1184 + $0x848] sm:$0xff]
                  %1293 = vst [vmem:[%s1185 + $0x1a8] sm:$0xff] %v1292
                  %v1294 = vld [vmem:[%s1184 + $0x870] sm:$0xff]
                  %1295 = vst [vmem:[%s1185 + $0x1b0] sm:$0xff] %v1294
                  %v1296 = vld [vmem:[%s1184 + $0x898] sm:$0xff]
                  %1297 = vst [vmem:[%s1185 + $0x1b8] sm:$0xff] %v1296
                  %v1298 = vld [vmem:[%s1184 + $0x8c0] sm:$0xff]
                  %1299 = vst [vmem:[%s1185 + $0x1c0] sm:$0xff] %v1298
                  %v1300 = vld [vmem:[%s1184 + $0x8e8] sm:$0xff]
                  %1301 = vst [vmem:[%s1185 + $0x1c8] sm:$0xff] %v1300
                  %v1302 = vld [vmem:[%s1184 + $0x910] sm:$0xff]
                  %1303 = vst [vmem:[%s1185 + $0x1d0] sm:$0xff] %v1302
                  %v1304 = vld [vmem:[%s1184 + $0x938] sm:$0xff]
                  %1305 = vst [vmem:[%s1185 + $0x1d8] sm:$0xff] %v1304
                  %v1306 = vld [vmem:[%s1184 + $0x960] sm:$0xff]
                  %1307 = vst [vmem:[%s1185 + $0x1e0] sm:$0xff] %v1306
                  %v1308 = vld [vmem:[%s1184 + $0x988] sm:$0xff]
                  %1309 = vst [vmem:[%s1185 + $0x1e8] sm:$0xff] %v1308
                  %v1310 = vld [vmem:[%s1184 + $0x9b0] sm:$0xff]
                  %1311 = vst [vmem:[%s1185 + $0x1f0] sm:$0xff] %v1310
                  %v1312 = vld [vmem:[%s1184 + $0x9d8] sm:$0xff]
                  %1313 = vst [vmem:[%s1185 + $0x1f8] sm:$0xff] %v1312
                  %v1314 = vld [vmem:[%s1184 + $0xa00] sm:$0xff]
                  %1315 = vst [vmem:[%s1185 + $0x200] sm:$0xff] %v1314
                  %v1316 = vld [vmem:[%s1184 + $0xa28] sm:$0xff]
                  %1317 = vst [vmem:[%s1185 + $0x208] sm:$0xff] %v1316
                  %v1318 = vld [vmem:[%s1184 + $0xa50] sm:$0xff]
                  %1319 = vst [vmem:[%s1185 + $0x210] sm:$0xff] %v1318
                  %v1320 = vld [vmem:[%s1184 + $0xa78] sm:$0xff]
                  %1321 = vst [vmem:[%s1185 + $0x218] sm:$0xff] %v1320
                  %v1322 = vld [vmem:[%s1184 + $0xaa0] sm:$0xff]
                  %1323 = vst [vmem:[%s1185 + $0x220] sm:$0xff] %v1322
                  %v1324 = vld [vmem:[%s1184 + $0xac8] sm:$0xff]
                  %1325 = vst [vmem:[%s1185 + $0x228] sm:$0xff] %v1324
                  %v1326 = vld [vmem:[%s1184 + $0xaf0] sm:$0xff]
                  %1327 = vst [vmem:[%s1185 + $0x230] sm:$0xff] %v1326
                  %v1328 = vld [vmem:[%s1184 + $0xb18] sm:$0xff]
                  %1329 = vst [vmem:[%s1185 + $0x238] sm:$0xff] %v1328
                  %v1330 = vld [vmem:[%s1184 + $0xb40] sm:$0xff]
                  %1331 = vst [vmem:[%s1185 + $0x240] sm:$0xff] %v1330
                  %v1332 = vld [vmem:[%s1184 + $0xb68] sm:$0xff]
                  %1333 = vst [vmem:[%s1185 + $0x248] sm:$0xff] %v1332
                  %v1334 = vld [vmem:[%s1184 + $0xb90] sm:$0xff]
                  %1335 = vst [vmem:[%s1185 + $0x250] sm:$0xff] %v1334
                  %v1336 = vld [vmem:[%s1184 + $0xbb8] sm:$0xff]
                  %1337 = vst [vmem:[%s1185 + $0x258] sm:$0xff] %v1336
                  %v1338 = vld [vmem:[%s1184 + $0xbe0] sm:$0xff]
                  %1339 = vst [vmem:[%s1185 + $0x260] sm:$0xff] %v1338
                  %v1340 = vld [vmem:[%s1184 + $0xc08] sm:$0xff]
                  %1341 = vst [vmem:[%s1185 + $0x268] sm:$0xff] %v1340
                  %v1342 = vld [vmem:[%s1184 + $0xc30] sm:$0xff]
                  %1343 = vst [vmem:[%s1185 + $0x270] sm:$0xff] %v1342
                  %v1344 = vld [vmem:[%s1184 + $0xc58] sm:$0xff]
                  %1345 = vst [vmem:[%s1185 + $0x278] sm:$0xff] %v1344
                  %v1346 = vld [vmem:[%s1184 + $0xc80] sm:$0xff]
                  %1347 = vst [vmem:[%s1185 + $0x280] sm:$0xff] %v1346
                  %v1348 = vld [vmem:[%s1184 + $0xca8] sm:$0xff]
                  %1349 = vst [vmem:[%s1185 + $0x288] sm:$0xff] %v1348
                  %v1350 = vld [vmem:[%s1184 + $0xcd0] sm:$0xff]
                  %1351 = vst [vmem:[%s1185 + $0x290] sm:$0xff] %v1350
                  %v1352 = vld [vmem:[%s1184 + $0xcf8] sm:$0xff]
                  %1353 = vst [vmem:[%s1185 + $0x298] sm:$0xff] %v1352
                  %v1354 = vld [vmem:[%s1184 + $0xd20] sm:$0xff]
                  %1355 = vst [vmem:[%s1185 + $0x2a0] sm:$0xff] %v1354
                  %v1356 = vld [vmem:[%s1184 + $0xd48] sm:$0xff]
                  %1357 = vst [vmem:[%s1185 + $0x2a8] sm:$0xff] %v1356
                  %v1358 = vld [vmem:[%s1184 + $0xd70] sm:$0xff]
                  %1359 = vst [vmem:[%s1185 + $0x2b0] sm:$0xff] %v1358
                  %v1360 = vld [vmem:[%s1184 + $0xd98] sm:$0xff]
                  %1361 = vst [vmem:[%s1185 + $0x2b8] sm:$0xff] %v1360
                  %v1362 = vld [vmem:[%s1184 + $0xdc0] sm:$0xff]
                  %1363 = vst [vmem:[%s1185 + $0x2c0] sm:$0xff] %v1362
                  %v1364 = vld [vmem:[%s1184 + $0xde8] sm:$0xff]
                  %1365 = vst [vmem:[%s1185 + $0x2c8] sm:$0xff] %v1364
                  %v1366 = vld [vmem:[%s1184 + $0xe10] sm:$0xff]
                  %1367 = vst [vmem:[%s1185 + $0x2d0] sm:$0xff] %v1366
                  %v1368 = vld [vmem:[%s1184 + $0xe38] sm:$0xff]
                  %1369 = vst [vmem:[%s1185 + $0x2d8] sm:$0xff] %v1368
                  %v1370 = vld [vmem:[%s1184 + $0xe60] sm:$0xff]
                  %1371 = vst [vmem:[%s1185 + $0x2e0] sm:$0xff] %v1370
                  %v1372 = vld [vmem:[%s1184 + $0xe88] sm:$0xff]
                  %1373 = vst [vmem:[%s1185 + $0x2e8] sm:$0xff] %v1372
                  %v1374 = vld [vmem:[%s1184 + $0xeb0] sm:$0xff]
                  %1375 = vst [vmem:[%s1185 + $0x2f0] sm:$0xff] %v1374
                  %v1376 = vld [vmem:[%s1184 + $0xed8] sm:$0xff]
                  %1377 = vst [vmem:[%s1185 + $0x2f8] sm:$0xff] %v1376
                  %v1378 = vld [vmem:[%s1184 + $0xf00] sm:$0xff]
                  %1379 = vst [vmem:[%s1185 + $0x300] sm:$0xff] %v1378
                  %v1380 = vld [vmem:[%s1184 + $0xf28] sm:$0xff]
                  %1381 = vst [vmem:[%s1185 + $0x308] sm:$0xff] %v1380
                  %v1382 = vld [vmem:[%s1184 + $0xf50] sm:$0xff]
                  %1383 = vst [vmem:[%s1185 + $0x310] sm:$0xff] %v1382
                  %v1384 = vld [vmem:[%s1184 + $0xf78] sm:$0xff]
                  %1385 = vst [vmem:[%s1185 + $0x318] sm:$0xff] %v1384
                  %v1386 = vld [vmem:[%s1184 + $0xfa0] sm:$0xff]
                  %1387 = vst [vmem:[%s1185 + $0x320] sm:$0xff] %v1386
                  %v1388 = vld [vmem:[%s1184 + $0xfc8] sm:$0xff]
                  %1389 = vst [vmem:[%s1185 + $0x328] sm:$0xff] %v1388
                  %v1390 = vld [vmem:[%s1184 + $0xff0] sm:$0xff]
                  %1391 = vst [vmem:[%s1185 + $0x330] sm:$0xff] %v1390
                  %v1392 = vld [vmem:[%s1184 + $0x1018] sm:$0xff]
                  %1393 = vst [vmem:[%s1185 + $0x338] sm:$0xff] %v1392
                  %v1394 = vld [vmem:[%s1184 + $0x1040] sm:$0xff]
                  %1395 = vst [vmem:[%s1185 + $0x340] sm:$0xff] %v1394
                  %v1396 = vld [vmem:[%s1184 + $0x1068] sm:$0xff]
                  %1397 = vst [vmem:[%s1185 + $0x348] sm:$0xff] %v1396
                  %v1398 = vld [vmem:[%s1184 + $0x1090] sm:$0xff]
                  %1399 = vst [vmem:[%s1185 + $0x350] sm:$0xff] %v1398
                  %v1400 = vld [vmem:[%s1184 + $0x10b8] sm:$0xff]
                  %1401 = vst [vmem:[%s1185 + $0x358] sm:$0xff] %v1400
                  %v1402 = vld [vmem:[%s1184 + $0x10e0] sm:$0xff]
                  %1403 = vst [vmem:[%s1185 + $0x360] sm:$0xff] %v1402
                  %v1404 = vld [vmem:[%s1184 + $0x1108] sm:$0xff]
                  %1405 = vst [vmem:[%s1185 + $0x368] sm:$0xff] %v1404
                  %v1406 = vld [vmem:[%s1184 + $0x1130] sm:$0xff]
                  %1407 = vst [vmem:[%s1185 + $0x370] sm:$0xff] %v1406
                  %v1408 = vld [vmem:[%s1184 + $0x1158] sm:$0xff]
                  %1409 = vst [vmem:[%s1185 + $0x378] sm:$0xff] %v1408
                  %v1410 = vld [vmem:[%s1184 + $0x1180] sm:$0xff]
                  %1411 = vst [vmem:[%s1185 + $0x380] sm:$0xff] %v1410
                  %v1412 = vld [vmem:[%s1184 + $0x11a8] sm:$0xff]
                  %1413 = vst [vmem:[%s1185 + $0x388] sm:$0xff] %v1412
                  %v1414 = vld [vmem:[%s1184 + $0x11d0] sm:$0xff]
                  %1415 = vst [vmem:[%s1185 + $0x390] sm:$0xff] %v1414
                  %v1416 = vld [vmem:[%s1184 + $0x11f8] sm:$0xff]
                  %1417 = vst [vmem:[%s1185 + $0x398] sm:$0xff] %v1416
                  %v1418 = vld [vmem:[%s1184 + $0x1220] sm:$0xff]
                  %1419 = vst [vmem:[%s1185 + $0x3a0] sm:$0xff] %v1418
                  %v1420 = vld [vmem:[%s1184 + $0x1248] sm:$0xff]
                  %1421 = vst [vmem:[%s1185 + $0x3a8] sm:$0xff] %v1420
                  %v1422 = vld [vmem:[%s1184 + $0x1270] sm:$0xff]
                  %1423 = vst [vmem:[%s1185 + $0x3b0] sm:$0xff] %v1422
                  %v1424 = vld [vmem:[%s1184 + $0x1298] sm:$0xff]
                  %1425 = vst [vmem:[%s1185 + $0x3b8] sm:$0xff] %v1424
                  %v1426 = vld [vmem:[%s1184 + $0x12c0] sm:$0xff]
                  %1427 = vst [vmem:[%s1185 + $0x3c0] sm:$0xff] %v1426
                  %v1428 = vld [vmem:[%s1184 + $0x12e8] sm:$0xff]
                  %1429 = vst [vmem:[%s1185 + $0x3c8] sm:$0xff] %v1428
                  %v1430 = vld [vmem:[%s1184 + $0x1310] sm:$0xff]
                  %1431 = vst [vmem:[%s1185 + $0x3d0] sm:$0xff] %v1430
                  %v1432 = vld [vmem:[%s1184 + $0x1338] sm:$0xff]
                  %1433 = vst [vmem:[%s1185 + $0x3d8] sm:$0xff] %v1432
                  %v1434 = vld [vmem:[%s1184 + $0x1360] sm:$0xff]
                  %1435 = vst [vmem:[%s1185 + $0x3e0] sm:$0xff] %v1434
                  %v1436 = vld [vmem:[%s1184 + $0x1388] sm:$0xff]
                  %1437 = vst [vmem:[%s1185 + $0x3e8] sm:$0xff] %v1436
                  %v1438 = vld [vmem:[%s1184 + $0x13b0] sm:$0xff]
                  %1439 = vst [vmem:[%s1185 + $0x3f0] sm:$0xff] %v1438
                  %v1440 = vld [vmem:[%s1184 + $0x13d8] sm:$0xff]
                  %1441 = vst [vmem:[%s1185 + $0x3f8] sm:$0xff] %v1440
                  %v1442 = vld [vmem:[%s1184 + $0x1400] sm:$0xff]
                  %1443 = vst [vmem:[%s1185 + $0x400] sm:$0xff] %v1442
                  %v1444 = vld [vmem:[%s1184 + $0x1428] sm:$0xff]
                  %1445 = vst [vmem:[%s1185 + $0x408] sm:$0xff] %v1444
                  %v1446 = vld [vmem:[%s1184 + $0x1450] sm:$0xff]
                  %1447 = vst [vmem:[%s1185 + $0x410] sm:$0xff] %v1446
                  %v1448 = vld [vmem:[%s1184 + $0x1478] sm:$0xff]
                  %1449 = vst [vmem:[%s1185 + $0x418] sm:$0xff] %v1448
                  %v1450 = vld [vmem:[%s1184 + $0x14a0] sm:$0xff]
                  %1451 = vst [vmem:[%s1185 + $0x420] sm:$0xff] %v1450
                  %v1452 = vld [vmem:[%s1184 + $0x14c8] sm:$0xff]
                  %1453 = vst [vmem:[%s1185 + $0x428] sm:$0xff] %v1452
                  %v1454 = vld [vmem:[%s1184 + $0x14f0] sm:$0xff]
                  %1455 = vst [vmem:[%s1185 + $0x430] sm:$0xff] %v1454
                  %v1456 = vld [vmem:[%s1184 + $0x1518] sm:$0xff]
                  %1457 = vst [vmem:[%s1185 + $0x438] sm:$0xff] %v1456
                  %v1458 = vld [vmem:[%s1184 + $0x1540] sm:$0xff]
                  %1459 = vst [vmem:[%s1185 + $0x440] sm:$0xff] %v1458
                  %v1460 = vld [vmem:[%s1184 + $0x1568] sm:$0xff]
                  %1461 = vst [vmem:[%s1185 + $0x448] sm:$0xff] %v1460
                  %v1462 = vld [vmem:[%s1184 + $0x1590] sm:$0xff]
                  %1463 = vst [vmem:[%s1185 + $0x450] sm:$0xff] %v1462
                  %v1464 = vld [vmem:[%s1184 + $0x15b8] sm:$0xff]
                  %1465 = vst [vmem:[%s1185 + $0x458] sm:$0xff] %v1464
                  %v1466 = vld [vmem:[%s1184 + $0x15e0] sm:$0xff]
                  %1467 = vst [vmem:[%s1185 + $0x460] sm:$0xff] %v1466
                  %v1468 = vld [vmem:[%s1184 + $0x1608] sm:$0xff]
                  %1469 = vst [vmem:[%s1185 + $0x468] sm:$0xff] %v1468
                  %v1470 = vld [vmem:[%s1184 + $0x1630] sm:$0xff]
                  %1471 = vst [vmem:[%s1185 + $0x470] sm:$0xff] %v1470
                  %v1472 = vld [vmem:[%s1184 + $0x1658] sm:$0xff]
                  %1473 = vst [vmem:[%s1185 + $0x478] sm:$0xff] %v1472
                  %v1474 = vld [vmem:[%s1184 + $0x1680] sm:$0xff]
                  %1475 = vst [vmem:[%s1185 + $0x480] sm:$0xff] %v1474
                  %v1476 = vld [vmem:[%s1184 + $0x16a8] sm:$0xff]
                  %1477 = vst [vmem:[%s1185 + $0x488] sm:$0xff] %v1476
                  %v1478 = vld [vmem:[%s1184 + $0x16d0] sm:$0xff]
                  %1479 = vst [vmem:[%s1185 + $0x490] sm:$0xff] %v1478
                  %v1480 = vld [vmem:[%s1184 + $0x16f8] sm:$0xff]
                  %1481 = vst [vmem:[%s1185 + $0x498] sm:$0xff] %v1480
                  %v1482 = vld [vmem:[%s1184 + $0x1720] sm:$0xff]
                  %1483 = vst [vmem:[%s1185 + $0x4a0] sm:$0xff] %v1482
                  %v1484 = vld [vmem:[%s1184 + $0x1748] sm:$0xff]
                  %1485 = vst [vmem:[%s1185 + $0x4a8] sm:$0xff] %v1484
                  %v1486 = vld [vmem:[%s1184 + $0x1770] sm:$0xff]
                  %1487 = vst [vmem:[%s1185 + $0x4b0] sm:$0xff] %v1486
                  %v1488 = vld [vmem:[%s1184 + $0x1798] sm:$0xff]
                  %1489 = vst [vmem:[%s1185 + $0x4b8] sm:$0xff] %v1488
                  %v1490 = vld [vmem:[%s1184 + $0x17c0] sm:$0xff]
                  %1491 = vst [vmem:[%s1185 + $0x4c0] sm:$0xff] %v1490
                  %v1492 = vld [vmem:[%s1184 + $0x17e8] sm:$0xff]
                  %1493 = vst [vmem:[%s1185 + $0x4c8] sm:$0xff] %v1492
                  %v1494 = vld [vmem:[%s1184 + $0x1810] sm:$0xff]
                  %1495 = vst [vmem:[%s1185 + $0x4d0] sm:$0xff] %v1494
                  %v1496 = vld [vmem:[%s1184 + $0x1838] sm:$0xff]
                  %1497 = vst [vmem:[%s1185 + $0x4d8] sm:$0xff] %v1496
                  %v1498 = vld [vmem:[%s1184 + $0x1860] sm:$0xff]
                  %1499 = vst [vmem:[%s1185 + $0x4e0] sm:$0xff] %v1498
                  %v1500 = vld [vmem:[%s1184 + $0x1888] sm:$0xff]
                  %1501 = vst [vmem:[%s1185 + $0x4e8] sm:$0xff] %v1500
                  %v1502 = vld [vmem:[%s1184 + $0x18b0] sm:$0xff]
                  %1503 = vst [vmem:[%s1185 + $0x4f0] sm:$0xff] %v1502
                  %v1504 = vld [vmem:[%s1184 + $0x18d8] sm:$0xff]
                  %1505 = vst [vmem:[%s1185 + $0x4f8] sm:$0xff] %v1504
                  %v1506 = vld [vmem:[%s1184 + $0x1900] sm:$0xff]
                  %1507 = vst [vmem:[%s1185 + $0x500] sm:$0xff] %v1506
                  %v1508 = vld [vmem:[%s1184 + $0x1928] sm:$0xff]
                  %1509 = vst [vmem:[%s1185 + $0x508] sm:$0xff] %v1508
                  %v1510 = vld [vmem:[%s1184 + $0x1950] sm:$0xff]
                  %1511 = vst [vmem:[%s1185 + $0x510] sm:$0xff] %v1510
                  %v1512 = vld [vmem:[%s1184 + $0x1978] sm:$0xff]
                  %1513 = vst [vmem:[%s1185 + $0x518] sm:$0xff] %v1512
                  %v1514 = vld [vmem:[%s1184 + $0x19a0] sm:$0xff]
                  %1515 = vst [vmem:[%s1185 + $0x520] sm:$0xff] %v1514
                  %v1516 = vld [vmem:[%s1184 + $0x19c8] sm:$0xff]
                  %1517 = vst [vmem:[%s1185 + $0x528] sm:$0xff] %v1516
                  %v1518 = vld [vmem:[%s1184 + $0x19f0] sm:$0xff]
                  %1519 = vst [vmem:[%s1185 + $0x530] sm:$0xff] %v1518
                  %v1520 = vld [vmem:[%s1184 + $0x1a18] sm:$0xff]
                  %1521 = vst [vmem:[%s1185 + $0x538] sm:$0xff] %v1520
                  %v1522 = vld [vmem:[%s1184 + $0x1a40] sm:$0xff]
                  %1523 = vst [vmem:[%s1185 + $0x540] sm:$0xff] %v1522
                  %v1524 = vld [vmem:[%s1184 + $0x1a68] sm:$0xff]
                  %1525 = vst [vmem:[%s1185 + $0x548] sm:$0xff] %v1524
                  %v1526 = vld [vmem:[%s1184 + $0x1a90] sm:$0xff]
                  %1527 = vst [vmem:[%s1185 + $0x550] sm:$0xff] %v1526
                  %v1528 = vld [vmem:[%s1184 + $0x1ab8] sm:$0xff]
                  %1529 = vst [vmem:[%s1185 + $0x558] sm:$0xff] %v1528
                  %v1530 = vld [vmem:[%s1184 + $0x1ae0] sm:$0xff]
                  %1531 = vst [vmem:[%s1185 + $0x560] sm:$0xff] %v1530
                  %v1532 = vld [vmem:[%s1184 + $0x1b08] sm:$0xff]
                  %1533 = vst [vmem:[%s1185 + $0x568] sm:$0xff] %v1532
                  %v1534 = vld [vmem:[%s1184 + $0x1b30] sm:$0xff]
                  %1535 = vst [vmem:[%s1185 + $0x570] sm:$0xff] %v1534
                  %v1536 = vld [vmem:[%s1184 + $0x1b58] sm:$0xff]
                  %1537 = vst [vmem:[%s1185 + $0x578] sm:$0xff] %v1536
                  %v1538 = vld [vmem:[%s1184 + $0x1b80] sm:$0xff]
                  %1539 = vst [vmem:[%s1185 + $0x580] sm:$0xff] %v1538
                  %v1540 = vld [vmem:[%s1184 + $0x1ba8] sm:$0xff]
                  %1541 = vst [vmem:[%s1185 + $0x588] sm:$0xff] %v1540
                  %v1542 = vld [vmem:[%s1184 + $0x1bd0] sm:$0xff]
                  %1543 = vst [vmem:[%s1185 + $0x590] sm:$0xff] %v1542
                  %v1544 = vld [vmem:[%s1184 + $0x1bf8] sm:$0xff]
                  %1545 = vst [vmem:[%s1185 + $0x598] sm:$0xff] %v1544
                  %v1546 = vld [vmem:[%s1184 + $0x1c20] sm:$0xff]
                  %1547 = vst [vmem:[%s1185 + $0x5a0] sm:$0xff] %v1546
                  %v1548 = vld [vmem:[%s1184 + $0x1c48] sm:$0xff]
                  %1549 = vst [vmem:[%s1185 + $0x5a8] sm:$0xff] %v1548
                  %v1550 = vld [vmem:[%s1184 + $0x1c70] sm:$0xff]
                  %1551 = vst [vmem:[%s1185 + $0x5b0] sm:$0xff] %v1550
                  %v1552 = vld [vmem:[%s1184 + $0x1c98] sm:$0xff]
                  %1553 = vst [vmem:[%s1185 + $0x5b8] sm:$0xff] %v1552
                  %v1554 = vld [vmem:[%s1184 + $0x1cc0] sm:$0xff]
                  %1555 = vst [vmem:[%s1185 + $0x5c0] sm:$0xff] %v1554
                  %v1556 = vld [vmem:[%s1184 + $0x1ce8] sm:$0xff]
                  %1557 = vst [vmem:[%s1185 + $0x5c8] sm:$0xff] %v1556
                  %v1558 = vld [vmem:[%s1184 + $0x1d10] sm:$0xff]
                  %1559 = vst [vmem:[%s1185 + $0x5d0] sm:$0xff] %v1558
                  %v1560 = vld [vmem:[%s1184 + $0x1d38] sm:$0xff]
                  %1561 = vst [vmem:[%s1185 + $0x5d8] sm:$0xff] %v1560
                  %v1562 = vld [vmem:[%s1184 + $0x1d60] sm:$0xff]
                  %1563 = vst [vmem:[%s1185 + $0x5e0] sm:$0xff] %v1562
                  %v1564 = vld [vmem:[%s1184 + $0x1d88] sm:$0xff]
                  %1565 = vst [vmem:[%s1185 + $0x5e8] sm:$0xff] %v1564
                  %v1566 = vld [vmem:[%s1184 + $0x1db0] sm:$0xff]
                  %1567 = vst [vmem:[%s1185 + $0x5f0] sm:$0xff] %v1566
                  %v1568 = vld [vmem:[%s1184 + $0x1dd8] sm:$0xff]
                  %1569 = vst [vmem:[%s1185 + $0x5f8] sm:$0xff] %v1568
                  %v1570 = vld [vmem:[%s1184 + $0x1e00] sm:$0xff]
                  %1571 = vst [vmem:[%s1185 + $0x600] sm:$0xff] %v1570
                  %v1572 = vld [vmem:[%s1184 + $0x1e28] sm:$0xff]
                  %1573 = vst [vmem:[%s1185 + $0x608] sm:$0xff] %v1572
                  %v1574 = vld [vmem:[%s1184 + $0x1e50] sm:$0xff]
                  %1575 = vst [vmem:[%s1185 + $0x610] sm:$0xff] %v1574
                  %v1576 = vld [vmem:[%s1184 + $0x1e78] sm:$0xff]
                  %1577 = vst [vmem:[%s1185 + $0x618] sm:$0xff] %v1576
                  %v1578 = vld [vmem:[%s1184 + $0x1ea0] sm:$0xff]
                  %1579 = vst [vmem:[%s1185 + $0x620] sm:$0xff] %v1578
                  %v1580 = vld [vmem:[%s1184 + $0x1ec8] sm:$0xff]
                  %1581 = vst [vmem:[%s1185 + $0x628] sm:$0xff] %v1580
                  %v1582 = vld [vmem:[%s1184 + $0x1ef0] sm:$0xff]
                  %1583 = vst [vmem:[%s1185 + $0x630] sm:$0xff] %v1582
                  %v1584 = vld [vmem:[%s1184 + $0x1f18] sm:$0xff]
                  %1585 = vst [vmem:[%s1185 + $0x638] sm:$0xff] %v1584
                  %v1586 = vld [vmem:[%s1184 + $0x1f40] sm:$0xff]
                  %1587 = vst [vmem:[%s1185 + $0x640] sm:$0xff] %v1586
                  %v1588 = vld [vmem:[%s1184 + $0x1f68] sm:$0xff]
                  %1589 = vst [vmem:[%s1185 + $0x648] sm:$0xff] %v1588
                  %v1590 = vld [vmem:[%s1184 + $0x1f90] sm:$0xff]
                  %1591 = vst [vmem:[%s1185 + $0x650] sm:$0xff] %v1590
                  %v1592 = vld [vmem:[%s1184 + $0x1fb8] sm:$0xff]
                  %1593 = vst [vmem:[%s1185 + $0x658] sm:$0xff] %v1592
                  %v1594 = vld [vmem:[%s1184 + $0x1fe0] sm:$0xff]
                  %1595 = vst [vmem:[%s1185 + $0x660] sm:$0xff] %v1594
                  %v1596 = vld [vmem:[%s1184 + $0x2008] sm:$0xff]
                  %1597 = vst [vmem:[%s1185 + $0x668] sm:$0xff] %v1596
                  %v1598 = vld [vmem:[%s1184 + $0x2030] sm:$0xff]
                  %1599 = vst [vmem:[%s1185 + $0x670] sm:$0xff] %v1598
                  %v1600 = vld [vmem:[%s1184 + $0x2058] sm:$0xff]
                  %1601 = vst [vmem:[%s1185 + $0x678] sm:$0xff] %v1600
                  %v1602 = vld [vmem:[%s1184 + $0x2080] sm:$0xff]
                  %1603 = vst [vmem:[%s1185 + $0x680] sm:$0xff] %v1602
                  %v1604 = vld [vmem:[%s1184 + $0x20a8] sm:$0xff]
                  %1605 = vst [vmem:[%s1185 + $0x688] sm:$0xff] %v1604
                  %v1606 = vld [vmem:[%s1184 + $0x20d0] sm:$0xff]
                  %1607 = vst [vmem:[%s1185 + $0x690] sm:$0xff] %v1606
                  %v1608 = vld [vmem:[%s1184 + $0x20f8] sm:$0xff]
                  %1609 = vst [vmem:[%s1185 + $0x698] sm:$0xff] %v1608
                  %v1610 = vld [vmem:[%s1184 + $0x2120] sm:$0xff]
                  %1611 = vst [vmem:[%s1185 + $0x6a0] sm:$0xff] %v1610
                  %v1612 = vld [vmem:[%s1184 + $0x2148] sm:$0xff]
                  %1613 = vst [vmem:[%s1185 + $0x6a8] sm:$0xff] %v1612
                  %v1614 = vld [vmem:[%s1184 + $0x2170] sm:$0xff]
                  %1615 = vst [vmem:[%s1185 + $0x6b0] sm:$0xff] %v1614
                  %v1616 = vld [vmem:[%s1184 + $0x2198] sm:$0xff]
                  %1617 = vst [vmem:[%s1185 + $0x6b8] sm:$0xff] %v1616
                  %v1618 = vld [vmem:[%s1184 + $0x21c0] sm:$0xff]
                  %1619 = vst [vmem:[%s1185 + $0x6c0] sm:$0xff] %v1618
                  %v1620 = vld [vmem:[%s1184 + $0x21e8] sm:$0xff]
                  %1621 = vst [vmem:[%s1185 + $0x6c8] sm:$0xff] %v1620
                  %v1622 = vld [vmem:[%s1184 + $0x2210] sm:$0xff]
                  %1623 = vst [vmem:[%s1185 + $0x6d0] sm:$0xff] %v1622
                  %v1624 = vld [vmem:[%s1184 + $0x2238] sm:$0xff]
                  %1625 = vst [vmem:[%s1185 + $0x6d8] sm:$0xff] %v1624
                  %v1626 = vld [vmem:[%s1184 + $0x2260] sm:$0xff]
                  %1627 = vst [vmem:[%s1185 + $0x6e0] sm:$0xff] %v1626
                  %v1628 = vld [vmem:[%s1184 + $0x2288] sm:$0xff]
                  %1629 = vst [vmem:[%s1185 + $0x6e8] sm:$0xff] %v1628
                  %v1630 = vld [vmem:[%s1184 + $0x22b0] sm:$0xff]
                  %1631 = vst [vmem:[%s1185 + $0x6f0] sm:$0xff] %v1630
                  %v1632 = vld [vmem:[%s1184 + $0x22d8] sm:$0xff]
                  %1633 = vst [vmem:[%s1185 + $0x6f8] sm:$0xff] %v1632
                  %v1634 = vld [vmem:[%s1184 + $0x2300] sm:$0xff]
                  %1635 = vst [vmem:[%s1185 + $0x700] sm:$0xff] %v1634
                  %v1636 = vld [vmem:[%s1184 + $0x2328] sm:$0xff]
                  %1637 = vst [vmem:[%s1185 + $0x708] sm:$0xff] %v1636
                  %v1638 = vld [vmem:[%s1184 + $0x2350] sm:$0xff]
                  %1639 = vst [vmem:[%s1185 + $0x710] sm:$0xff] %v1638
                  %v1640 = vld [vmem:[%s1184 + $0x2378] sm:$0xff]
                  %1641 = vst [vmem:[%s1185 + $0x718] sm:$0xff] %v1640
                  %v1642 = vld [vmem:[%s1184 + $0x23a0] sm:$0xff]
                  %1643 = vst [vmem:[%s1185 + $0x720] sm:$0xff] %v1642
                  %v1644 = vld [vmem:[%s1184 + $0x23c8] sm:$0xff]
                  %1645 = vst [vmem:[%s1185 + $0x728] sm:$0xff] %v1644
                  %v1646 = vld [vmem:[%s1184 + $0x23f0] sm:$0xff]
                  %1647 = vst [vmem:[%s1185 + $0x730] sm:$0xff] %v1646
                  %v1648 = vld [vmem:[%s1184 + $0x2418] sm:$0xff]
                  %1649 = vst [vmem:[%s1185 + $0x738] sm:$0xff] %v1648
                  %v1650 = vld [vmem:[%s1184 + $0x2440] sm:$0xff]
                  %1651 = vst [vmem:[%s1185 + $0x740] sm:$0xff] %v1650
                  %v1652 = vld [vmem:[%s1184 + $0x2468] sm:$0xff]
                  %1653 = vst [vmem:[%s1185 + $0x748] sm:$0xff] %v1652
                  %v1654 = vld [vmem:[%s1184 + $0x2490] sm:$0xff]
                  %1655 = vst [vmem:[%s1185 + $0x750] sm:$0xff] %v1654
                  %v1656 = vld [vmem:[%s1184 + $0x24b8] sm:$0xff]
                  %1657 = vst [vmem:[%s1185 + $0x758] sm:$0xff] %v1656
                  %v1658 = vld [vmem:[%s1184 + $0x24e0] sm:$0xff]
                  %1659 = vst [vmem:[%s1185 + $0x760] sm:$0xff] %v1658
                  %v1660 = vld [vmem:[%s1184 + $0x2508] sm:$0xff]
                  %1661 = vst [vmem:[%s1185 + $0x768] sm:$0xff] %v1660
                  %v1662 = vld [vmem:[%s1184 + $0x2530] sm:$0xff]
                  %1663 = vst [vmem:[%s1185 + $0x770] sm:$0xff] %v1662
                  %v1664 = vld [vmem:[%s1184 + $0x2558] sm:$0xff]
                  %1665 = vst [vmem:[%s1185 + $0x778] sm:$0xff] %v1664
                $region71: #{encoder_forward.3} parent=65 // loop_footer
                  %s1183 = sadd.s32 1, %s1179
                $region72: #{encoder_forward.3} parent=65 // loop_footer_branch
                  %1178 = sbr.rel target = $region68
                $region73: #{encoder_forward.3} parent=65 // loop_exit
                  _
              $region66: #{encoder_forward.3} parent=50 // pred_fallthru
                _
              // Predicated region
              $region74: #{encoder_forward.3} parent=50 // pred_check
                _
              $region75: #{encoder_forward.3} parent=50 // pred_check_branch
                %1667 = sbr.rel target = $region77
              $region76: #{encoder_forward.3} parent=50 // pred_region
                _
              $region77: #{encoder_forward.3} parent=50 // pred_fallthru
                _
            $region51: #{encoder_forward.3} parent=46 // pred_fallthru
              _
            // Predicated region
            $region52: #{encoder_forward.3} parent=46 // pred_check
              _
            $region53: #{encoder_forward.3} parent=46 // pred_check_branch
              %685 = sbr.rel target = $region55
            $region54: #{encoder_forward.3} parent=46 // pred_region
              %s687 = ssub.s32 256, 1
              loop: start=0, step=1, limit=1
              $region56: #{encoder_forward.3} parent=54 // loop_pre_header
                _
              $region57: #{encoder_forward.3} parent=54 // loop_header
                %s689 = sphi 0, %s693
                %p690 = scmp.ge.s32.totalorder %s689, 1
                %s694 = sphi %s679, %s679
                %s695 = sphi %s674, %s674
              $region58: #{encoder_forward.3} parent=54 // loop_header_branch
                %692 = sbr.rel (%p690) target = $region62
              $region59: #{encoder_forward.3} parent=54 // loop_body
                %v696 = vld [vmem:[%s694] sm:%s687]
                %697 = vst [vmem:[%s695] sm:%s687] %v696
                %v698 = vld [vmem:[%s694 + $0x28] sm:%s687]
                %699 = vst [vmem:[%s695 + $0x8] sm:%s687] %v698
                %v700 = vld [vmem:[%s694 + $0x50] sm:%s687]
                %701 = vst [vmem:[%s695 + $0x10] sm:%s687] %v700
                %v702 = vld [vmem:[%s694 + $0x78] sm:%s687]
                %703 = vst [vmem:[%s695 + $0x18] sm:%s687] %v702
                %v704 = vld [vmem:[%s694 + $0xa0] sm:%s687]
                %705 = vst [vmem:[%s695 + $0x20] sm:%s687] %v704
                %v706 = vld [vmem:[%s694 + $0xc8] sm:%s687]
                %707 = vst [vmem:[%s695 + $0x28] sm:%s687] %v706
                %v708 = vld [vmem:[%s694 + $0xf0] sm:%s687]
                %709 = vst [vmem:[%s695 + $0x30] sm:%s687] %v708
                %v710 = vld [vmem:[%s694 + $0x118] sm:%s687]
                %711 = vst [vmem:[%s695 + $0x38] sm:%s687] %v710
                %v712 = vld [vmem:[%s694 + $0x140] sm:%s687]
                %713 = vst [vmem:[%s695 + $0x40] sm:%s687] %v712
                %v714 = vld [vmem:[%s694 + $0x168] sm:%s687]
                %715 = vst [vmem:[%s695 + $0x48] sm:%s687] %v714
                %v716 = vld [vmem:[%s694 + $0x190] sm:%s687]
                %717 = vst [vmem:[%s695 + $0x50] sm:%s687] %v716
                %v718 = vld [vmem:[%s694 + $0x1b8] sm:%s687]
                %719 = vst [vmem:[%s695 + $0x58] sm:%s687] %v718
                %v720 = vld [vmem:[%s694 + $0x1e0] sm:%s687]
                %721 = vst [vmem:[%s695 + $0x60] sm:%s687] %v720
                %v722 = vld [vmem:[%s694 + $0x208] sm:%s687]
                %723 = vst [vmem:[%s695 + $0x68] sm:%s687] %v722
                %v724 = vld [vmem:[%s694 + $0x230] sm:%s687]
                %725 = vst [vmem:[%s695 + $0x70] sm:%s687] %v724
                %v726 = vld [vmem:[%s694 + $0x258] sm:%s687]
                %727 = vst [vmem:[%s695 + $0x78] sm:%s687] %v726
                %v728 = vld [vmem:[%s694 + $0x280] sm:%s687]
                %729 = vst [vmem:[%s695 + $0x80] sm:%s687] %v728
                %v730 = vld [vmem:[%s694 + $0x2a8] sm:%s687]
                %731 = vst [vmem:[%s695 + $0x88] sm:%s687] %v730
                %v732 = vld [vmem:[%s694 + $0x2d0] sm:%s687]
                %733 = vst [vmem:[%s695 + $0x90] sm:%s687] %v732
                %v734 = vld [vmem:[%s694 + $0x2f8] sm:%s687]
                %735 = vst [vmem:[%s695 + $0x98] sm:%s687] %v734
                %v736 = vld [vmem:[%s694 + $0x320] sm:%s687]
                %737 = vst [vmem:[%s695 + $0xa0] sm:%s687] %v736
                %v738 = vld [vmem:[%s694 + $0x348] sm:%s687]
                %739 = vst [vmem:[%s695 + $0xa8] sm:%s687] %v738
                %v740 = vld [vmem:[%s694 + $0x370] sm:%s687]
                %741 = vst [vmem:[%s695 + $0xb0] sm:%s687] %v740
                %v742 = vld [vmem:[%s694 + $0x398] sm:%s687]
                %743 = vst [vmem:[%s695 + $0xb8] sm:%s687] %v742
                %v744 = vld [vmem:[%s694 + $0x3c0] sm:%s687]
                %745 = vst [vmem:[%s695 + $0xc0] sm:%s687] %v744
                %v746 = vld [vmem:[%s694 + $0x3e8] sm:%s687]
                %747 = vst [vmem:[%s695 + $0xc8] sm:%s687] %v746
                %v748 = vld [vmem:[%s694 + $0x410] sm:%s687]
                %749 = vst [vmem:[%s695 + $0xd0] sm:%s687] %v748
                %v750 = vld [vmem:[%s694 + $0x438] sm:%s687]
                %751 = vst [vmem:[%s695 + $0xd8] sm:%s687] %v750
                %v752 = vld [vmem:[%s694 + $0x460] sm:%s687]
                %753 = vst [vmem:[%s695 + $0xe0] sm:%s687] %v752
                %v754 = vld [vmem:[%s694 + $0x488] sm:%s687]
                %755 = vst [vmem:[%s695 + $0xe8] sm:%s687] %v754
                %v756 = vld [vmem:[%s694 + $0x4b0] sm:%s687]
                %757 = vst [vmem:[%s695 + $0xf0] sm:%s687] %v756
                %v758 = vld [vmem:[%s694 + $0x4d8] sm:%s687]
                %759 = vst [vmem:[%s695 + $0xf8] sm:%s687] %v758
                %v760 = vld [vmem:[%s694 + $0x500] sm:%s687]
                %761 = vst [vmem:[%s695 + $0x100] sm:%s687] %v760
                %v762 = vld [vmem:[%s694 + $0x528] sm:%s687]
                %763 = vst [vmem:[%s695 + $0x108] sm:%s687] %v762
                %v764 = vld [vmem:[%s694 + $0x550] sm:%s687]
                %765 = vst [vmem:[%s695 + $0x110] sm:%s687] %v764
                %v766 = vld [vmem:[%s694 + $0x578] sm:%s687]
                %767 = vst [vmem:[%s695 + $0x118] sm:%s687] %v766
                %v768 = vld [vmem:[%s694 + $0x5a0] sm:%s687]
                %769 = vst [vmem:[%s695 + $0x120] sm:%s687] %v768
                %v770 = vld [vmem:[%s694 + $0x5c8] sm:%s687]
                %771 = vst [vmem:[%s695 + $0x128] sm:%s687] %v770
                %v772 = vld [vmem:[%s694 + $0x5f0] sm:%s687]
                %773 = vst [vmem:[%s695 + $0x130] sm:%s687] %v772
                %v774 = vld [vmem:[%s694 + $0x618] sm:%s687]
                %775 = vst [vmem:[%s695 + $0x138] sm:%s687] %v774
                %v776 = vld [vmem:[%s694 + $0x640] sm:%s687]
                %777 = vst [vmem:[%s695 + $0x140] sm:%s687] %v776
                %v778 = vld [vmem:[%s694 + $0x668] sm:%s687]
                %779 = vst [vmem:[%s695 + $0x148] sm:%s687] %v778
                %v780 = vld [vmem:[%s694 + $0x690] sm:%s687]
                %781 = vst [vmem:[%s695 + $0x150] sm:%s687] %v780
                %v782 = vld [vmem:[%s694 + $0x6b8] sm:%s687]
                %783 = vst [vmem:[%s695 + $0x158] sm:%s687] %v782
                %v784 = vld [vmem:[%s694 + $0x6e0] sm:%s687]
                %785 = vst [vmem:[%s695 + $0x160] sm:%s687] %v784
                %v786 = vld [vmem:[%s694 + $0x708] sm:%s687]
                %787 = vst [vmem:[%s695 + $0x168] sm:%s687] %v786
                %v788 = vld [vmem:[%s694 + $0x730] sm:%s687]
                %789 = vst [vmem:[%s695 + $0x170] sm:%s687] %v788
                %v790 = vld [vmem:[%s694 + $0x758] sm:%s687]
                %791 = vst [vmem:[%s695 + $0x178] sm:%s687] %v790
                %v792 = vld [vmem:[%s694 + $0x780] sm:%s687]
                %793 = vst [vmem:[%s695 + $0x180] sm:%s687] %v792
                %v794 = vld [vmem:[%s694 + $0x7a8] sm:%s687]
                %795 = vst [vmem:[%s695 + $0x188] sm:%s687] %v794
                %v796 = vld [vmem:[%s694 + $0x7d0] sm:%s687]
                %797 = vst [vmem:[%s695 + $0x190] sm:%s687] %v796
                %v798 = vld [vmem:[%s694 + $0x7f8] sm:%s687]
                %799 = vst [vmem:[%s695 + $0x198] sm:%s687] %v798
                %v800 = vld [vmem:[%s694 + $0x820] sm:%s687]
                %801 = vst [vmem:[%s695 + $0x1a0] sm:%s687] %v800
                %v802 = vld [vmem:[%s694 + $0x848] sm:%s687]
                %803 = vst [vmem:[%s695 + $0x1a8] sm:%s687] %v802
                %v804 = vld [vmem:[%s694 + $0x870] sm:%s687]
                %805 = vst [vmem:[%s695 + $0x1b0] sm:%s687] %v804
                %v806 = vld [vmem:[%s694 + $0x898] sm:%s687]
                %807 = vst [vmem:[%s695 + $0x1b8] sm:%s687] %v806
                %v808 = vld [vmem:[%s694 + $0x8c0] sm:%s687]
                %809 = vst [vmem:[%s695 + $0x1c0] sm:%s687] %v808
                %v810 = vld [vmem:[%s694 + $0x8e8] sm:%s687]
                %811 = vst [vmem:[%s695 + $0x1c8] sm:%s687] %v810
                %v812 = vld [vmem:[%s694 + $0x910] sm:%s687]
                %813 = vst [vmem:[%s695 + $0x1d0] sm:%s687] %v812
                %v814 = vld [vmem:[%s694 + $0x938] sm:%s687]
                %815 = vst [vmem:[%s695 + $0x1d8] sm:%s687] %v814
                %v816 = vld [vmem:[%s694 + $0x960] sm:%s687]
                %817 = vst [vmem:[%s695 + $0x1e0] sm:%s687] %v816
                %v818 = vld [vmem:[%s694 + $0x988] sm:%s687]
                %819 = vst [vmem:[%s695 + $0x1e8] sm:%s687] %v818
                %v820 = vld [vmem:[%s694 + $0x9b0] sm:%s687]
                %821 = vst [vmem:[%s695 + $0x1f0] sm:%s687] %v820
                %v822 = vld [vmem:[%s694 + $0x9d8] sm:%s687]
                %823 = vst [vmem:[%s695 + $0x1f8] sm:%s687] %v822
                %v824 = vld [vmem:[%s694 + $0xa00] sm:%s687]
                %825 = vst [vmem:[%s695 + $0x200] sm:%s687] %v824
                %v826 = vld [vmem:[%s694 + $0xa28] sm:%s687]
                %827 = vst [vmem:[%s695 + $0x208] sm:%s687] %v826
                %v828 = vld [vmem:[%s694 + $0xa50] sm:%s687]
                %829 = vst [vmem:[%s695 + $0x210] sm:%s687] %v828
                %v830 = vld [vmem:[%s694 + $0xa78] sm:%s687]
                %831 = vst [vmem:[%s695 + $0x218] sm:%s687] %v830
                %v832 = vld [vmem:[%s694 + $0xaa0] sm:%s687]
                %833 = vst [vmem:[%s695 + $0x220] sm:%s687] %v832
                %v834 = vld [vmem:[%s694 + $0xac8] sm:%s687]
                %835 = vst [vmem:[%s695 + $0x228] sm:%s687] %v834
                %v836 = vld [vmem:[%s694 + $0xaf0] sm:%s687]
                %837 = vst [vmem:[%s695 + $0x230] sm:%s687] %v836
                %v838 = vld [vmem:[%s694 + $0xb18] sm:%s687]
                %839 = vst [vmem:[%s695 + $0x238] sm:%s687] %v838
                %v840 = vld [vmem:[%s694 + $0xb40] sm:%s687]
                %841 = vst [vmem:[%s695 + $0x240] sm:%s687] %v840
                %v842 = vld [vmem:[%s694 + $0xb68] sm:%s687]
                %843 = vst [vmem:[%s695 + $0x248] sm:%s687] %v842
                %v844 = vld [vmem:[%s694 + $0xb90] sm:%s687]
                %845 = vst [vmem:[%s695 + $0x250] sm:%s687] %v844
                %v846 = vld [vmem:[%s694 + $0xbb8] sm:%s687]
                %847 = vst [vmem:[%s695 + $0x258] sm:%s687] %v846
                %v848 = vld [vmem:[%s694 + $0xbe0] sm:%s687]
                %849 = vst [vmem:[%s695 + $0x260] sm:%s687] %v848
                %v850 = vld [vmem:[%s694 + $0xc08] sm:%s687]
                %851 = vst [vmem:[%s695 + $0x268] sm:%s687] %v850
                %v852 = vld [vmem:[%s694 + $0xc30] sm:%s687]
                %853 = vst [vmem:[%s695 + $0x270] sm:%s687] %v852
                %v854 = vld [vmem:[%s694 + $0xc58] sm:%s687]
                %855 = vst [vmem:[%s695 + $0x278] sm:%s687] %v854
                %v856 = vld [vmem:[%s694 + $0xc80] sm:%s687]
                %857 = vst [vmem:[%s695 + $0x280] sm:%s687] %v856
                %v858 = vld [vmem:[%s694 + $0xca8] sm:%s687]
                %859 = vst [vmem:[%s695 + $0x288] sm:%s687] %v858
                %v860 = vld [vmem:[%s694 + $0xcd0] sm:%s687]
                %861 = vst [vmem:[%s695 + $0x290] sm:%s687] %v860
                %v862 = vld [vmem:[%s694 + $0xcf8] sm:%s687]
                %863 = vst [vmem:[%s695 + $0x298] sm:%s687] %v862
                %v864 = vld [vmem:[%s694 + $0xd20] sm:%s687]
                %865 = vst [vmem:[%s695 + $0x2a0] sm:%s687] %v864
                %v866 = vld [vmem:[%s694 + $0xd48] sm:%s687]
                %867 = vst [vmem:[%s695 + $0x2a8] sm:%s687] %v866
                %v868 = vld [vmem:[%s694 + $0xd70] sm:%s687]
                %869 = vst [vmem:[%s695 + $0x2b0] sm:%s687] %v868
                %v870 = vld [vmem:[%s694 + $0xd98] sm:%s687]
                %871 = vst [vmem:[%s695 + $0x2b8] sm:%s687] %v870
                %v872 = vld [vmem:[%s694 + $0xdc0] sm:%s687]
                %873 = vst [vmem:[%s695 + $0x2c0] sm:%s687] %v872
                %v874 = vld [vmem:[%s694 + $0xde8] sm:%s687]
                %875 = vst [vmem:[%s695 + $0x2c8] sm:%s687] %v874
                %v876 = vld [vmem:[%s694 + $0xe10] sm:%s687]
                %877 = vst [vmem:[%s695 + $0x2d0] sm:%s687] %v876
                %v878 = vld [vmem:[%s694 + $0xe38] sm:%s687]
                %879 = vst [vmem:[%s695 + $0x2d8] sm:%s687] %v878
                %v880 = vld [vmem:[%s694 + $0xe60] sm:%s687]
                %881 = vst [vmem:[%s695 + $0x2e0] sm:%s687] %v880
                %v882 = vld [vmem:[%s694 + $0xe88] sm:%s687]
                %883 = vst [vmem:[%s695 + $0x2e8] sm:%s687] %v882
                %v884 = vld [vmem:[%s694 + $0xeb0] sm:%s687]
                %885 = vst [vmem:[%s695 + $0x2f0] sm:%s687] %v884
                %v886 = vld [vmem:[%s694 + $0xed8] sm:%s687]
                %887 = vst [vmem:[%s695 + $0x2f8] sm:%s687] %v886
                %v888 = vld [vmem:[%s694 + $0xf00] sm:%s687]
                %889 = vst [vmem:[%s695 + $0x300] sm:%s687] %v888
                %v890 = vld [vmem:[%s694 + $0xf28] sm:%s687]
                %891 = vst [vmem:[%s695 + $0x308] sm:%s687] %v890
                %v892 = vld [vmem:[%s694 + $0xf50] sm:%s687]
                %893 = vst [vmem:[%s695 + $0x310] sm:%s687] %v892
                %v894 = vld [vmem:[%s694 + $0xf78] sm:%s687]
                %895 = vst [vmem:[%s695 + $0x318] sm:%s687] %v894
                %v896 = vld [vmem:[%s694 + $0xfa0] sm:%s687]
                %897 = vst [vmem:[%s695 + $0x320] sm:%s687] %v896
                %v898 = vld [vmem:[%s694 + $0xfc8] sm:%s687]
                %899 = vst [vmem:[%s695 + $0x328] sm:%s687] %v898
                %v900 = vld [vmem:[%s694 + $0xff0] sm:%s687]
                %901 = vst [vmem:[%s695 + $0x330] sm:%s687] %v900
                %v902 = vld [vmem:[%s694 + $0x1018] sm:%s687]
                %903 = vst [vmem:[%s695 + $0x338] sm:%s687] %v902
                %v904 = vld [vmem:[%s694 + $0x1040] sm:%s687]
                %905 = vst [vmem:[%s695 + $0x340] sm:%s687] %v904
                %v906 = vld [vmem:[%s694 + $0x1068] sm:%s687]
                %907 = vst [vmem:[%s695 + $0x348] sm:%s687] %v906
                %v908 = vld [vmem:[%s694 + $0x1090] sm:%s687]
                %909 = vst [vmem:[%s695 + $0x350] sm:%s687] %v908
                %v910 = vld [vmem:[%s694 + $0x10b8] sm:%s687]
                %911 = vst [vmem:[%s695 + $0x358] sm:%s687] %v910
                %v912 = vld [vmem:[%s694 + $0x10e0] sm:%s687]
                %913 = vst [vmem:[%s695 + $0x360] sm:%s687] %v912
                %v914 = vld [vmem:[%s694 + $0x1108] sm:%s687]
                %915 = vst [vmem:[%s695 + $0x368] sm:%s687] %v914
                %v916 = vld [vmem:[%s694 + $0x1130] sm:%s687]
                %917 = vst [vmem:[%s695 + $0x370] sm:%s687] %v916
                %v918 = vld [vmem:[%s694 + $0x1158] sm:%s687]
                %919 = vst [vmem:[%s695 + $0x378] sm:%s687] %v918
                %v920 = vld [vmem:[%s694 + $0x1180] sm:%s687]
                %921 = vst [vmem:[%s695 + $0x380] sm:%s687] %v920
                %v922 = vld [vmem:[%s694 + $0x11a8] sm:%s687]
                %923 = vst [vmem:[%s695 + $0x388] sm:%s687] %v922
                %v924 = vld [vmem:[%s694 + $0x11d0] sm:%s687]
                %925 = vst [vmem:[%s695 + $0x390] sm:%s687] %v924
                %v926 = vld [vmem:[%s694 + $0x11f8] sm:%s687]
                %927 = vst [vmem:[%s695 + $0x398] sm:%s687] %v926
                %v928 = vld [vmem:[%s694 + $0x1220] sm:%s687]
                %929 = vst [vmem:[%s695 + $0x3a0] sm:%s687] %v928
                %v930 = vld [vmem:[%s694 + $0x1248] sm:%s687]
                %931 = vst [vmem:[%s695 + $0x3a8] sm:%s687] %v930
                %v932 = vld [vmem:[%s694 + $0x1270] sm:%s687]
                %933 = vst [vmem:[%s695 + $0x3b0] sm:%s687] %v932
                %v934 = vld [vmem:[%s694 + $0x1298] sm:%s687]
                %935 = vst [vmem:[%s695 + $0x3b8] sm:%s687] %v934
                %v936 = vld [vmem:[%s694 + $0x12c0] sm:%s687]
                %937 = vst [vmem:[%s695 + $0x3c0] sm:%s687] %v936
                %v938 = vld [vmem:[%s694 + $0x12e8] sm:%s687]
                %939 = vst [vmem:[%s695 + $0x3c8] sm:%s687] %v938
                %v940 = vld [vmem:[%s694 + $0x1310] sm:%s687]
                %941 = vst [vmem:[%s695 + $0x3d0] sm:%s687] %v940
                %v942 = vld [vmem:[%s694 + $0x1338] sm:%s687]
                %943 = vst [vmem:[%s695 + $0x3d8] sm:%s687] %v942
                %v944 = vld [vmem:[%s694 + $0x1360] sm:%s687]
                %945 = vst [vmem:[%s695 + $0x3e0] sm:%s687] %v944
                %v946 = vld [vmem:[%s694 + $0x1388] sm:%s687]
                %947 = vst [vmem:[%s695 + $0x3e8] sm:%s687] %v946
                %v948 = vld [vmem:[%s694 + $0x13b0] sm:%s687]
                %949 = vst [vmem:[%s695 + $0x3f0] sm:%s687] %v948
                %v950 = vld [vmem:[%s694 + $0x13d8] sm:%s687]
                %951 = vst [vmem:[%s695 + $0x3f8] sm:%s687] %v950
                %v952 = vld [vmem:[%s694 + $0x1400] sm:%s687]
                %953 = vst [vmem:[%s695 + $0x400] sm:%s687] %v952
                %v954 = vld [vmem:[%s694 + $0x1428] sm:%s687]
                %955 = vst [vmem:[%s695 + $0x408] sm:%s687] %v954
                %v956 = vld [vmem:[%s694 + $0x1450] sm:%s687]
                %957 = vst [vmem:[%s695 + $0x410] sm:%s687] %v956
                %v958 = vld [vmem:[%s694 + $0x1478] sm:%s687]
                %959 = vst [vmem:[%s695 + $0x418] sm:%s687] %v958
                %v960 = vld [vmem:[%s694 + $0x14a0] sm:%s687]
                %961 = vst [vmem:[%s695 + $0x420] sm:%s687] %v960
                %v962 = vld [vmem:[%s694 + $0x14c8] sm:%s687]
                %963 = vst [vmem:[%s695 + $0x428] sm:%s687] %v962
                %v964 = vld [vmem:[%s694 + $0x14f0] sm:%s687]
                %965 = vst [vmem:[%s695 + $0x430] sm:%s687] %v964
                %v966 = vld [vmem:[%s694 + $0x1518] sm:%s687]
                %967 = vst [vmem:[%s695 + $0x438] sm:%s687] %v966
                %v968 = vld [vmem:[%s694 + $0x1540] sm:%s687]
                %969 = vst [vmem:[%s695 + $0x440] sm:%s687] %v968
                %v970 = vld [vmem:[%s694 + $0x1568] sm:%s687]
                %971 = vst [vmem:[%s695 + $0x448] sm:%s687] %v970
                %v972 = vld [vmem:[%s694 + $0x1590] sm:%s687]
                %973 = vst [vmem:[%s695 + $0x450] sm:%s687] %v972
                %v974 = vld [vmem:[%s694 + $0x15b8] sm:%s687]
                %975 = vst [vmem:[%s695 + $0x458] sm:%s687] %v974
                %v976 = vld [vmem:[%s694 + $0x15e0] sm:%s687]
                %977 = vst [vmem:[%s695 + $0x460] sm:%s687] %v976
                %v978 = vld [vmem:[%s694 + $0x1608] sm:%s687]
                %979 = vst [vmem:[%s695 + $0x468] sm:%s687] %v978
                %v980 = vld [vmem:[%s694 + $0x1630] sm:%s687]
                %981 = vst [vmem:[%s695 + $0x470] sm:%s687] %v980
                %v982 = vld [vmem:[%s694 + $0x1658] sm:%s687]
                %983 = vst [vmem:[%s695 + $0x478] sm:%s687] %v982
                %v984 = vld [vmem:[%s694 + $0x1680] sm:%s687]
                %985 = vst [vmem:[%s695 + $0x480] sm:%s687] %v984
                %v986 = vld [vmem:[%s694 + $0x16a8] sm:%s687]
                %987 = vst [vmem:[%s695 + $0x488] sm:%s687] %v986
                %v988 = vld [vmem:[%s694 + $0x16d0] sm:%s687]
                %989 = vst [vmem:[%s695 + $0x490] sm:%s687] %v988
                %v990 = vld [vmem:[%s694 + $0x16f8] sm:%s687]
                %991 = vst [vmem:[%s695 + $0x498] sm:%s687] %v990
                %v992 = vld [vmem:[%s694 + $0x1720] sm:%s687]
                %993 = vst [vmem:[%s695 + $0x4a0] sm:%s687] %v992
                %v994 = vld [vmem:[%s694 + $0x1748] sm:%s687]
                %995 = vst [vmem:[%s695 + $0x4a8] sm:%s687] %v994
                %v996 = vld [vmem:[%s694 + $0x1770] sm:%s687]
                %997 = vst [vmem:[%s695 + $0x4b0] sm:%s687] %v996
                %v998 = vld [vmem:[%s694 + $0x1798] sm:%s687]
                %999 = vst [vmem:[%s695 + $0x4b8] sm:%s687] %v998
                %v1000 = vld [vmem:[%s694 + $0x17c0] sm:%s687]
                %1001 = vst [vmem:[%s695 + $0x4c0] sm:%s687] %v1000
                %v1002 = vld [vmem:[%s694 + $0x17e8] sm:%s687]
                %1003 = vst [vmem:[%s695 + $0x4c8] sm:%s687] %v1002
                %v1004 = vld [vmem:[%s694 + $0x1810] sm:%s687]
                %1005 = vst [vmem:[%s695 + $0x4d0] sm:%s687] %v1004
                %v1006 = vld [vmem:[%s694 + $0x1838] sm:%s687]
                %1007 = vst [vmem:[%s695 + $0x4d8] sm:%s687] %v1006
                %v1008 = vld [vmem:[%s694 + $0x1860] sm:%s687]
                %1009 = vst [vmem:[%s695 + $0x4e0] sm:%s687] %v1008
                %v1010 = vld [vmem:[%s694 + $0x1888] sm:%s687]
                %1011 = vst [vmem:[%s695 + $0x4e8] sm:%s687] %v1010
                %v1012 = vld [vmem:[%s694 + $0x18b0] sm:%s687]
                %1013 = vst [vmem:[%s695 + $0x4f0] sm:%s687] %v1012
                %v1014 = vld [vmem:[%s694 + $0x18d8] sm:%s687]
                %1015 = vst [vmem:[%s695 + $0x4f8] sm:%s687] %v1014
                %v1016 = vld [vmem:[%s694 + $0x1900] sm:%s687]
                %1017 = vst [vmem:[%s695 + $0x500] sm:%s687] %v1016
                %v1018 = vld [vmem:[%s694 + $0x1928] sm:%s687]
                %1019 = vst [vmem:[%s695 + $0x508] sm:%s687] %v1018
                %v1020 = vld [vmem:[%s694 + $0x1950] sm:%s687]
                %1021 = vst [vmem:[%s695 + $0x510] sm:%s687] %v1020
                %v1022 = vld [vmem:[%s694 + $0x1978] sm:%s687]
                %1023 = vst [vmem:[%s695 + $0x518] sm:%s687] %v1022
                %v1024 = vld [vmem:[%s694 + $0x19a0] sm:%s687]
                %1025 = vst [vmem:[%s695 + $0x520] sm:%s687] %v1024
                %v1026 = vld [vmem:[%s694 + $0x19c8] sm:%s687]
                %1027 = vst [vmem:[%s695 + $0x528] sm:%s687] %v1026
                %v1028 = vld [vmem:[%s694 + $0x19f0] sm:%s687]
                %1029 = vst [vmem:[%s695 + $0x530] sm:%s687] %v1028
                %v1030 = vld [vmem:[%s694 + $0x1a18] sm:%s687]
                %1031 = vst [vmem:[%s695 + $0x538] sm:%s687] %v1030
                %v1032 = vld [vmem:[%s694 + $0x1a40] sm:%s687]
                %1033 = vst [vmem:[%s695 + $0x540] sm:%s687] %v1032
                %v1034 = vld [vmem:[%s694 + $0x1a68] sm:%s687]
                %1035 = vst [vmem:[%s695 + $0x548] sm:%s687] %v1034
                %v1036 = vld [vmem:[%s694 + $0x1a90] sm:%s687]
                %1037 = vst [vmem:[%s695 + $0x550] sm:%s687] %v1036
                %v1038 = vld [vmem:[%s694 + $0x1ab8] sm:%s687]
                %1039 = vst [vmem:[%s695 + $0x558] sm:%s687] %v1038
                %v1040 = vld [vmem:[%s694 + $0x1ae0] sm:%s687]
                %1041 = vst [vmem:[%s695 + $0x560] sm:%s687] %v1040
                %v1042 = vld [vmem:[%s694 + $0x1b08] sm:%s687]
                %1043 = vst [vmem:[%s695 + $0x568] sm:%s687] %v1042
                %v1044 = vld [vmem:[%s694 + $0x1b30] sm:%s687]
                %1045 = vst [vmem:[%s695 + $0x570] sm:%s687] %v1044
                %v1046 = vld [vmem:[%s694 + $0x1b58] sm:%s687]
                %1047 = vst [vmem:[%s695 + $0x578] sm:%s687] %v1046
                %v1048 = vld [vmem:[%s694 + $0x1b80] sm:%s687]
                %1049 = vst [vmem:[%s695 + $0x580] sm:%s687] %v1048
                %v1050 = vld [vmem:[%s694 + $0x1ba8] sm:%s687]
                %1051 = vst [vmem:[%s695 + $0x588] sm:%s687] %v1050
                %v1052 = vld [vmem:[%s694 + $0x1bd0] sm:%s687]
                %1053 = vst [vmem:[%s695 + $0x590] sm:%s687] %v1052
                %v1054 = vld [vmem:[%s694 + $0x1bf8] sm:%s687]
                %1055 = vst [vmem:[%s695 + $0x598] sm:%s687] %v1054
                %v1056 = vld [vmem:[%s694 + $0x1c20] sm:%s687]
                %1057 = vst [vmem:[%s695 + $0x5a0] sm:%s687] %v1056
                %v1058 = vld [vmem:[%s694 + $0x1c48] sm:%s687]
                %1059 = vst [vmem:[%s695 + $0x5a8] sm:%s687] %v1058
                %v1060 = vld [vmem:[%s694 + $0x1c70] sm:%s687]
                %1061 = vst [vmem:[%s695 + $0x5b0] sm:%s687] %v1060
                %v1062 = vld [vmem:[%s694 + $0x1c98] sm:%s687]
                %1063 = vst [vmem:[%s695 + $0x5b8] sm:%s687] %v1062
                %v1064 = vld [vmem:[%s694 + $0x1cc0] sm:%s687]
                %1065 = vst [vmem:[%s695 + $0x5c0] sm:%s687] %v1064
                %v1066 = vld [vmem:[%s694 + $0x1ce8] sm:%s687]
                %1067 = vst [vmem:[%s695 + $0x5c8] sm:%s687] %v1066
                %v1068 = vld [vmem:[%s694 + $0x1d10] sm:%s687]
                %1069 = vst [vmem:[%s695 + $0x5d0] sm:%s687] %v1068
                %v1070 = vld [vmem:[%s694 + $0x1d38] sm:%s687]
                %1071 = vst [vmem:[%s695 + $0x5d8] sm:%s687] %v1070
                %v1072 = vld [vmem:[%s694 + $0x1d60] sm:%s687]
                %1073 = vst [vmem:[%s695 + $0x5e0] sm:%s687] %v1072
                %v1074 = vld [vmem:[%s694 + $0x1d88] sm:%s687]
                %1075 = vst [vmem:[%s695 + $0x5e8] sm:%s687] %v1074
                %v1076 = vld [vmem:[%s694 + $0x1db0] sm:%s687]
                %1077 = vst [vmem:[%s695 + $0x5f0] sm:%s687] %v1076
                %v1078 = vld [vmem:[%s694 + $0x1dd8] sm:%s687]
                %1079 = vst [vmem:[%s695 + $0x5f8] sm:%s687] %v1078
                %v1080 = vld [vmem:[%s694 + $0x1e00] sm:%s687]
                %1081 = vst [vmem:[%s695 + $0x600] sm:%s687] %v1080
                %v1082 = vld [vmem:[%s694 + $0x1e28] sm:%s687]
                %1083 = vst [vmem:[%s695 + $0x608] sm:%s687] %v1082
                %v1084 = vld [vmem:[%s694 + $0x1e50] sm:%s687]
                %1085 = vst [vmem:[%s695 + $0x610] sm:%s687] %v1084
                %v1086 = vld [vmem:[%s694 + $0x1e78] sm:%s687]
                %1087 = vst [vmem:[%s695 + $0x618] sm:%s687] %v1086
                %v1088 = vld [vmem:[%s694 + $0x1ea0] sm:%s687]
                %1089 = vst [vmem:[%s695 + $0x620] sm:%s687] %v1088
                %v1090 = vld [vmem:[%s694 + $0x1ec8] sm:%s687]
                %1091 = vst [vmem:[%s695 + $0x628] sm:%s687] %v1090
                %v1092 = vld [vmem:[%s694 + $0x1ef0] sm:%s687]
                %1093 = vst [vmem:[%s695 + $0x630] sm:%s687] %v1092
                %v1094 = vld [vmem:[%s694 + $0x1f18] sm:%s687]
                %1095 = vst [vmem:[%s695 + $0x638] sm:%s687] %v1094
                %v1096 = vld [vmem:[%s694 + $0x1f40] sm:%s687]
                %1097 = vst [vmem:[%s695 + $0x640] sm:%s687] %v1096
                %v1098 = vld [vmem:[%s694 + $0x1f68] sm:%s687]
                %1099 = vst [vmem:[%s695 + $0x648] sm:%s687] %v1098
                %v1100 = vld [vmem:[%s694 + $0x1f90] sm:%s687]
                %1101 = vst [vmem:[%s695 + $0x650] sm:%s687] %v1100
                %v1102 = vld [vmem:[%s694 + $0x1fb8] sm:%s687]
                %1103 = vst [vmem:[%s695 + $0x658] sm:%s687] %v1102
                %v1104 = vld [vmem:[%s694 + $0x1fe0] sm:%s687]
                %1105 = vst [vmem:[%s695 + $0x660] sm:%s687] %v1104
                %v1106 = vld [vmem:[%s694 + $0x2008] sm:%s687]
                %1107 = vst [vmem:[%s695 + $0x668] sm:%s687] %v1106
                %v1108 = vld [vmem:[%s694 + $0x2030] sm:%s687]
                %1109 = vst [vmem:[%s695 + $0x670] sm:%s687] %v1108
                %v1110 = vld [vmem:[%s694 + $0x2058] sm:%s687]
                %1111 = vst [vmem:[%s695 + $0x678] sm:%s687] %v1110
                %v1112 = vld [vmem:[%s694 + $0x2080] sm:%s687]
                %1113 = vst [vmem:[%s695 + $0x680] sm:%s687] %v1112
                %v1114 = vld [vmem:[%s694 + $0x20a8] sm:%s687]
                %1115 = vst [vmem:[%s695 + $0x688] sm:%s687] %v1114
                %v1116 = vld [vmem:[%s694 + $0x20d0] sm:%s687]
                %1117 = vst [vmem:[%s695 + $0x690] sm:%s687] %v1116
                %v1118 = vld [vmem:[%s694 + $0x20f8] sm:%s687]
                %1119 = vst [vmem:[%s695 + $0x698] sm:%s687] %v1118
                %v1120 = vld [vmem:[%s694 + $0x2120] sm:%s687]
                %1121 = vst [vmem:[%s695 + $0x6a0] sm:%s687] %v1120
                %v1122 = vld [vmem:[%s694 + $0x2148] sm:%s687]
                %1123 = vst [vmem:[%s695 + $0x6a8] sm:%s687] %v1122
                %v1124 = vld [vmem:[%s694 + $0x2170] sm:%s687]
                %1125 = vst [vmem:[%s695 + $0x6b0] sm:%s687] %v1124
                %v1126 = vld [vmem:[%s694 + $0x2198] sm:%s687]
                %1127 = vst [vmem:[%s695 + $0x6b8] sm:%s687] %v1126
                %v1128 = vld [vmem:[%s694 + $0x21c0] sm:%s687]
                %1129 = vst [vmem:[%s695 + $0x6c0] sm:%s687] %v1128
                %v1130 = vld [vmem:[%s694 + $0x21e8] sm:%s687]
                %1131 = vst [vmem:[%s695 + $0x6c8] sm:%s687] %v1130
                %v1132 = vld [vmem:[%s694 + $0x2210] sm:%s687]
                %1133 = vst [vmem:[%s695 + $0x6d0] sm:%s687] %v1132
                %v1134 = vld [vmem:[%s694 + $0x2238] sm:%s687]
                %1135 = vst [vmem:[%s695 + $0x6d8] sm:%s687] %v1134
                %v1136 = vld [vmem:[%s694 + $0x2260] sm:%s687]
                %1137 = vst [vmem:[%s695 + $0x6e0] sm:%s687] %v1136
                %v1138 = vld [vmem:[%s694 + $0x2288] sm:%s687]
                %1139 = vst [vmem:[%s695 + $0x6e8] sm:%s687] %v1138
                %v1140 = vld [vmem:[%s694 + $0x22b0] sm:%s687]
                %1141 = vst [vmem:[%s695 + $0x6f0] sm:%s687] %v1140
                %v1142 = vld [vmem:[%s694 + $0x22d8] sm:%s687]
                %1143 = vst [vmem:[%s695 + $0x6f8] sm:%s687] %v1142
                %v1144 = vld [vmem:[%s694 + $0x2300] sm:%s687]
                %1145 = vst [vmem:[%s695 + $0x700] sm:%s687] %v1144
                %v1146 = vld [vmem:[%s694 + $0x2328] sm:%s687]
                %1147 = vst [vmem:[%s695 + $0x708] sm:%s687] %v1146
                %v1148 = vld [vmem:[%s694 + $0x2350] sm:%s687]
                %1149 = vst [vmem:[%s695 + $0x710] sm:%s687] %v1148
                %v1150 = vld [vmem:[%s694 + $0x2378] sm:%s687]
                %1151 = vst [vmem:[%s695 + $0x718] sm:%s687] %v1150
                %v1152 = vld [vmem:[%s694 + $0x23a0] sm:%s687]
                %1153 = vst [vmem:[%s695 + $0x720] sm:%s687] %v1152
                %v1154 = vld [vmem:[%s694 + $0x23c8] sm:%s687]
                %1155 = vst [vmem:[%s695 + $0x728] sm:%s687] %v1154
                %v1156 = vld [vmem:[%s694 + $0x23f0] sm:%s687]
                %1157 = vst [vmem:[%s695 + $0x730] sm:%s687] %v1156
                %v1158 = vld [vmem:[%s694 + $0x2418] sm:%s687]
                %1159 = vst [vmem:[%s695 + $0x738] sm:%s687] %v1158
                %v1160 = vld [vmem:[%s694 + $0x2440] sm:%s687]
                %1161 = vst [vmem:[%s695 + $0x740] sm:%s687] %v1160
                %v1162 = vld [vmem:[%s694 + $0x2468] sm:%s687]
                %1163 = vst [vmem:[%s695 + $0x748] sm:%s687] %v1162
                %v1164 = vld [vmem:[%s694 + $0x2490] sm:%s687]
                %1165 = vst [vmem:[%s695 + $0x750] sm:%s687] %v1164
                %v1166 = vld [vmem:[%s694 + $0x24b8] sm:%s687]
                %1167 = vst [vmem:[%s695 + $0x758] sm:%s687] %v1166
                %v1168 = vld [vmem:[%s694 + $0x24e0] sm:%s687]
                %1169 = vst [vmem:[%s695 + $0x760] sm:%s687] %v1168
                %v1170 = vld [vmem:[%s694 + $0x2508] sm:%s687]
                %1171 = vst [vmem:[%s695 + $0x768] sm:%s687] %v1170
                %v1172 = vld [vmem:[%s694 + $0x2530] sm:%s687]
                %1173 = vst [vmem:[%s695 + $0x770] sm:%s687] %v1172
                %v1174 = vld [vmem:[%s694 + $0x2558] sm:%s687]
                %1175 = vst [vmem:[%s695 + $0x778] sm:%s687] %v1174
              $region60: #{encoder_forward.3} parent=54 // loop_footer
                %s693 = sadd.s32 1, %s689
              $region61: #{encoder_forward.3} parent=54 // loop_footer_branch
                %688 = sbr.rel target = $region57
              $region62: #{encoder_forward.3} parent=54 // loop_exit
                _
            $region55: #{encoder_forward.3} parent=46 // pred_fallthru
              _
          $region47: #{encoder_forward.3} parent=42 // pred_fallthru
            _
          %1668 = vnop
        $region43: #{encoder_forward.3} parent=15 // pred_fallthru
          _
        // Predicated region
        $region78: #{encoder_forward.3} parent=15 // pred_check
          %p1669 = pneg %p107
        $region79: #{encoder_forward.3} parent=15 // pred_check_branch
          %1671 = sbr.rel (%p1669) target = $region81
        $region80: #{encoder_forward.3} parent=15 // pred_region
          %p1672 = scmp.lt.s32.totalorder %s20, 4
          %s1673 = scalar_select %p1672, %s20, 4
          %s1674 = scalar_lea.vmem %s2, %s1673
        $region81: #{encoder_forward.3} parent=15 // pred_fallthru
          _
      $region16: #{encoder_forward.3} parent=5 // pred_fallthru
        _
      %p1675 = scmp.le.s32.totalorder 1, %s12
      %p1676 = scmp.lt.s32.totalorder %s12, 26
      %p1677 = pnand %p1675, %p1676
      %p1678 = pneg %p1677
      // Predicated region
      $region82: #{encoder_forward.3} parent=5 // pred_check
        _
      $region83: #{encoder_forward.3} parent=5 // pred_check_branch
        %1680 = sbr.rel (%p1677) target = $region85
      $region84: #{encoder_forward.3} parent=5 // pred_region
        %s1681 = ssub.s32 %s12, 1
        %s1682 = sand.u32 %s46, 1
        %s1683 = sand.u32 %s46, 1
        %s1684 = smul.addr %s1683, 1920
        %s1685 = scalar_lea.vmem [#allocation3], %s1684
        // Predicated region
        $region86: #{encoder_forward.3} parent=84 // pred_check
          %p1686 = pneg %p59
        $region87: #{encoder_forward.3} parent=84 // pred_check_branch
          %1688 = sbr.rel (%p1686) target = $region89
        $region88: #{encoder_forward.3} parent=84 // pred_region
          _
        $region89: #{encoder_forward.3} parent=84 // pred_fallthru
          _
        %s1689 = sand.u32 %s74, 1
        %s1690 = sand.u32 %s74, 1
        %s1691 = smul.addr %s1690, 1920
        %s1692 = scalar_lea.vmem [#allocation4], %s1691
        // Predicated region
        $region90: #{encoder_forward.3} parent=84 // pred_check
          %p1693 = pneg %p87
        $region91: #{encoder_forward.3} parent=84 // pred_check_branch
          %1695 = sbr.rel (%p1693) target = $region93
        $region92: #{encoder_forward.3} parent=84 // pred_region
          _
        $region93: #{encoder_forward.3} parent=84 // pred_fallthru
          _
        %s1696 = sand.u32 %s46, 1
        %s1697 = sand.u32 %s46, 1
        %s1698 = smul.addr %s1697, 1920
        %s1699 = scalar_lea.vmem [#allocation3], %s1698
        %p1700 = pneg %p59
        %p1701 = pneg %p56
        %s1702 = sand.u32 %s74, 1
        %s1703 = sand.u32 %s74, 1
        %s1704 = smul.addr %s1703, 1920
        %s1705 = scalar_lea.vmem [#allocation4], %s1704
        %p1706 = pneg %p87
        %p1707 = pneg %p84
        %p1708 = scmp.lt.s32.totalorder %s23, 4
        %s1709 = scalar_select %p1708, %s23, 4
        %s1710 = scalar_lea.vmem %s2, %s1709
        %p1711 = pneg %p113
        %p1712 = pneg %p110
        %p1713 = pneg %p141
        %p1714 = pneg %p138
        %s1715 = sand.u32 %s128, 1
        %s1716 = scalar_lea.sflag [#allocation6], %s1715
        %s1717 = sand.u32 %s128, 1
        %s1718 = smul.addr %s1717, 128
        %s1719 = scalar_lea.vmem [#allocation5], %s1718
        %s1720 = smul.u32 16, %s22
        %s1721 = smul.u32 15, %s24
        %s1722 = smul.u32 240, %s24
        %p1723 = scmp.lt.s32.totalorder %s23, 4
        %s1724 = scalar_select %p1723, %s23, 4
        %s1725 = scalar_lea.vmem %s2, %s1724
        %s1726 = smul.u32 16, %s22
        %p1727 = scmp.eq.s32.totalorder %s24, 0
        // Predicated region
        $region94: #{encoder_forward.3} parent=84 // pred_check
          %p1728 = pneg %p1727
        $region95: #{encoder_forward.3} parent=84 // pred_check_branch
          %1730 = sbr.rel (%p1728) target = $region97
        $region96: #{encoder_forward.3} parent=84 // pred_region
          %1731 = vst [vmem:[#allocation2] sm:$0xff] 0.0
          %1732 = vst [vmem:[#allocation2 + $0x8] sm:$0xff] 0.0
          %1733 = vst [vmem:[#allocation2 + $0x10] sm:$0xff] 0.0
          %1734 = vst [vmem:[#allocation2 + $0x18] sm:$0xff] 0.0
          %1735 = vst [vmem:[#allocation2 + $0x20] sm:$0xff] 0.0
          %1736 = vst [vmem:[#allocation2 + $0x28] sm:$0xff] 0.0
          %1737 = vst [vmem:[#allocation2 + $0x30] sm:$0xff] 0.0
          %1738 = vst [vmem:[#allocation2 + $0x38] sm:$0xff] 0.0
          %1739 = vst [vmem:[#allocation2 + $0x40] sm:$0xff] 0.0
          %1740 = vst [vmem:[#allocation2 + $0x48] sm:$0xff] 0.0
          %1741 = vst [vmem:[#allocation2 + $0x50] sm:$0xff] 0.0
          %1742 = vst [vmem:[#allocation2 + $0x58] sm:$0xff] 0.0
          %1743 = vst [vmem:[#allocation2 + $0x60] sm:$0xff] 0.0
          %1744 = vst [vmem:[#allocation2 + $0x68] sm:$0xff] 0.0
          %1745 = vst [vmem:[#allocation2 + $0x70] sm:$0xff] 0.0
          %1746 = vst [vmem:[#allocation2 + $0x78] sm:$0xff] 0.0
        $region97: #{encoder_forward.3} parent=84 // pred_fallthru
          _
        %v1747 = vld [vmem:[#allocation2] sm:$0xff]
        %v1748 = vld [vmem:[#allocation2 + $0x8] sm:$0xff]
        %v1749 = vld [vmem:[#allocation2 + $0x10] sm:$0xff]
        %v1750 = vld [vmem:[#allocation2 + $0x18] sm:$0xff]
        %v1751 = vld [vmem:[#allocation2 + $0x20] sm:$0xff]
        %v1752 = vld [vmem:[#allocation2 + $0x28] sm:$0xff]
        %v1753 = vld [vmem:[#allocation2 + $0x30] sm:$0xff]
        %v1754 = vld [vmem:[#allocation2 + $0x38] sm:$0xff]
        %v1755 = vld [vmem:[#allocation2 + $0x40] sm:$0xff]
        %v1756 = vld [vmem:[#allocation2 + $0x48] sm:$0xff]
        %v1757 = vld [vmem:[#allocation2 + $0x50] sm:$0xff]
        %v1758 = vld [vmem:[#allocation2 + $0x58] sm:$0xff]
        %v1759 = vld [vmem:[#allocation2 + $0x60] sm:$0xff]
        %v1760 = vld [vmem:[#allocation2 + $0x68] sm:$0xff]
        %v1761 = vld [vmem:[#allocation2 + $0x70] sm:$0xff]
        %v1762 = vld [vmem:[#allocation2 + $0x78] sm:$0xff]
        %v1763 = vld [vmem:[%s1685] sm:$0xff]
        %v1764 = vld [vmem:[%s1685 + $0x8] sm:$0xff]
        %v1765 = vld [vmem:[%s1685 + $0x10] sm:$0xff]
        %v1766 = vld [vmem:[%s1685 + $0x18] sm:$0xff]
        %v1767 = vld [vmem:[%s1685 + $0x20] sm:$0xff]
        %v1768 = vld [vmem:[%s1685 + $0x28] sm:$0xff]
        %v1769 = vld [vmem:[%s1685 + $0x30] sm:$0xff]
        %v1770 = vld [vmem:[%s1685 + $0x38] sm:$0xff]
        %v1771 = vld [vmem:[%s1685 + $0x40] sm:$0xff]
        %v1772 = vld [vmem:[%s1685 + $0x48] sm:$0xff]
        %v1773 = vld [vmem:[%s1685 + $0x50] sm:$0xff]
        %v1774 = vld [vmem:[%s1685 + $0x58] sm:$0xff]
        %v1775 = vld [vmem:[%s1685 + $0x60] sm:$0xff]
        %v1776 = vld [vmem:[%s1685 + $0x68] sm:$0xff]
        %v1777 = vld [vmem:[%s1685 + $0x70] sm:$0xff]
        %v1778 = vld [vmem:[%s1685 + $0x78] sm:$0xff]
        %v1779 = vld [vmem:[%s1685 + $0x80] sm:$0xff]
        %v1780 = vld [vmem:[%s1685 + $0x88] sm:$0xff]
        %v1781 = vld [vmem:[%s1685 + $0x90] sm:$0xff]
        %v1782 = vld [vmem:[%s1685 + $0x98] sm:$0xff]
        %v1783 = vld [vmem:[%s1685 + $0xa0] sm:$0xff]
        %v1784 = vld [vmem:[%s1685 + $0xa8] sm:$0xff]
        %v1785 = vld [vmem:[%s1685 + $0xb0] sm:$0xff]
        %v1786 = vld [vmem:[%s1685 + $0xb8] sm:$0xff]
        %v1787 = vld [vmem:[%s1685 + $0xc0] sm:$0xff]
        %v1788 = vld [vmem:[%s1685 + $0xc8] sm:$0xff]
        %v1789 = vld [vmem:[%s1685 + $0xd0] sm:$0xff]
        %v1790 = vld [vmem:[%s1685 + $0xd8] sm:$0xff]
        %v1791 = vld [vmem:[%s1685 + $0xe0] sm:$0xff]
        %v1792 = vld [vmem:[%s1685 + $0xe8] sm:$0xff]
        %v1793 = vld [vmem:[%s1685 + $0xf0] sm:$0xff]
        %v1794 = vld [vmem:[%s1685 + $0xf8] sm:$0xff]
        %v1795 = vld [vmem:[%s1685 + $0x100] sm:$0xff]
        %v1796 = vld [vmem:[%s1685 + $0x108] sm:$0xff]
        %v1797 = vld [vmem:[%s1685 + $0x110] sm:$0xff]
        %v1798 = vld [vmem:[%s1685 + $0x118] sm:$0xff]
        %v1799 = vld [vmem:[%s1685 + $0x120] sm:$0xff]
        %v1800 = vld [vmem:[%s1685 + $0x128] sm:$0xff]
        %v1801 = vld [vmem:[%s1685 + $0x130] sm:$0xff]
        %v1802 = vld [vmem:[%s1685 + $0x138] sm:$0xff]
        %v1803 = vld [vmem:[%s1685 + $0x140] sm:$0xff]
        %v1804 = vld [vmem:[%s1685 + $0x148] sm:$0xff]
        %v1805 = vld [vmem:[%s1685 + $0x150] sm:$0xff]
        %v1806 = vld [vmem:[%s1685 + $0x158] sm:$0xff]
        %v1807 = vld [vmem:[%s1685 + $0x160] sm:$0xff]
        %v1808 = vld [vmem:[%s1685 + $0x168] sm:$0xff]
        %v1809 = vld [vmem:[%s1685 + $0x170] sm:$0xff]
        %v1810 = vld [vmem:[%s1685 + $0x178] sm:$0xff]
        %v1811 = vld [vmem:[%s1685 + $0x180] sm:$0xff]
        %v1812 = vld [vmem:[%s1685 + $0x188] sm:$0xff]
        %v1813 = vld [vmem:[%s1685 + $0x190] sm:$0xff]
        %v1814 = vld [vmem:[%s1685 + $0x198] sm:$0xff]
        %v1815 = vld [vmem:[%s1685 + $0x1a0] sm:$0xff]
        %v1816 = vld [vmem:[%s1685 + $0x1a8] sm:$0xff]
        %v1817 = vld [vmem:[%s1685 + $0x1b0] sm:$0xff]
        %v1818 = vld [vmem:[%s1685 + $0x1b8] sm:$0xff]
        %v1819 = vld [vmem:[%s1685 + $0x1c0] sm:$0xff]
        %v1820 = vld [vmem:[%s1685 + $0x1c8] sm:$0xff]
        %v1821 = vld [vmem:[%s1685 + $0x1d0] sm:$0xff]
        %v1822 = vld [vmem:[%s1685 + $0x1d8] sm:$0xff]
        %v1823 = vld [vmem:[%s1685 + $0x1e0] sm:$0xff]
        %v1824 = vld [vmem:[%s1685 + $0x1e8] sm:$0xff]
        %v1825 = vld [vmem:[%s1685 + $0x1f0] sm:$0xff]
        %v1826 = vld [vmem:[%s1685 + $0x1f8] sm:$0xff]
        %v1827 = vld [vmem:[%s1685 + $0x200] sm:$0xff]
        %v1828 = vld [vmem:[%s1685 + $0x208] sm:$0xff]
        %v1829 = vld [vmem:[%s1685 + $0x210] sm:$0xff]
        %v1830 = vld [vmem:[%s1685 + $0x218] sm:$0xff]
        %v1831 = vld [vmem:[%s1685 + $0x220] sm:$0xff]
        %v1832 = vld [vmem:[%s1685 + $0x228] sm:$0xff]
        %v1833 = vld [vmem:[%s1685 + $0x230] sm:$0xff]
        %v1834 = vld [vmem:[%s1685 + $0x238] sm:$0xff]
        %v1835 = vld [vmem:[%s1685 + $0x240] sm:$0xff]
        %v1836 = vld [vmem:[%s1685 + $0x248] sm:$0xff]
        %v1837 = vld [vmem:[%s1685 + $0x250] sm:$0xff]
        %v1838 = vld [vmem:[%s1685 + $0x258] sm:$0xff]
        %v1839 = vld [vmem:[%s1685 + $0x260] sm:$0xff]
        %v1840 = vld [vmem:[%s1685 + $0x268] sm:$0xff]
        %v1841 = vld [vmem:[%s1685 + $0x270] sm:$0xff]
        %v1842 = vld [vmem:[%s1685 + $0x278] sm:$0xff]
        %v1843 = vld [vmem:[%s1685 + $0x280] sm:$0xff]
        %v1844 = vld [vmem:[%s1685 + $0x288] sm:$0xff]
        %v1845 = vld [vmem:[%s1685 + $0x290] sm:$0xff]
        %v1846 = vld [vmem:[%s1685 + $0x298] sm:$0xff]
        %v1847 = vld [vmem:[%s1685 + $0x2a0] sm:$0xff]
        %v1848 = vld [vmem:[%s1685 + $0x2a8] sm:$0xff]
        %v1849 = vld [vmem:[%s1685 + $0x2b0] sm:$0xff]
        %v1850 = vld [vmem:[%s1685 + $0x2b8] sm:$0xff]
        %v1851 = vld [vmem:[%s1685 + $0x2c0] sm:$0xff]
        %v1852 = vld [vmem:[%s1685 + $0x2c8] sm:$0xff]
        %v1853 = vld [vmem:[%s1685 + $0x2d0] sm:$0xff]
        %v1854 = vld [vmem:[%s1685 + $0x2d8] sm:$0xff]
        %v1855 = vld [vmem:[%s1685 + $0x2e0] sm:$0xff]
        %v1856 = vld [vmem:[%s1685 + $0x2e8] sm:$0xff]
        %v1857 = vld [vmem:[%s1685 + $0x2f0] sm:$0xff]
        %v1858 = vld [vmem:[%s1685 + $0x2f8] sm:$0xff]
        %v1859 = vld [vmem:[%s1685 + $0x300] sm:$0xff]
        %v1860 = vld [vmem:[%s1685 + $0x308] sm:$0xff]
        %v1861 = vld [vmem:[%s1685 + $0x310] sm:$0xff]
        %v1862 = vld [vmem:[%s1685 + $0x318] sm:$0xff]
        %v1863 = vld [vmem:[%s1685 + $0x320] sm:$0xff]
        %v1864 = vld [vmem:[%s1685 + $0x328] sm:$0xff]
        %v1865 = vld [vmem:[%s1685 + $0x330] sm:$0xff]
        %v1866 = vld [vmem:[%s1685 + $0x338] sm:$0xff]
        %v1867 = vld [vmem:[%s1685 + $0x340] sm:$0xff]
        %v1868 = vld [vmem:[%s1685 + $0x348] sm:$0xff]
        %v1869 = vld [vmem:[%s1685 + $0x350] sm:$0xff]
        %v1870 = vld [vmem:[%s1685 + $0x358] sm:$0xff]
        %v1871 = vld [vmem:[%s1685 + $0x360] sm:$0xff]
        %v1872 = vld [vmem:[%s1685 + $0x368] sm:$0xff]
        %v1873 = vld [vmem:[%s1685 + $0x370] sm:$0xff]
        %v1874 = vld [vmem:[%s1685 + $0x378] sm:$0xff]
        %v1875 = vld [vmem:[%s1685 + $0x380] sm:$0xff]
        %v1876 = vld [vmem:[%s1685 + $0x388] sm:$0xff]
        %v1877 = vld [vmem:[%s1685 + $0x390] sm:$0xff]
        %v1878 = vld [vmem:[%s1685 + $0x398] sm:$0xff]
        %v1879 = vld [vmem:[%s1685 + $0x3a0] sm:$0xff]
        %v1880 = vld [vmem:[%s1685 + $0x3a8] sm:$0xff]
        %v1881 = vld [vmem:[%s1685 + $0x3b0] sm:$0xff]
        %v1882 = vld [vmem:[%s1685 + $0x3b8] sm:$0xff]
        %v1883 = vld [vmem:[%s1685 + $0x3c0] sm:$0xff]
        %v1884 = vld [vmem:[%s1685 + $0x3c8] sm:$0xff]
        %v1885 = vld [vmem:[%s1685 + $0x3d0] sm:$0xff]
        %v1886 = vld [vmem:[%s1685 + $0x3d8] sm:$0xff]
        %v1887 = vld [vmem:[%s1685 + $0x3e0] sm:$0xff]
        %v1888 = vld [vmem:[%s1685 + $0x3e8] sm:$0xff]
        %v1889 = vld [vmem:[%s1685 + $0x3f0] sm:$0xff]
        %v1890 = vld [vmem:[%s1685 + $0x3f8] sm:$0xff]
        %v1891 = vld [vmem:[%s1685 + $0x400] sm:$0xff]
        %v1892 = vld [vmem:[%s1685 + $0x408] sm:$0xff]
        %v1893 = vld [vmem:[%s1685 + $0x410] sm:$0xff]
        %v1894 = vld [vmem:[%s1685 + $0x418] sm:$0xff]
        %v1895 = vld [vmem:[%s1685 + $0x420] sm:$0xff]
        %v1896 = vld [vmem:[%s1685 + $0x428] sm:$0xff]
        %v1897 = vld [vmem:[%s1685 + $0x430] sm:$0xff]
        %v1898 = vld [vmem:[%s1685 + $0x438] sm:$0xff]
        %v1899 = vld [vmem:[%s1685 + $0x440] sm:$0xff]
        %v1900 = vld [vmem:[%s1685 + $0x448] sm:$0xff]
        %v1901 = vld [vmem:[%s1685 + $0x450] sm:$0xff]
        %v1902 = vld [vmem:[%s1685 + $0x458] sm:$0xff]
        %v1903 = vld [vmem:[%s1685 + $0x460] sm:$0xff]
        %v1904 = vld [vmem:[%s1685 + $0x468] sm:$0xff]
        %v1905 = vld [vmem:[%s1685 + $0x470] sm:$0xff]
        %v1906 = vld [vmem:[%s1685 + $0x478] sm:$0xff]
        %v1907 = vld [vmem:[%s1685 + $0x480] sm:$0xff]
        %v1908 = vld [vmem:[%s1685 + $0x488] sm:$0xff]
        %v1909 = vld [vmem:[%s1685 + $0x490] sm:$0xff]
        %v1910 = vld [vmem:[%s1685 + $0x498] sm:$0xff]
        %v1911 = vld [vmem:[%s1685 + $0x4a0] sm:$0xff]
        %v1912 = vld [vmem:[%s1685 + $0x4a8] sm:$0xff]
        %v1913 = vld [vmem:[%s1685 + $0x4b0] sm:$0xff]
        %v1914 = vld [vmem:[%s1685 + $0x4b8] sm:$0xff]
        %v1915 = vld [vmem:[%s1685 + $0x4c0] sm:$0xff]
        %v1916 = vld [vmem:[%s1685 + $0x4c8] sm:$0xff]
        %v1917 = vld [vmem:[%s1685 + $0x4d0] sm:$0xff]
        %v1918 = vld [vmem:[%s1685 + $0x4d8] sm:$0xff]
        %v1919 = vld [vmem:[%s1685 + $0x4e0] sm:$0xff]
        %v1920 = vld [vmem:[%s1685 + $0x4e8] sm:$0xff]
        %v1921 = vld [vmem:[%s1685 + $0x4f0] sm:$0xff]
        %v1922 = vld [vmem:[%s1685 + $0x4f8] sm:$0xff]
        %v1923 = vld [vmem:[%s1685 + $0x500] sm:$0xff]
        %v1924 = vld [vmem:[%s1685 + $0x508] sm:$0xff]
        %v1925 = vld [vmem:[%s1685 + $0x510] sm:$0xff]
        %v1926 = vld [vmem:[%s1685 + $0x518] sm:$0xff]
        %v1927 = vld [vmem:[%s1685 + $0x520] sm:$0xff]
        %v1928 = vld [vmem:[%s1685 + $0x528] sm:$0xff]
        %v1929 = vld [vmem:[%s1685 + $0x530] sm:$0xff]
        %v1930 = vld [vmem:[%s1685 + $0x538] sm:$0xff]
        %v1931 = vld [vmem:[%s1685 + $0x540] sm:$0xff]
        %v1932 = vld [vmem:[%s1685 + $0x548] sm:$0xff]
        %v1933 = vld [vmem:[%s1685 + $0x550] sm:$0xff]
        %v1934 = vld [vmem:[%s1685 + $0x558] sm:$0xff]
        %v1935 = vld [vmem:[%s1685 + $0x560] sm:$0xff]
        %v1936 = vld [vmem:[%s1685 + $0x568] sm:$0xff]
        %v1937 = vld [vmem:[%s1685 + $0x570] sm:$0xff]
        %v1938 = vld [vmem:[%s1685 + $0x578] sm:$0xff]
        %v1939 = vld [vmem:[%s1685 + $0x580] sm:$0xff]
        %v1940 = vld [vmem:[%s1685 + $0x588] sm:$0xff]
        %v1941 = vld [vmem:[%s1685 + $0x590] sm:$0xff]
        %v1942 = vld [vmem:[%s1685 + $0x598] sm:$0xff]
        %v1943 = vld [vmem:[%s1685 + $0x5a0] sm:$0xff]
        %v1944 = vld [vmem:[%s1685 + $0x5a8] sm:$0xff]
        %v1945 = vld [vmem:[%s1685 + $0x5b0] sm:$0xff]
        %v1946 = vld [vmem:[%s1685 + $0x5b8] sm:$0xff]
        %v1947 = vld [vmem:[%s1685 + $0x5c0] sm:$0xff]
        %v1948 = vld [vmem:[%s1685 + $0x5c8] sm:$0xff]
        %v1949 = vld [vmem:[%s1685 + $0x5d0] sm:$0xff]
        %v1950 = vld [vmem:[%s1685 + $0x5d8] sm:$0xff]
        %v1951 = vld [vmem:[%s1685 + $0x5e0] sm:$0xff]
        %v1952 = vld [vmem:[%s1685 + $0x5e8] sm:$0xff]
        %v1953 = vld [vmem:[%s1685 + $0x5f0] sm:$0xff]
        %v1954 = vld [vmem:[%s1685 + $0x5f8] sm:$0xff]
        %v1955 = vld [vmem:[%s1685 + $0x600] sm:$0xff]
        %v1956 = vld [vmem:[%s1685 + $0x608] sm:$0xff]
        %v1957 = vld [vmem:[%s1685 + $0x610] sm:$0xff]
        %v1958 = vld [vmem:[%s1685 + $0x618] sm:$0xff]
        %v1959 = vld [vmem:[%s1685 + $0x620] sm:$0xff]
        %v1960 = vld [vmem:[%s1685 + $0x628] sm:$0xff]
        %v1961 = vld [vmem:[%s1685 + $0x630] sm:$0xff]
        %v1962 = vld [vmem:[%s1685 + $0x638] sm:$0xff]
        %v1963 = vld [vmem:[%s1685 + $0x640] sm:$0xff]
        %v1964 = vld [vmem:[%s1685 + $0x648] sm:$0xff]
        %v1965 = vld [vmem:[%s1685 + $0x650] sm:$0xff]
        %v1966 = vld [vmem:[%s1685 + $0x658] sm:$0xff]
        %v1967 = vld [vmem:[%s1685 + $0x660] sm:$0xff]
        %v1968 = vld [vmem:[%s1685 + $0x668] sm:$0xff]
        %v1969 = vld [vmem:[%s1685 + $0x670] sm:$0xff]
        %v1970 = vld [vmem:[%s1685 + $0x678] sm:$0xff]
        %v1971 = vld [vmem:[%s1685 + $0x680] sm:$0xff]
        %v1972 = vld [vmem:[%s1685 + $0x688] sm:$0xff]
        %v1973 = vld [vmem:[%s1685 + $0x690] sm:$0xff]
        %v1974 = vld [vmem:[%s1685 + $0x698] sm:$0xff]
        %v1975 = vld [vmem:[%s1685 + $0x6a0] sm:$0xff]
        %v1976 = vld [vmem:[%s1685 + $0x6a8] sm:$0xff]
        %v1977 = vld [vmem:[%s1685 + $0x6b0] sm:$0xff]
        %v1978 = vld [vmem:[%s1685 + $0x6b8] sm:$0xff]
        %v1979 = vld [vmem:[%s1685 + $0x6c0] sm:$0xff]
        %v1980 = vld [vmem:[%s1685 + $0x6c8] sm:$0xff]
        %v1981 = vld [vmem:[%s1685 + $0x6d0] sm:$0xff]
        %v1982 = vld [vmem:[%s1685 + $0x6d8] sm:$0xff]
        %v1983 = vld [vmem:[%s1685 + $0x6e0] sm:$0xff]
        %v1984 = vld [vmem:[%s1685 + $0x6e8] sm:$0xff]
        %v1985 = vld [vmem:[%s1685 + $0x6f0] sm:$0xff]
        %v1986 = vld [vmem:[%s1685 + $0x6f8] sm:$0xff]
        %v1987 = vld [vmem:[%s1685 + $0x700] sm:$0xff]
        %v1988 = vld [vmem:[%s1685 + $0x708] sm:$0xff]
        %v1989 = vld [vmem:[%s1685 + $0x710] sm:$0xff]
        %v1990 = vld [vmem:[%s1685 + $0x718] sm:$0xff]
        %v1991 = vld [vmem:[%s1685 + $0x720] sm:$0xff]
        %v1992 = vld [vmem:[%s1685 + $0x728] sm:$0xff]
        %v1993 = vld [vmem:[%s1685 + $0x730] sm:$0xff]
        %v1994 = vld [vmem:[%s1685 + $0x738] sm:$0xff]
        %v1995 = vld [vmem:[%s1685 + $0x740] sm:$0xff]
        %v1996 = vld [vmem:[%s1685 + $0x748] sm:$0xff]
        %v1997 = vld [vmem:[%s1685 + $0x750] sm:$0xff]
        %v1998 = vld [vmem:[%s1685 + $0x758] sm:$0xff]
        %v1999 = vld [vmem:[%s1685 + $0x760] sm:$0xff]
        %v2000 = vld [vmem:[%s1685 + $0x768] sm:$0xff]
        %v2001 = vld [vmem:[%s1685 + $0x770] sm:$0xff]
        %v2002 = vld [vmem:[%s1685 + $0x778] sm:$0xff]
        %v2003 = vld [vmem:[%s1692] sm:$0xff]
        %v2004 = vld [vmem:[%s1692 + $0x8] sm:$0xff]
        %v2005 = vld [vmem:[%s1692 + $0x10] sm:$0xff]
        %v2006 = vld [vmem:[%s1692 + $0x18] sm:$0xff]
        %v2007 = vld [vmem:[%s1692 + $0x20] sm:$0xff]
        %v2008 = vld [vmem:[%s1692 + $0x28] sm:$0xff]
        %v2009 = vld [vmem:[%s1692 + $0x30] sm:$0xff]
        %v2010 = vld [vmem:[%s1692 + $0x38] sm:$0xff]
        %v2011 = vld [vmem:[%s1692 + $0x40] sm:$0xff]
        %v2012 = vld [vmem:[%s1692 + $0x48] sm:$0xff]
        %v2013 = vld [vmem:[%s1692 + $0x50] sm:$0xff]
        %v2014 = vld [vmem:[%s1692 + $0x58] sm:$0xff]
        %v2015 = vld [vmem:[%s1692 + $0x60] sm:$0xff]
        %v2016 = vld [vmem:[%s1692 + $0x68] sm:$0xff]
        %v2017 = vld [vmem:[%s1692 + $0x70] sm:$0xff]
        %v2018 = vld [vmem:[%s1692 + $0x78] sm:$0xff]
        %v2019 = vld [vmem:[%s1692 + $0x80] sm:$0xff]
        %v2020 = vld [vmem:[%s1692 + $0x88] sm:$0xff]
        %v2021 = vld [vmem:[%s1692 + $0x90] sm:$0xff]
        %v2022 = vld [vmem:[%s1692 + $0x98] sm:$0xff]
        %v2023 = vld [vmem:[%s1692 + $0xa0] sm:$0xff]
        %v2024 = vld [vmem:[%s1692 + $0xa8] sm:$0xff]
        %v2025 = vld [vmem:[%s1692 + $0xb0] sm:$0xff]
        %v2026 = vld [vmem:[%s1692 + $0xb8] sm:$0xff]
        %v2027 = vld [vmem:[%s1692 + $0xc0] sm:$0xff]
        %v2028 = vld [vmem:[%s1692 + $0xc8] sm:$0xff]
        %v2029 = vld [vmem:[%s1692 + $0xd0] sm:$0xff]
        %v2030 = vld [vmem:[%s1692 + $0xd8] sm:$0xff]
        %v2031 = vld [vmem:[%s1692 + $0xe0] sm:$0xff]
        %v2032 = vld [vmem:[%s1692 + $0xe8] sm:$0xff]
        %v2033 = vld [vmem:[%s1692 + $0xf0] sm:$0xff]
        %v2034 = vld [vmem:[%s1692 + $0xf8] sm:$0xff]
        %v2035 = vld [vmem:[%s1692 + $0x100] sm:$0xff]
        %v2036 = vld [vmem:[%s1692 + $0x108] sm:$0xff]
        %v2037 = vld [vmem:[%s1692 + $0x110] sm:$0xff]
        %v2038 = vld [vmem:[%s1692 + $0x118] sm:$0xff]
        %v2039 = vld [vmem:[%s1692 + $0x120] sm:$0xff]
        %v2040 = vld [vmem:[%s1692 + $0x128] sm:$0xff]
        %v2041 = vld [vmem:[%s1692 + $0x130] sm:$0xff]
        %v2042 = vld [vmem:[%s1692 + $0x138] sm:$0xff]
        %v2043 = vld [vmem:[%s1692 + $0x140] sm:$0xff]
        %v2044 = vld [vmem:[%s1692 + $0x148] sm:$0xff]
        %v2045 = vld [vmem:[%s1692 + $0x150] sm:$0xff]
        %v2046 = vld [vmem:[%s1692 + $0x158] sm:$0xff]
        %v2047 = vld [vmem:[%s1692 + $0x160] sm:$0xff]
        %v2048 = vld [vmem:[%s1692 + $0x168] sm:$0xff]
        %v2049 = vld [vmem:[%s1692 + $0x170] sm:$0xff]
        %v2050 = vld [vmem:[%s1692 + $0x178] sm:$0xff]
        %v2051 = vld [vmem:[%s1692 + $0x180] sm:$0xff]
        %v2052 = vld [vmem:[%s1692 + $0x188] sm:$0xff]
        %v2053 = vld [vmem:[%s1692 + $0x190] sm:$0xff]
        %v2054 = vld [vmem:[%s1692 + $0x198] sm:$0xff]
        %v2055 = vld [vmem:[%s1692 + $0x1a0] sm:$0xff]
        %v2056 = vld [vmem:[%s1692 + $0x1a8] sm:$0xff]
        %v2057 = vld [vmem:[%s1692 + $0x1b0] sm:$0xff]
        %v2058 = vld [vmem:[%s1692 + $0x1b8] sm:$0xff]
        %v2059 = vld [vmem:[%s1692 + $0x1c0] sm:$0xff]
        %v2060 = vld [vmem:[%s1692 + $0x1c8] sm:$0xff]
        %v2061 = vld [vmem:[%s1692 + $0x1d0] sm:$0xff]
        %v2062 = vld [vmem:[%s1692 + $0x1d8] sm:$0xff]
        %v2063 = vld [vmem:[%s1692 + $0x1e0] sm:$0xff]
        %v2064 = vld [vmem:[%s1692 + $0x1e8] sm:$0xff]
        %v2065 = vld [vmem:[%s1692 + $0x1f0] sm:$0xff]
        %v2066 = vld [vmem:[%s1692 + $0x1f8] sm:$0xff]
        %v2067 = vld [vmem:[%s1692 + $0x200] sm:$0xff]
        %v2068 = vld [vmem:[%s1692 + $0x208] sm:$0xff]
        %v2069 = vld [vmem:[%s1692 + $0x210] sm:$0xff]
        %v2070 = vld [vmem:[%s1692 + $0x218] sm:$0xff]
        %v2071 = vld [vmem:[%s1692 + $0x220] sm:$0xff]
        %v2072 = vld [vmem:[%s1692 + $0x228] sm:$0xff]
        %v2073 = vld [vmem:[%s1692 + $0x230] sm:$0xff]
        %v2074 = vld [vmem:[%s1692 + $0x238] sm:$0xff]
        %v2075 = vld [vmem:[%s1692 + $0x240] sm:$0xff]
        %v2076 = vld [vmem:[%s1692 + $0x248] sm:$0xff]
        %v2077 = vld [vmem:[%s1692 + $0x250] sm:$0xff]
        %v2078 = vld [vmem:[%s1692 + $0x258] sm:$0xff]
        %v2079 = vld [vmem:[%s1692 + $0x260] sm:$0xff]
        %v2080 = vld [vmem:[%s1692 + $0x268] sm:$0xff]
        %v2081 = vld [vmem:[%s1692 + $0x270] sm:$0xff]
        %v2082 = vld [vmem:[%s1692 + $0x278] sm:$0xff]
        %v2083 = vld [vmem:[%s1692 + $0x280] sm:$0xff]
        %v2084 = vld [vmem:[%s1692 + $0x288] sm:$0xff]
        %v2085 = vld [vmem:[%s1692 + $0x290] sm:$0xff]
        %v2086 = vld [vmem:[%s1692 + $0x298] sm:$0xff]
        %v2087 = vld [vmem:[%s1692 + $0x2a0] sm:$0xff]
        %v2088 = vld [vmem:[%s1692 + $0x2a8] sm:$0xff]
        %v2089 = vld [vmem:[%s1692 + $0x2b0] sm:$0xff]
        %v2090 = vld [vmem:[%s1692 + $0x2b8] sm:$0xff]
        %v2091 = vld [vmem:[%s1692 + $0x2c0] sm:$0xff]
        %v2092 = vld [vmem:[%s1692 + $0x2c8] sm:$0xff]
        %v2093 = vld [vmem:[%s1692 + $0x2d0] sm:$0xff]
        %v2094 = vld [vmem:[%s1692 + $0x2d8] sm:$0xff]
        %v2095 = vld [vmem:[%s1692 + $0x2e0] sm:$0xff]
        %v2096 = vld [vmem:[%s1692 + $0x2e8] sm:$0xff]
        %v2097 = vld [vmem:[%s1692 + $0x2f0] sm:$0xff]
        %v2098 = vld [vmem:[%s1692 + $0x2f8] sm:$0xff]
        %v2099 = vld [vmem:[%s1692 + $0x300] sm:$0xff]
        %v2100 = vld [vmem:[%s1692 + $0x308] sm:$0xff]
        %v2101 = vld [vmem:[%s1692 + $0x310] sm:$0xff]
        %v2102 = vld [vmem:[%s1692 + $0x318] sm:$0xff]
        %v2103 = vld [vmem:[%s1692 + $0x320] sm:$0xff]
        %v2104 = vld [vmem:[%s1692 + $0x328] sm:$0xff]
        %v2105 = vld [vmem:[%s1692 + $0x330] sm:$0xff]
        %v2106 = vld [vmem:[%s1692 + $0x338] sm:$0xff]
        %v2107 = vld [vmem:[%s1692 + $0x340] sm:$0xff]
        %v2108 = vld [vmem:[%s1692 + $0x348] sm:$0xff]
        %v2109 = vld [vmem:[%s1692 + $0x350] sm:$0xff]
        %v2110 = vld [vmem:[%s1692 + $0x358] sm:$0xff]
        %v2111 = vld [vmem:[%s1692 + $0x360] sm:$0xff]
        %v2112 = vld [vmem:[%s1692 + $0x368] sm:$0xff]
        %v2113 = vld [vmem:[%s1692 + $0x370] sm:$0xff]
        %v2114 = vld [vmem:[%s1692 + $0x378] sm:$0xff]
        %v2115 = vld [vmem:[%s1692 + $0x380] sm:$0xff]
        %v2116 = vld [vmem:[%s1692 + $0x388] sm:$0xff]
        %v2117 = vld [vmem:[%s1692 + $0x390] sm:$0xff]
        %v2118 = vld [vmem:[%s1692 + $0x398] sm:$0xff]
        %v2119 = vld [vmem:[%s1692 + $0x3a0] sm:$0xff]
        %v2120 = vld [vmem:[%s1692 + $0x3a8] sm:$0xff]
        %v2121 = vld [vmem:[%s1692 + $0x3b0] sm:$0xff]
        %v2122 = vld [vmem:[%s1692 + $0x3b8] sm:$0xff]
        %v2123 = vld [vmem:[%s1692 + $0x3c0] sm:$0xff]
        %v2124 = vld [vmem:[%s1692 + $0x3c8] sm:$0xff]
        %v2125 = vld [vmem:[%s1692 + $0x3d0] sm:$0xff]
        %v2126 = vld [vmem:[%s1692 + $0x3d8] sm:$0xff]
        %v2127 = vld [vmem:[%s1692 + $0x3e0] sm:$0xff]
        %v2128 = vld [vmem:[%s1692 + $0x3e8] sm:$0xff]
        %v2129 = vld [vmem:[%s1692 + $0x3f0] sm:$0xff]
        %v2130 = vld [vmem:[%s1692 + $0x3f8] sm:$0xff]
        %v2131 = vld [vmem:[%s1692 + $0x400] sm:$0xff]
        %v2132 = vld [vmem:[%s1692 + $0x408] sm:$0xff]
        %v2133 = vld [vmem:[%s1692 + $0x410] sm:$0xff]
        %v2134 = vld [vmem:[%s1692 + $0x418] sm:$0xff]
        %v2135 = vld [vmem:[%s1692 + $0x420] sm:$0xff]
        %v2136 = vld [vmem:[%s1692 + $0x428] sm:$0xff]
        %v2137 = vld [vmem:[%s1692 + $0x430] sm:$0xff]
        %v2138 = vld [vmem:[%s1692 + $0x438] sm:$0xff]
        %v2139 = vld [vmem:[%s1692 + $0x440] sm:$0xff]
        %v2140 = vld [vmem:[%s1692 + $0x448] sm:$0xff]
        %v2141 = vld [vmem:[%s1692 + $0x450] sm:$0xff]
        %v2142 = vld [vmem:[%s1692 + $0x458] sm:$0xff]
        %v2143 = vld [vmem:[%s1692 + $0x460] sm:$0xff]
        %v2144 = vld [vmem:[%s1692 + $0x468] sm:$0xff]
        %v2145 = vld [vmem:[%s1692 + $0x470] sm:$0xff]
        %v2146 = vld [vmem:[%s1692 + $0x478] sm:$0xff]
        %v2147 = vld [vmem:[%s1692 + $0x480] sm:$0xff]
        %v2148 = vld [vmem:[%s1692 + $0x488] sm:$0xff]
        %v2149 = vld [vmem:[%s1692 + $0x490] sm:$0xff]
        %v2150 = vld [vmem:[%s1692 + $0x498] sm:$0xff]
        %v2151 = vld [vmem:[%s1692 + $0x4a0] sm:$0xff]
        %v2152 = vld [vmem:[%s1692 + $0x4a8] sm:$0xff]
        %v2153 = vld [vmem:[%s1692 + $0x4b0] sm:$0xff]
        %v2154 = vld [vmem:[%s1692 + $0x4b8] sm:$0xff]
        %v2155 = vld [vmem:[%s1692 + $0x4c0] sm:$0xff]
        %v2156 = vld [vmem:[%s1692 + $0x4c8] sm:$0xff]
        %v2157 = vld [vmem:[%s1692 + $0x4d0] sm:$0xff]
        %v2158 = vld [vmem:[%s1692 + $0x4d8] sm:$0xff]
        %v2159 = vld [vmem:[%s1692 + $0x4e0] sm:$0xff]
        %v2160 = vld [vmem:[%s1692 + $0x4e8] sm:$0xff]
        %v2161 = vld [vmem:[%s1692 + $0x4f0] sm:$0xff]
        %v2162 = vld [vmem:[%s1692 + $0x4f8] sm:$0xff]
        %v2163 = vld [vmem:[%s1692 + $0x500] sm:$0xff]
        %v2164 = vld [vmem:[%s1692 + $0x508] sm:$0xff]
        %v2165 = vld [vmem:[%s1692 + $0x510] sm:$0xff]
        %v2166 = vld [vmem:[%s1692 + $0x518] sm:$0xff]
        %v2167 = vld [vmem:[%s1692 + $0x520] sm:$0xff]
        %v2168 = vld [vmem:[%s1692 + $0x528] sm:$0xff]
        %v2169 = vld [vmem:[%s1692 + $0x530] sm:$0xff]
        %v2170 = vld [vmem:[%s1692 + $0x538] sm:$0xff]
        %v2171 = vld [vmem:[%s1692 + $0x540] sm:$0xff]
        %v2172 = vld [vmem:[%s1692 + $0x548] sm:$0xff]
        %v2173 = vld [vmem:[%s1692 + $0x550] sm:$0xff]
        %v2174 = vld [vmem:[%s1692 + $0x558] sm:$0xff]
        %v2175 = vld [vmem:[%s1692 + $0x560] sm:$0xff]
        %v2176 = vld [vmem:[%s1692 + $0x568] sm:$0xff]
        %v2177 = vld [vmem:[%s1692 + $0x570] sm:$0xff]
        %v2178 = vld [vmem:[%s1692 + $0x578] sm:$0xff]
        %v2179 = vld [vmem:[%s1692 + $0x580] sm:$0xff]
        %v2180 = vld [vmem:[%s1692 + $0x588] sm:$0xff]
        %v2181 = vld [vmem:[%s1692 + $0x590] sm:$0xff]
        %v2182 = vld [vmem:[%s1692 + $0x598] sm:$0xff]
        %v2183 = vld [vmem:[%s1692 + $0x5a0] sm:$0xff]
        %v2184 = vld [vmem:[%s1692 + $0x5a8] sm:$0xff]
        %v2185 = vld [vmem:[%s1692 + $0x5b0] sm:$0xff]
        %v2186 = vld [vmem:[%s1692 + $0x5b8] sm:$0xff]
        %v2187 = vld [vmem:[%s1692 + $0x5c0] sm:$0xff]
        %v2188 = vld [vmem:[%s1692 + $0x5c8] sm:$0xff]
        %v2189 = vld [vmem:[%s1692 + $0x5d0] sm:$0xff]
        %v2190 = vld [vmem:[%s1692 + $0x5d8] sm:$0xff]
        %v2191 = vld [vmem:[%s1692 + $0x5e0] sm:$0xff]
        %v2192 = vld [vmem:[%s1692 + $0x5e8] sm:$0xff]
        %v2193 = vld [vmem:[%s1692 + $0x5f0] sm:$0xff]
        %v2194 = vld [vmem:[%s1692 + $0x5f8] sm:$0xff]
        %v2195 = vld [vmem:[%s1692 + $0x600] sm:$0xff]
        %v2196 = vld [vmem:[%s1692 + $0x608] sm:$0xff]
        %v2197 = vld [vmem:[%s1692 + $0x610] sm:$0xff]
        %v2198 = vld [vmem:[%s1692 + $0x618] sm:$0xff]
        %v2199 = vld [vmem:[%s1692 + $0x620] sm:$0xff]
        %v2200 = vld [vmem:[%s1692 + $0x628] sm:$0xff]
        %v2201 = vld [vmem:[%s1692 + $0x630] sm:$0xff]
        %v2202 = vld [vmem:[%s1692 + $0x638] sm:$0xff]
        %v2203 = vld [vmem:[%s1692 + $0x640] sm:$0xff]
        %v2204 = vld [vmem:[%s1692 + $0x648] sm:$0xff]
        %v2205 = vld [vmem:[%s1692 + $0x650] sm:$0xff]
        %v2206 = vld [vmem:[%s1692 + $0x658] sm:$0xff]
        %v2207 = vld [vmem:[%s1692 + $0x660] sm:$0xff]
        %v2208 = vld [vmem:[%s1692 + $0x668] sm:$0xff]
        %v2209 = vld [vmem:[%s1692 + $0x670] sm:$0xff]
        %v2210 = vld [vmem:[%s1692 + $0x678] sm:$0xff]
        %v2211 = vld [vmem:[%s1692 + $0x680] sm:$0xff]
        %v2212 = vld [vmem:[%s1692 + $0x688] sm:$0xff]
        %v2213 = vld [vmem:[%s1692 + $0x690] sm:$0xff]
        %v2214 = vld [vmem:[%s1692 + $0x698] sm:$0xff]
        %v2215 = vld [vmem:[%s1692 + $0x6a0] sm:$0xff]
        %v2216 = vld [vmem:[%s1692 + $0x6a8] sm:$0xff]
        %v2217 = vld [vmem:[%s1692 + $0x6b0] sm:$0xff]
        %v2218 = vld [vmem:[%s1692 + $0x6b8] sm:$0xff]
        %v2219 = vld [vmem:[%s1692 + $0x6c0] sm:$0xff]
        %v2220 = vld [vmem:[%s1692 + $0x6c8] sm:$0xff]
        %v2221 = vld [vmem:[%s1692 + $0x6d0] sm:$0xff]
        %v2222 = vld [vmem:[%s1692 + $0x6d8] sm:$0xff]
        %v2223 = vld [vmem:[%s1692 + $0x6e0] sm:$0xff]
        %v2224 = vld [vmem:[%s1692 + $0x6e8] sm:$0xff]
        %v2225 = vld [vmem:[%s1692 + $0x6f0] sm:$0xff]
        %v2226 = vld [vmem:[%s1692 + $0x6f8] sm:$0xff]
        %v2227 = vld [vmem:[%s1692 + $0x700] sm:$0xff]
        %v2228 = vld [vmem:[%s1692 + $0x708] sm:$0xff]
        %v2229 = vld [vmem:[%s1692 + $0x710] sm:$0xff]
        %v2230 = vld [vmem:[%s1692 + $0x718] sm:$0xff]
        %v2231 = vld [vmem:[%s1692 + $0x720] sm:$0xff]
        %v2232 = vld [vmem:[%s1692 + $0x728] sm:$0xff]
        %v2233 = vld [vmem:[%s1692 + $0x730] sm:$0xff]
        %v2234 = vld [vmem:[%s1692 + $0x738] sm:$0xff]
        %v2235 = vld [vmem:[%s1692 + $0x740] sm:$0xff]
        %v2236 = vld [vmem:[%s1692 + $0x748] sm:$0xff]
        %v2237 = vld [vmem:[%s1692 + $0x750] sm:$0xff]
        %v2238 = vld [vmem:[%s1692 + $0x758] sm:$0xff]
        %v2239 = vld [vmem:[%s1692 + $0x760] sm:$0xff]
        %v2240 = vld [vmem:[%s1692 + $0x768] sm:$0xff]
        %v2241 = vld [vmem:[%s1692 + $0x770] sm:$0xff]
        %v2242 = vld [vmem:[%s1692 + $0x778] sm:$0xff]
        %2243 = vmatpush.msra.mxu0 %v2018
        %2244 = vmatpush.msra.mxu0 %v2017
        %2245 = vmatpush.msra.mxu0 %v2016
        %2246 = vmatpush.msra.mxu0 %v2015
        %2247 = vmatpush.msra.mxu0 %v2014
        %2248 = vmatpush.msra.mxu0 %v2013
        %2249 = vmatpush.msra.mxu0 %v2012
        %2250 = vmatpush.msra.mxu0 %v2011
        %2251 = vmatpush.msra.mxu0 %v2010
        %2252 = vmatpush.msra.mxu0 %v2009
        %2253 = vmatpush.msra.mxu0 %v2008
        %2254 = vmatpush.msra.mxu0 %v2007
        %2255 = vmatpush.msra.mxu0 %v2006
        %2256 = vmatpush.msra.mxu0 %v2005
        %2257 = vmatpush.msra.mxu0 %v2004
        %2258 = vmatpush.msra.mxu0 %v2003
        %2259 = vmatmul.f32.gmra.mxu0 %v1763
        %v2260 = vpop.f32.mrf.mxu0
        %v2261 = vadd.f32 0.0, %v2260
        %2262 = vmatmul.f32.gmra.mxu0 %v1778
        %v2263 = vpop.f32.mrf.mxu0
        %v2264 = vadd.f32 0.0, %v2263
        %2265 = vmatmul.f32.gmra.mxu0 %v1793
        %v2266 = vpop.f32.mrf.mxu0
        %v2267 = vadd.f32 0.0, %v2266
        %2268 = vmatmul.f32.gmra.mxu0 %v1808
        %v2269 = vpop.f32.mrf.mxu0
        %v2270 = vadd.f32 0.0, %v2269
        %2271 = vmatmul.f32.gmra.mxu0 %v1823
        %v2272 = vpop.f32.mrf.mxu0
        %v2273 = vadd.f32 0.0, %v2272
        %2274 = vmatmul.f32.gmra.mxu0 %v1838
        %v2275 = vpop.f32.mrf.mxu0
        %v2276 = vadd.f32 0.0, %v2275
        %2277 = vmatmul.f32.gmra.mxu0 %v1853
        %v2278 = vpop.f32.mrf.mxu0
        %v2279 = vadd.f32 0.0, %v2278
        %2280 = vmatmul.f32.gmra.mxu0 %v1868
        %v2281 = vpop.f32.mrf.mxu0
        %v2282 = vadd.f32 0.0, %v2281
        %2283 = vmatmul.f32.gmra.mxu0 %v1883
        %v2284 = vpop.f32.mrf.mxu0
        %v2285 = vadd.f32 0.0, %v2284
        %2286 = vmatmul.f32.gmra.mxu0 %v1898
        %v2287 = vpop.f32.mrf.mxu0
        %v2288 = vadd.f32 0.0, %v2287
        %2289 = vmatmul.f32.gmra.mxu0 %v1913
        %v2290 = vpop.f32.mrf.mxu0
        %v2291 = vadd.f32 0.0, %v2290
        %2292 = vmatmul.f32.gmra.mxu0 %v1928
        %v2293 = vpop.f32.mrf.mxu0
        %v2294 = vadd.f32 0.0, %v2293
        %2295 = vmatmul.f32.gmra.mxu0 %v1943
        %v2296 = vpop.f32.mrf.mxu0
        %v2297 = vadd.f32 0.0, %v2296
        %2298 = vmatmul.f32.gmra.mxu0 %v1958
        %v2299 = vpop.f32.mrf.mxu0
        %v2300 = vadd.f32 0.0, %v2299
        %2301 = vmatmul.f32.gmra.mxu0 %v1973
        %v2302 = vpop.f32.mrf.mxu0
        %v2303 = vadd.f32 0.0, %v2302
        %2304 = vmatmul.f32.gmra.mxu0 %v1988
        %v2305 = vpop.f32.mrf.mxu0
        %v2306 = vadd.f32 0.0, %v2305
        %2307 = vdwg.mxu0
        %2308 = vmatpush.msra.mxu0 %v2034
        %2309 = vmatpush.msra.mxu0 %v2033
        %2310 = vmatpush.msra.mxu0 %v2032
        %2311 = vmatpush.msra.mxu0 %v2031
        %2312 = vmatpush.msra.mxu0 %v2030
        %2313 = vmatpush.msra.mxu0 %v2029
        %2314 = vmatpush.msra.mxu0 %v2028
        %2315 = vmatpush.msra.mxu0 %v2027
        %2316 = vmatpush.msra.mxu0 %v2026
        %2317 = vmatpush.msra.mxu0 %v2025
        %2318 = vmatpush.msra.mxu0 %v2024
        %2319 = vmatpush.msra.mxu0 %v2023
        %2320 = vmatpush.msra.mxu0 %v2022
        %2321 = vmatpush.msra.mxu0 %v2021
        %2322 = vmatpush.msra.mxu0 %v2020
        %2323 = vmatpush.msra.mxu0 %v2019
        %2324 = vmatmul.f32.gmra.mxu0 %v1764
        %v2325 = vpop.f32.mrf.mxu0
        %v2326 = vadd.f32 %v2261, %v2325
        %2327 = vmatmul.f32.gmra.mxu0 %v1779
        %v2328 = vpop.f32.mrf.mxu0
        %v2329 = vadd.f32 %v2264, %v2328
        %2330 = vmatmul.f32.gmra.mxu0 %v1794
        %v2331 = vpop.f32.mrf.mxu0
        %v2332 = vadd.f32 %v2267, %v2331
        %2333 = vmatmul.f32.gmra.mxu0 %v1809
        %v2334 = vpop.f32.mrf.mxu0
        %v2335 = vadd.f32 %v2270, %v2334
        %2336 = vmatmul.f32.gmra.mxu0 %v1824
        %v2337 = vpop.f32.mrf.mxu0
        %v2338 = vadd.f32 %v2273, %v2337
        %2339 = vmatmul.f32.gmra.mxu0 %v1839
        %v2340 = vpop.f32.mrf.mxu0
        %v2341 = vadd.f32 %v2276, %v2340
        %2342 = vmatmul.f32.gmra.mxu0 %v1854
        %v2343 = vpop.f32.mrf.mxu0
        %v2344 = vadd.f32 %v2279, %v2343
        %2345 = vmatmul.f32.gmra.mxu0 %v1869
        %v2346 = vpop.f32.mrf.mxu0
        %v2347 = vadd.f32 %v2282, %v2346
        %2348 = vmatmul.f32.gmra.mxu0 %v1884
        %v2349 = vpop.f32.mrf.mxu0
        %v2350 = vadd.f32 %v2285, %v2349
        %2351 = vmatmul.f32.gmra.mxu0 %v1899
        %v2352 = vpop.f32.mrf.mxu0
        %v2353 = vadd.f32 %v2288, %v2352
        %2354 = vmatmul.f32.gmra.mxu0 %v1914
        %v2355 = vpop.f32.mrf.mxu0
        %v2356 = vadd.f32 %v2291, %v2355
        %2357 = vmatmul.f32.gmra.mxu0 %v1929
        %v2358 = vpop.f32.mrf.mxu0
        %v2359 = vadd.f32 %v2294, %v2358
        %2360 = vmatmul.f32.gmra.mxu0 %v1944
        %v2361 = vpop.f32.mrf.mxu0
        %v2362 = vadd.f32 %v2297, %v2361
        %2363 = vmatmul.f32.gmra.mxu0 %v1959
        %v2364 = vpop.f32.mrf.mxu0
        %v2365 = vadd.f32 %v2300, %v2364
        %2366 = vmatmul.f32.gmra.mxu0 %v1974
        %v2367 = vpop.f32.mrf.mxu0
        %v2368 = vadd.f32 %v2303, %v2367
        %2369 = vmatmul.f32.gmra.mxu0 %v1989
        %v2370 = vpop.f32.mrf.mxu0
        %v2371 = vadd.f32 %v2306, %v2370
        %2372 = vdwg.mxu0
        %2373 = vmatpush.msra.mxu0 %v2050
        %2374 = vmatpush.msra.mxu0 %v2049
        %2375 = vmatpush.msra.mxu0 %v2048
        %2376 = vmatpush.msra.mxu0 %v2047
        %2377 = vmatpush.msra.mxu0 %v2046
        %2378 = vmatpush.msra.mxu0 %v2045
        %2379 = vmatpush.msra.mxu0 %v2044
        %2380 = vmatpush.msra.mxu0 %v2043
        %2381 = vmatpush.msra.mxu0 %v2042
        %2382 = vmatpush.msra.mxu0 %v2041
        %2383 = vmatpush.msra.mxu0 %v2040
        %2384 = vmatpush.msra.mxu0 %v2039
        %2385 = vmatpush.msra.mxu0 %v2038
        %2386 = vmatpush.msra.mxu0 %v2037
        %2387 = vmatpush.msra.mxu0 %v2036
        %2388 = vmatpush.msra.mxu0 %v2035
        %2389 = vmatmul.f32.gmra.mxu0 %v1765
        %v2390 = vpop.f32.mrf.mxu0
        %v2391 = vadd.f32 %v2326, %v2390
        %2392 = vmatmul.f32.gmra.mxu0 %v1780
        %v2393 = vpop.f32.mrf.mxu0
        %v2394 = vadd.f32 %v2329, %v2393
        %2395 = vmatmul.f32.gmra.mxu0 %v1795
        %v2396 = vpop.f32.mrf.mxu0
        %v2397 = vadd.f32 %v2332, %v2396
        %2398 = vmatmul.f32.gmra.mxu0 %v1810
        %v2399 = vpop.f32.mrf.mxu0
        %v2400 = vadd.f32 %v2335, %v2399
        %2401 = vmatmul.f32.gmra.mxu0 %v1825
        %v2402 = vpop.f32.mrf.mxu0
        %v2403 = vadd.f32 %v2338, %v2402
        %2404 = vmatmul.f32.gmra.mxu0 %v1840
        %v2405 = vpop.f32.mrf.mxu0
        %v2406 = vadd.f32 %v2341, %v2405
        %2407 = vmatmul.f32.gmra.mxu0 %v1855
        %v2408 = vpop.f32.mrf.mxu0
        %v2409 = vadd.f32 %v2344, %v2408
        %2410 = vmatmul.f32.gmra.mxu0 %v1870
        %v2411 = vpop.f32.mrf.mxu0
        %v2412 = vadd.f32 %v2347, %v2411
        %2413 = vmatmul.f32.gmra.mxu0 %v1885
        %v2414 = vpop.f32.mrf.mxu0
        %v2415 = vadd.f32 %v2350, %v2414
        %2416 = vmatmul.f32.gmra.mxu0 %v1900
        %v2417 = vpop.f32.mrf.mxu0
        %v2418 = vadd.f32 %v2353, %v2417
        %2419 = vmatmul.f32.gmra.mxu0 %v1915
        %v2420 = vpop.f32.mrf.mxu0
        %v2421 = vadd.f32 %v2356, %v2420
        %2422 = vmatmul.f32.gmra.mxu0 %v1930
        %v2423 = vpop.f32.mrf.mxu0
        %v2424 = vadd.f32 %v2359, %v2423
        %2425 = vmatmul.f32.gmra.mxu0 %v1945
        %v2426 = vpop.f32.mrf.mxu0
        %v2427 = vadd.f32 %v2362, %v2426
        %2428 = vmatmul.f32.gmra.mxu0 %v1960
        %v2429 = vpop.f32.mrf.mxu0
        %v2430 = vadd.f32 %v2365, %v2429
        %2431 = vmatmul.f32.gmra.mxu0 %v1975
        %v2432 = vpop.f32.mrf.mxu0
        %v2433 = vadd.f32 %v2368, %v2432
        %2434 = vmatmul.f32.gmra.mxu0 %v1990
        %v2435 = vpop.f32.mrf.mxu0
        %v2436 = vadd.f32 %v2371, %v2435
        %2437 = vdwg.mxu0
        %2438 = vmatpush.msra.mxu0 %v2066
        %2439 = vmatpush.msra.mxu0 %v2065
        %2440 = vmatpush.msra.mxu0 %v2064
        %2441 = vmatpush.msra.mxu0 %v2063
        %2442 = vmatpush.msra.mxu0 %v2062
        %2443 = vmatpush.msra.mxu0 %v2061
        %2444 = vmatpush.msra.mxu0 %v2060
        %2445 = vmatpush.msra.mxu0 %v2059
        %2446 = vmatpush.msra.mxu0 %v2058
        %2447 = vmatpush.msra.mxu0 %v2057
        %2448 = vmatpush.msra.mxu0 %v2056
        %2449 = vmatpush.msra.mxu0 %v2055
        %2450 = vmatpush.msra.mxu0 %v2054
        %2451 = vmatpush.msra.mxu0 %v2053
        %2452 = vmatpush.msra.mxu0 %v2052
        %2453 = vmatpush.msra.mxu0 %v2051
        %2454 = vmatmul.f32.gmra.mxu0 %v1766
        %v2455 = vpop.f32.mrf.mxu0
        %v2456 = vadd.f32 %v2391, %v2455
        %2457 = vmatmul.f32.gmra.mxu0 %v1781
        %v2458 = vpop.f32.mrf.mxu0
        %v2459 = vadd.f32 %v2394, %v2458
        %2460 = vmatmul.f32.gmra.mxu0 %v1796
        %v2461 = vpop.f32.mrf.mxu0
        %v2462 = vadd.f32 %v2397, %v2461
        %2463 = vmatmul.f32.gmra.mxu0 %v1811
        %v2464 = vpop.f32.mrf.mxu0
        %v2465 = vadd.f32 %v2400, %v2464
        %2466 = vmatmul.f32.gmra.mxu0 %v1826
        %v2467 = vpop.f32.mrf.mxu0
        %v2468 = vadd.f32 %v2403, %v2467
        %2469 = vmatmul.f32.gmra.mxu0 %v1841
        %v2470 = vpop.f32.mrf.mxu0
        %v2471 = vadd.f32 %v2406, %v2470
        %2472 = vmatmul.f32.gmra.mxu0 %v1856
        %v2473 = vpop.f32.mrf.mxu0
        %v2474 = vadd.f32 %v2409, %v2473
        %2475 = vmatmul.f32.gmra.mxu0 %v1871
        %v2476 = vpop.f32.mrf.mxu0
        %v2477 = vadd.f32 %v2412, %v2476
        %2478 = vmatmul.f32.gmra.mxu0 %v1886
        %v2479 = vpop.f32.mrf.mxu0
        %v2480 = vadd.f32 %v2415, %v2479
        %2481 = vmatmul.f32.gmra.mxu0 %v1901
        %v2482 = vpop.f32.mrf.mxu0
        %v2483 = vadd.f32 %v2418, %v2482
        %2484 = vmatmul.f32.gmra.mxu0 %v1916
        %v2485 = vpop.f32.mrf.mxu0
        %v2486 = vadd.f32 %v2421, %v2485
        %2487 = vmatmul.f32.gmra.mxu0 %v1931
        %v2488 = vpop.f32.mrf.mxu0
        %v2489 = vadd.f32 %v2424, %v2488
        %2490 = vmatmul.f32.gmra.mxu0 %v1946
        %v2491 = vpop.f32.mrf.mxu0
        %v2492 = vadd.f32 %v2427, %v2491
        %2493 = vmatmul.f32.gmra.mxu0 %v1961
        %v2494 = vpop.f32.mrf.mxu0
        %v2495 = vadd.f32 %v2430, %v2494
        %2496 = vmatmul.f32.gmra.mxu0 %v1976
        %v2497 = vpop.f32.mrf.mxu0
        %v2498 = vadd.f32 %v2433, %v2497
        %2499 = vmatmul.f32.gmra.mxu0 %v1991
        %v2500 = vpop.f32.mrf.mxu0
        %v2501 = vadd.f32 %v2436, %v2500
        %2502 = vdwg.mxu0
        %2503 = vmatpush.msra.mxu0 %v2082
        %2504 = vmatpush.msra.mxu0 %v2081
        %2505 = vmatpush.msra.mxu0 %v2080
        %2506 = vmatpush.msra.mxu0 %v2079
        %2507 = vmatpush.msra.mxu0 %v2078
        %2508 = vmatpush.msra.mxu0 %v2077
        %2509 = vmatpush.msra.mxu0 %v2076
        %2510 = vmatpush.msra.mxu0 %v2075
        %2511 = vmatpush.msra.mxu0 %v2074
        %2512 = vmatpush.msra.mxu0 %v2073
        %2513 = vmatpush.msra.mxu0 %v2072
        %2514 = vmatpush.msra.mxu0 %v2071
        %2515 = vmatpush.msra.mxu0 %v2070
        %2516 = vmatpush.msra.mxu0 %v2069
        %2517 = vmatpush.msra.mxu0 %v2068
        %2518 = vmatpush.msra.mxu0 %v2067
        %2519 = vmatmul.f32.gmra.mxu0 %v1767
        %v2520 = vpop.f32.mrf.mxu0
        %v2521 = vadd.f32 %v2456, %v2520
        %2522 = vmatmul.f32.gmra.mxu0 %v1782
        %v2523 = vpop.f32.mrf.mxu0
        %v2524 = vadd.f32 %v2459, %v2523
        %2525 = vmatmul.f32.gmra.mxu0 %v1797
        %v2526 = vpop.f32.mrf.mxu0
        %v2527 = vadd.f32 %v2462, %v2526
        %2528 = vmatmul.f32.gmra.mxu0 %v1812
        %v2529 = vpop.f32.mrf.mxu0
        %v2530 = vadd.f32 %v2465, %v2529
        %2531 = vmatmul.f32.gmra.mxu0 %v1827
        %v2532 = vpop.f32.mrf.mxu0
        %v2533 = vadd.f32 %v2468, %v2532
        %2534 = vmatmul.f32.gmra.mxu0 %v1842
        %v2535 = vpop.f32.mrf.mxu0
        %v2536 = vadd.f32 %v2471, %v2535
        %2537 = vmatmul.f32.gmra.mxu0 %v1857
        %v2538 = vpop.f32.mrf.mxu0
        %v2539 = vadd.f32 %v2474, %v2538
        %2540 = vmatmul.f32.gmra.mxu0 %v1872
        %v2541 = vpop.f32.mrf.mxu0
        %v2542 = vadd.f32 %v2477, %v2541
        %2543 = vmatmul.f32.gmra.mxu0 %v1887
        %v2544 = vpop.f32.mrf.mxu0
        %v2545 = vadd.f32 %v2480, %v2544
        %2546 = vmatmul.f32.gmra.mxu0 %v1902
        %v2547 = vpop.f32.mrf.mxu0
        %v2548 = vadd.f32 %v2483, %v2547
        %2549 = vmatmul.f32.gmra.mxu0 %v1917
        %v2550 = vpop.f32.mrf.mxu0
        %v2551 = vadd.f32 %v2486, %v2550
        %2552 = vmatmul.f32.gmra.mxu0 %v1932
        %v2553 = vpop.f32.mrf.mxu0
        %v2554 = vadd.f32 %v2489, %v2553
        %2555 = vmatmul.f32.gmra.mxu0 %v1947
        %v2556 = vpop.f32.mrf.mxu0
        %v2557 = vadd.f32 %v2492, %v2556
        %2558 = vmatmul.f32.gmra.mxu0 %v1962
        %v2559 = vpop.f32.mrf.mxu0
        %v2560 = vadd.f32 %v2495, %v2559
        %2561 = vmatmul.f32.gmra.mxu0 %v1977
        %v2562 = vpop.f32.mrf.mxu0
        %v2563 = vadd.f32 %v2498, %v2562
        %2564 = vmatmul.f32.gmra.mxu0 %v1992
        %v2565 = vpop.f32.mrf.mxu0
        %v2566 = vadd.f32 %v2501, %v2565
        %2567 = vdwg.mxu0
        %2568 = vmatpush.msra.mxu0 %v2098
        %2569 = vmatpush.msra.mxu0 %v2097
        %2570 = vmatpush.msra.mxu0 %v2096
        %2571 = vmatpush.msra.mxu0 %v2095
        %2572 = vmatpush.msra.mxu0 %v2094
        %2573 = vmatpush.msra.mxu0 %v2093
        %2574 = vmatpush.msra.mxu0 %v2092
        %2575 = vmatpush.msra.mxu0 %v2091
        %2576 = vmatpush.msra.mxu0 %v2090
        %2577 = vmatpush.msra.mxu0 %v2089
        %2578 = vmatpush.msra.mxu0 %v2088
        %2579 = vmatpush.msra.mxu0 %v2087
        %2580 = vmatpush.msra.mxu0 %v2086
        %2581 = vmatpush.msra.mxu0 %v2085
        %2582 = vmatpush.msra.mxu0 %v2084
        %2583 = vmatpush.msra.mxu0 %v2083
        %2584 = vmatmul.f32.gmra.mxu0 %v1768
        %v2585 = vpop.f32.mrf.mxu0
        %v2586 = vadd.f32 %v2521, %v2585
        %2587 = vmatmul.f32.gmra.mxu0 %v1783
        %v2588 = vpop.f32.mrf.mxu0
        %v2589 = vadd.f32 %v2524, %v2588
        %2590 = vmatmul.f32.gmra.mxu0 %v1798
        %v2591 = vpop.f32.mrf.mxu0
        %v2592 = vadd.f32 %v2527, %v2591
        %2593 = vmatmul.f32.gmra.mxu0 %v1813
        %v2594 = vpop.f32.mrf.mxu0
        %v2595 = vadd.f32 %v2530, %v2594
        %2596 = vmatmul.f32.gmra.mxu0 %v1828
        %v2597 = vpop.f32.mrf.mxu0
        %v2598 = vadd.f32 %v2533, %v2597
        %2599 = vmatmul.f32.gmra.mxu0 %v1843
        %v2600 = vpop.f32.mrf.mxu0
        %v2601 = vadd.f32 %v2536, %v2600
        %2602 = vmatmul.f32.gmra.mxu0 %v1858
        %v2603 = vpop.f32.mrf.mxu0
        %v2604 = vadd.f32 %v2539, %v2603
        %2605 = vmatmul.f32.gmra.mxu0 %v1873
        %v2606 = vpop.f32.mrf.mxu0
        %v2607 = vadd.f32 %v2542, %v2606
        %2608 = vmatmul.f32.gmra.mxu0 %v1888
        %v2609 = vpop.f32.mrf.mxu0
        %v2610 = vadd.f32 %v2545, %v2609
        %2611 = vmatmul.f32.gmra.mxu0 %v1903
        %v2612 = vpop.f32.mrf.mxu0
        %v2613 = vadd.f32 %v2548, %v2612
        %2614 = vmatmul.f32.gmra.mxu0 %v1918
        %v2615 = vpop.f32.mrf.mxu0
        %v2616 = vadd.f32 %v2551, %v2615
        %2617 = vmatmul.f32.gmra.mxu0 %v1933
        %v2618 = vpop.f32.mrf.mxu0
        %v2619 = vadd.f32 %v2554, %v2618
        %2620 = vmatmul.f32.gmra.mxu0 %v1948
        %v2621 = vpop.f32.mrf.mxu0
        %v2622 = vadd.f32 %v2557, %v2621
        %2623 = vmatmul.f32.gmra.mxu0 %v1963
        %v2624 = vpop.f32.mrf.mxu0
        %v2625 = vadd.f32 %v2560, %v2624
        %2626 = vmatmul.f32.gmra.mxu0 %v1978
        %v2627 = vpop.f32.mrf.mxu0
        %v2628 = vadd.f32 %v2563, %v2627
        %2629 = vmatmul.f32.gmra.mxu0 %v1993
        %v2630 = vpop.f32.mrf.mxu0
        %v2631 = vadd.f32 %v2566, %v2630
        %2632 = vdwg.mxu0
        %2633 = vmatpush.msra.mxu0 %v2114
        %2634 = vmatpush.msra.mxu0 %v2113
        %2635 = vmatpush.msra.mxu0 %v2112
        %2636 = vmatpush.msra.mxu0 %v2111
        %2637 = vmatpush.msra.mxu0 %v2110
        %2638 = vmatpush.msra.mxu0 %v2109
        %2639 = vmatpush.msra.mxu0 %v2108
        %2640 = vmatpush.msra.mxu0 %v2107
        %2641 = vmatpush.msra.mxu0 %v2106
        %2642 = vmatpush.msra.mxu0 %v2105
        %2643 = vmatpush.msra.mxu0 %v2104
        %2644 = vmatpush.msra.mxu0 %v2103
        %2645 = vmatpush.msra.mxu0 %v2102
        %2646 = vmatpush.msra.mxu0 %v2101
        %2647 = vmatpush.msra.mxu0 %v2100
        %2648 = vmatpush.msra.mxu0 %v2099
        %2649 = vmatmul.f32.gmra.mxu0 %v1769
        %v2650 = vpop.f32.mrf.mxu0
        %v2651 = vadd.f32 %v2586, %v2650
        %2652 = vmatmul.f32.gmra.mxu0 %v1784
        %v2653 = vpop.f32.mrf.mxu0
        %v2654 = vadd.f32 %v2589, %v2653
        %2655 = vmatmul.f32.gmra.mxu0 %v1799
        %v2656 = vpop.f32.mrf.mxu0
        %v2657 = vadd.f32 %v2592, %v2656
        %2658 = vmatmul.f32.gmra.mxu0 %v1814
        %v2659 = vpop.f32.mrf.mxu0
        %v2660 = vadd.f32 %v2595, %v2659
        %2661 = vmatmul.f32.gmra.mxu0 %v1829
        %v2662 = vpop.f32.mrf.mxu0
        %v2663 = vadd.f32 %v2598, %v2662
        %2664 = vmatmul.f32.gmra.mxu0 %v1844
        %v2665 = vpop.f32.mrf.mxu0
        %v2666 = vadd.f32 %v2601, %v2665
        %2667 = vmatmul.f32.gmra.mxu0 %v1859
        %v2668 = vpop.f32.mrf.mxu0
        %v2669 = vadd.f32 %v2604, %v2668
        %2670 = vmatmul.f32.gmra.mxu0 %v1874
        %v2671 = vpop.f32.mrf.mxu0
        %v2672 = vadd.f32 %v2607, %v2671
        %2673 = vmatmul.f32.gmra.mxu0 %v1889
        %v2674 = vpop.f32.mrf.mxu0
        %v2675 = vadd.f32 %v2610, %v2674
        %2676 = vmatmul.f32.gmra.mxu0 %v1904
        %v2677 = vpop.f32.mrf.mxu0
        %v2678 = vadd.f32 %v2613, %v2677
        %2679 = vmatmul.f32.gmra.mxu0 %v1919
        %v2680 = vpop.f32.mrf.mxu0
        %v2681 = vadd.f32 %v2616, %v2680
        %2682 = vmatmul.f32.gmra.mxu0 %v1934
        %v2683 = vpop.f32.mrf.mxu0
        %v2684 = vadd.f32 %v2619, %v2683
        %2685 = vmatmul.f32.gmra.mxu0 %v1949
        %v2686 = vpop.f32.mrf.mxu0
        %v2687 = vadd.f32 %v2622, %v2686
        %2688 = vmatmul.f32.gmra.mxu0 %v1964
        %v2689 = vpop.f32.mrf.mxu0
        %v2690 = vadd.f32 %v2625, %v2689
        %2691 = vmatmul.f32.gmra.mxu0 %v1979
        %v2692 = vpop.f32.mrf.mxu0
        %v2693 = vadd.f32 %v2628, %v2692
        %2694 = vmatmul.f32.gmra.mxu0 %v1994
        %v2695 = vpop.f32.mrf.mxu0
        %v2696 = vadd.f32 %v2631, %v2695
        %2697 = vdwg.mxu0
        %2698 = vmatpush.msra.mxu0 %v2130
        %2699 = vmatpush.msra.mxu0 %v2129
        %2700 = vmatpush.msra.mxu0 %v2128
        %2701 = vmatpush.msra.mxu0 %v2127
        %2702 = vmatpush.msra.mxu0 %v2126
        %2703 = vmatpush.msra.mxu0 %v2125
        %2704 = vmatpush.msra.mxu0 %v2124
        %2705 = vmatpush.msra.mxu0 %v2123
        %2706 = vmatpush.msra.mxu0 %v2122
        %2707 = vmatpush.msra.mxu0 %v2121
        %2708 = vmatpush.msra.mxu0 %v2120
        %2709 = vmatpush.msra.mxu0 %v2119
        %2710 = vmatpush.msra.mxu0 %v2118
        %2711 = vmatpush.msra.mxu0 %v2117
        %2712 = vmatpush.msra.mxu0 %v2116
        %2713 = vmatpush.msra.mxu0 %v2115
        %2714 = vmatmul.f32.gmra.mxu0 %v1770
        %v2715 = vpop.f32.mrf.mxu0
        %v2716 = vadd.f32 %v2651, %v2715
        %2717 = vmatmul.f32.gmra.mxu0 %v1785
        %v2718 = vpop.f32.mrf.mxu0
        %v2719 = vadd.f32 %v2654, %v2718
        %2720 = vmatmul.f32.gmra.mxu0 %v1800
        %v2721 = vpop.f32.mrf.mxu0
        %v2722 = vadd.f32 %v2657, %v2721
        %2723 = vmatmul.f32.gmra.mxu0 %v1815
        %v2724 = vpop.f32.mrf.mxu0
        %v2725 = vadd.f32 %v2660, %v2724
        %2726 = vmatmul.f32.gmra.mxu0 %v1830
        %v2727 = vpop.f32.mrf.mxu0
        %v2728 = vadd.f32 %v2663, %v2727
        %2729 = vmatmul.f32.gmra.mxu0 %v1845
        %v2730 = vpop.f32.mrf.mxu0
        %v2731 = vadd.f32 %v2666, %v2730
        %2732 = vmatmul.f32.gmra.mxu0 %v1860
        %v2733 = vpop.f32.mrf.mxu0
        %v2734 = vadd.f32 %v2669, %v2733
        %2735 = vmatmul.f32.gmra.mxu0 %v1875
        %v2736 = vpop.f32.mrf.mxu0
        %v2737 = vadd.f32 %v2672, %v2736
        %2738 = vmatmul.f32.gmra.mxu0 %v1890
        %v2739 = vpop.f32.mrf.mxu0
        %v2740 = vadd.f32 %v2675, %v2739
        %2741 = vmatmul.f32.gmra.mxu0 %v1905
        %v2742 = vpop.f32.mrf.mxu0
        %v2743 = vadd.f32 %v2678, %v2742
        %2744 = vmatmul.f32.gmra.mxu0 %v1920
        %v2745 = vpop.f32.mrf.mxu0
        %v2746 = vadd.f32 %v2681, %v2745
        %2747 = vmatmul.f32.gmra.mxu0 %v1935
        %v2748 = vpop.f32.mrf.mxu0
        %v2749 = vadd.f32 %v2684, %v2748
        %2750 = vmatmul.f32.gmra.mxu0 %v1950
        %v2751 = vpop.f32.mrf.mxu0
        %v2752 = vadd.f32 %v2687, %v2751
        %2753 = vmatmul.f32.gmra.mxu0 %v1965
        %v2754 = vpop.f32.mrf.mxu0
        %v2755 = vadd.f32 %v2690, %v2754
        %2756 = vmatmul.f32.gmra.mxu0 %v1980
        %v2757 = vpop.f32.mrf.mxu0
        %v2758 = vadd.f32 %v2693, %v2757
        %2759 = vmatmul.f32.gmra.mxu0 %v1995
        %v2760 = vpop.f32.mrf.mxu0
        %v2761 = vadd.f32 %v2696, %v2760
        %2762 = vdwg.mxu0
        %2763 = vmatpush.msra.mxu0 %v2146
        %2764 = vmatpush.msra.mxu0 %v2145
        %2765 = vmatpush.msra.mxu0 %v2144
        %2766 = vmatpush.msra.mxu0 %v2143
        %2767 = vmatpush.msra.mxu0 %v2142
        %2768 = vmatpush.msra.mxu0 %v2141
        %2769 = vmatpush.msra.mxu0 %v2140
        %2770 = vmatpush.msra.mxu0 %v2139
        %2771 = vmatpush.msra.mxu0 %v2138
        %2772 = vmatpush.msra.mxu0 %v2137
        %2773 = vmatpush.msra.mxu0 %v2136
        %2774 = vmatpush.msra.mxu0 %v2135
        %2775 = vmatpush.msra.mxu0 %v2134
        %2776 = vmatpush.msra.mxu0 %v2133
        %2777 = vmatpush.msra.mxu0 %v2132
        %2778 = vmatpush.msra.mxu0 %v2131
        %2779 = vmatmul.f32.gmra.mxu0 %v1771
        %v2780 = vpop.f32.mrf.mxu0
        %v2781 = vadd.f32 %v2716, %v2780
        %2782 = vmatmul.f32.gmra.mxu0 %v1786
        %v2783 = vpop.f32.mrf.mxu0
        %v2784 = vadd.f32 %v2719, %v2783
        %2785 = vmatmul.f32.gmra.mxu0 %v1801
        %v2786 = vpop.f32.mrf.mxu0
        %v2787 = vadd.f32 %v2722, %v2786
        %2788 = vmatmul.f32.gmra.mxu0 %v1816
        %v2789 = vpop.f32.mrf.mxu0
        %v2790 = vadd.f32 %v2725, %v2789
        %2791 = vmatmul.f32.gmra.mxu0 %v1831
        %v2792 = vpop.f32.mrf.mxu0
        %v2793 = vadd.f32 %v2728, %v2792
        %2794 = vmatmul.f32.gmra.mxu0 %v1846
        %v2795 = vpop.f32.mrf.mxu0
        %v2796 = vadd.f32 %v2731, %v2795
        %2797 = vmatmul.f32.gmra.mxu0 %v1861
        %v2798 = vpop.f32.mrf.mxu0
        %v2799 = vadd.f32 %v2734, %v2798
        %2800 = vmatmul.f32.gmra.mxu0 %v1876
        %v2801 = vpop.f32.mrf.mxu0
        %v2802 = vadd.f32 %v2737, %v2801
        %2803 = vmatmul.f32.gmra.mxu0 %v1891
        %v2804 = vpop.f32.mrf.mxu0
        %v2805 = vadd.f32 %v2740, %v2804
        %2806 = vmatmul.f32.gmra.mxu0 %v1906
        %v2807 = vpop.f32.mrf.mxu0
        %v2808 = vadd.f32 %v2743, %v2807
        %2809 = vmatmul.f32.gmra.mxu0 %v1921
        %v2810 = vpop.f32.mrf.mxu0
        %v2811 = vadd.f32 %v2746, %v2810
        %2812 = vmatmul.f32.gmra.mxu0 %v1936
        %v2813 = vpop.f32.mrf.mxu0
        %v2814 = vadd.f32 %v2749, %v2813
        %2815 = vmatmul.f32.gmra.mxu0 %v1951
        %v2816 = vpop.f32.mrf.mxu0
        %v2817 = vadd.f32 %v2752, %v2816
        %2818 = vmatmul.f32.gmra.mxu0 %v1966
        %v2819 = vpop.f32.mrf.mxu0
        %v2820 = vadd.f32 %v2755, %v2819
        %2821 = vmatmul.f32.gmra.mxu0 %v1981
        %v2822 = vpop.f32.mrf.mxu0
        %v2823 = vadd.f32 %v2758, %v2822
        %2824 = vmatmul.f32.gmra.mxu0 %v1996
        %v2825 = vpop.f32.mrf.mxu0
        %v2826 = vadd.f32 %v2761, %v2825
        %2827 = vdwg.mxu0
        %2828 = vmatpush.msra.mxu0 %v2162
        %2829 = vmatpush.msra.mxu0 %v2161
        %2830 = vmatpush.msra.mxu0 %v2160
        %2831 = vmatpush.msra.mxu0 %v2159
        %2832 = vmatpush.msra.mxu0 %v2158
        %2833 = vmatpush.msra.mxu0 %v2157
        %2834 = vmatpush.msra.mxu0 %v2156
        %2835 = vmatpush.msra.mxu0 %v2155
        %2836 = vmatpush.msra.mxu0 %v2154
        %2837 = vmatpush.msra.mxu0 %v2153
        %2838 = vmatpush.msra.mxu0 %v2152
        %2839 = vmatpush.msra.mxu0 %v2151
        %2840 = vmatpush.msra.mxu0 %v2150
        %2841 = vmatpush.msra.mxu0 %v2149
        %2842 = vmatpush.msra.mxu0 %v2148
        %2843 = vmatpush.msra.mxu0 %v2147
        %2844 = vmatmul.f32.gmra.mxu0 %v1772
        %v2845 = vpop.f32.mrf.mxu0
        %v2846 = vadd.f32 %v2781, %v2845
        %2847 = vmatmul.f32.gmra.mxu0 %v1787
        %v2848 = vpop.f32.mrf.mxu0
        %v2849 = vadd.f32 %v2784, %v2848
        %2850 = vmatmul.f32.gmra.mxu0 %v1802
        %v2851 = vpop.f32.mrf.mxu0
        %v2852 = vadd.f32 %v2787, %v2851
        %2853 = vmatmul.f32.gmra.mxu0 %v1817
        %v2854 = vpop.f32.mrf.mxu0
        %v2855 = vadd.f32 %v2790, %v2854
        %2856 = vmatmul.f32.gmra.mxu0 %v1832
        %v2857 = vpop.f32.mrf.mxu0
        %v2858 = vadd.f32 %v2793, %v2857
        %2859 = vmatmul.f32.gmra.mxu0 %v1847
        %v2860 = vpop.f32.mrf.mxu0
        %v2861 = vadd.f32 %v2796, %v2860
        %2862 = vmatmul.f32.gmra.mxu0 %v1862
        %v2863 = vpop.f32.mrf.mxu0
        %v2864 = vadd.f32 %v2799, %v2863
        %2865 = vmatmul.f32.gmra.mxu0 %v1877
        %v2866 = vpop.f32.mrf.mxu0
        %v2867 = vadd.f32 %v2802, %v2866
        %2868 = vmatmul.f32.gmra.mxu0 %v1892
        %v2869 = vpop.f32.mrf.mxu0
        %v2870 = vadd.f32 %v2805, %v2869
        %2871 = vmatmul.f32.gmra.mxu0 %v1907
        %v2872 = vpop.f32.mrf.mxu0
        %v2873 = vadd.f32 %v2808, %v2872
        %2874 = vmatmul.f32.gmra.mxu0 %v1922
        %v2875 = vpop.f32.mrf.mxu0
        %v2876 = vadd.f32 %v2811, %v2875
        %2877 = vmatmul.f32.gmra.mxu0 %v1937
        %v2878 = vpop.f32.mrf.mxu0
        %v2879 = vadd.f32 %v2814, %v2878
        %2880 = vmatmul.f32.gmra.mxu0 %v1952
        %v2881 = vpop.f32.mrf.mxu0
        %v2882 = vadd.f32 %v2817, %v2881
        %2883 = vmatmul.f32.gmra.mxu0 %v1967
        %v2884 = vpop.f32.mrf.mxu0
        %v2885 = vadd.f32 %v2820, %v2884
        %2886 = vmatmul.f32.gmra.mxu0 %v1982
        %v2887 = vpop.f32.mrf.mxu0
        %v2888 = vadd.f32 %v2823, %v2887
        %2889 = vmatmul.f32.gmra.mxu0 %v1997
        %v2890 = vpop.f32.mrf.mxu0
        %v2891 = vadd.f32 %v2826, %v2890
        %2892 = vdwg.mxu0
        %2893 = vmatpush.msra.mxu0 %v2178
        %2894 = vmatpush.msra.mxu0 %v2177
        %2895 = vmatpush.msra.mxu0 %v2176
        %2896 = vmatpush.msra.mxu0 %v2175
        %2897 = vmatpush.msra.mxu0 %v2174
        %2898 = vmatpush.msra.mxu0 %v2173
        %2899 = vmatpush.msra.mxu0 %v2172
        %2900 = vmatpush.msra.mxu0 %v2171
        %2901 = vmatpush.msra.mxu0 %v2170
        %2902 = vmatpush.msra.mxu0 %v2169
        %2903 = vmatpush.msra.mxu0 %v2168
        %2904 = vmatpush.msra.mxu0 %v2167
        %2905 = vmatpush.msra.mxu0 %v2166
        %2906 = vmatpush.msra.mxu0 %v2165
        %2907 = vmatpush.msra.mxu0 %v2164
        %2908 = vmatpush.msra.mxu0 %v2163
        %2909 = vmatmul.f32.gmra.mxu0 %v1773
        %v2910 = vpop.f32.mrf.mxu0
        %v2911 = vadd.f32 %v2846, %v2910
        %2912 = vmatmul.f32.gmra.mxu0 %v1788
        %v2913 = vpop.f32.mrf.mxu0
        %v2914 = vadd.f32 %v2849, %v2913
        %2915 = vmatmul.f32.gmra.mxu0 %v1803
        %v2916 = vpop.f32.mrf.mxu0
        %v2917 = vadd.f32 %v2852, %v2916
        %2918 = vmatmul.f32.gmra.mxu0 %v1818
        %v2919 = vpop.f32.mrf.mxu0
        %v2920 = vadd.f32 %v2855, %v2919
        %2921 = vmatmul.f32.gmra.mxu0 %v1833
        %v2922 = vpop.f32.mrf.mxu0
        %v2923 = vadd.f32 %v2858, %v2922
        %2924 = vmatmul.f32.gmra.mxu0 %v1848
        %v2925 = vpop.f32.mrf.mxu0
        %v2926 = vadd.f32 %v2861, %v2925
        %2927 = vmatmul.f32.gmra.mxu0 %v1863
        %v2928 = vpop.f32.mrf.mxu0
        %v2929 = vadd.f32 %v2864, %v2928
        %2930 = vmatmul.f32.gmra.mxu0 %v1878
        %v2931 = vpop.f32.mrf.mxu0
        %v2932 = vadd.f32 %v2867, %v2931
        %2933 = vmatmul.f32.gmra.mxu0 %v1893
        %v2934 = vpop.f32.mrf.mxu0
        %v2935 = vadd.f32 %v2870, %v2934
        %2936 = vmatmul.f32.gmra.mxu0 %v1908
        %v2937 = vpop.f32.mrf.mxu0
        %v2938 = vadd.f32 %v2873, %v2937
        %2939 = vmatmul.f32.gmra.mxu0 %v1923
        %v2940 = vpop.f32.mrf.mxu0
        %v2941 = vadd.f32 %v2876, %v2940
        %2942 = vmatmul.f32.gmra.mxu0 %v1938
        %v2943 = vpop.f32.mrf.mxu0
        %v2944 = vadd.f32 %v2879, %v2943
        %2945 = vmatmul.f32.gmra.mxu0 %v1953
        %v2946 = vpop.f32.mrf.mxu0
        %v2947 = vadd.f32 %v2882, %v2946
        %2948 = vmatmul.f32.gmra.mxu0 %v1968
        %v2949 = vpop.f32.mrf.mxu0
        %v2950 = vadd.f32 %v2885, %v2949
        %2951 = vmatmul.f32.gmra.mxu0 %v1983
        %v2952 = vpop.f32.mrf.mxu0
        %v2953 = vadd.f32 %v2888, %v2952
        %2954 = vmatmul.f32.gmra.mxu0 %v1998
        %v2955 = vpop.f32.mrf.mxu0
        %v2956 = vadd.f32 %v2891, %v2955
        %2957 = vdwg.mxu0
        %2958 = vmatpush.msra.mxu0 %v2194
        %2959 = vmatpush.msra.mxu0 %v2193
        %2960 = vmatpush.msra.mxu0 %v2192
        %2961 = vmatpush.msra.mxu0 %v2191
        %2962 = vmatpush.msra.mxu0 %v2190
        %2963 = vmatpush.msra.mxu0 %v2189
        %2964 = vmatpush.msra.mxu0 %v2188
        %2965 = vmatpush.msra.mxu0 %v2187
        %2966 = vmatpush.msra.mxu0 %v2186
        %2967 = vmatpush.msra.mxu0 %v2185
        %2968 = vmatpush.msra.mxu0 %v2184
        %2969 = vmatpush.msra.mxu0 %v2183
        %2970 = vmatpush.msra.mxu0 %v2182
        %2971 = vmatpush.msra.mxu0 %v2181
        %2972 = vmatpush.msra.mxu0 %v2180
        %2973 = vmatpush.msra.mxu0 %v2179
        %2974 = vmatmul.f32.gmra.mxu0 %v1774
        %v2975 = vpop.f32.mrf.mxu0
        %v2976 = vadd.f32 %v2911, %v2975
        %2977 = vmatmul.f32.gmra.mxu0 %v1789
        %v2978 = vpop.f32.mrf.mxu0
        %v2979 = vadd.f32 %v2914, %v2978
        %2980 = vmatmul.f32.gmra.mxu0 %v1804
        %v2981 = vpop.f32.mrf.mxu0
        %v2982 = vadd.f32 %v2917, %v2981
        %2983 = vmatmul.f32.gmra.mxu0 %v1819
        %v2984 = vpop.f32.mrf.mxu0
        %v2985 = vadd.f32 %v2920, %v2984
        %2986 = vmatmul.f32.gmra.mxu0 %v1834
        %v2987 = vpop.f32.mrf.mxu0
        %v2988 = vadd.f32 %v2923, %v2987
        %2989 = vmatmul.f32.gmra.mxu0 %v1849
        %v2990 = vpop.f32.mrf.mxu0
        %v2991 = vadd.f32 %v2926, %v2990
        %2992 = vmatmul.f32.gmra.mxu0 %v1864
        %v2993 = vpop.f32.mrf.mxu0
        %v2994 = vadd.f32 %v2929, %v2993
        %2995 = vmatmul.f32.gmra.mxu0 %v1879
        %v2996 = vpop.f32.mrf.mxu0
        %v2997 = vadd.f32 %v2932, %v2996
        %2998 = vmatmul.f32.gmra.mxu0 %v1894
        %v2999 = vpop.f32.mrf.mxu0
        %v3000 = vadd.f32 %v2935, %v2999
        %3001 = vmatmul.f32.gmra.mxu0 %v1909
        %v3002 = vpop.f32.mrf.mxu0
        %v3003 = vadd.f32 %v2938, %v3002
        %3004 = vmatmul.f32.gmra.mxu0 %v1924
        %v3005 = vpop.f32.mrf.mxu0
        %v3006 = vadd.f32 %v2941, %v3005
        %3007 = vmatmul.f32.gmra.mxu0 %v1939
        %v3008 = vpop.f32.mrf.mxu0
        %v3009 = vadd.f32 %v2944, %v3008
        %3010 = vmatmul.f32.gmra.mxu0 %v1954
        %v3011 = vpop.f32.mrf.mxu0
        %v3012 = vadd.f32 %v2947, %v3011
        %3013 = vmatmul.f32.gmra.mxu0 %v1969
        %v3014 = vpop.f32.mrf.mxu0
        %v3015 = vadd.f32 %v2950, %v3014
        %3016 = vmatmul.f32.gmra.mxu0 %v1984
        %v3017 = vpop.f32.mrf.mxu0
        %v3018 = vadd.f32 %v2953, %v3017
        %3019 = vmatmul.f32.gmra.mxu0 %v1999
        %v3020 = vpop.f32.mrf.mxu0
        %v3021 = vadd.f32 %v2956, %v3020
        %3022 = vdwg.mxu0
        %3023 = vmatpush.msra.mxu0 %v2210
        %3024 = vmatpush.msra.mxu0 %v2209
        %3025 = vmatpush.msra.mxu0 %v2208
        %3026 = vmatpush.msra.mxu0 %v2207
        %3027 = vmatpush.msra.mxu0 %v2206
        %3028 = vmatpush.msra.mxu0 %v2205
        %3029 = vmatpush.msra.mxu0 %v2204
        %3030 = vmatpush.msra.mxu0 %v2203
        %3031 = vmatpush.msra.mxu0 %v2202
        %3032 = vmatpush.msra.mxu0 %v2201
        %3033 = vmatpush.msra.mxu0 %v2200
        %3034 = vmatpush.msra.mxu0 %v2199
        %3035 = vmatpush.msra.mxu0 %v2198
        %3036 = vmatpush.msra.mxu0 %v2197
        %3037 = vmatpush.msra.mxu0 %v2196
        %3038 = vmatpush.msra.mxu0 %v2195
        %3039 = vmatmul.f32.gmra.mxu0 %v1775
        %v3040 = vpop.f32.mrf.mxu0
        %v3041 = vadd.f32 %v2976, %v3040
        %3042 = vmatmul.f32.gmra.mxu0 %v1790
        %v3043 = vpop.f32.mrf.mxu0
        %v3044 = vadd.f32 %v2979, %v3043
        %3045 = vmatmul.f32.gmra.mxu0 %v1805
        %v3046 = vpop.f32.mrf.mxu0
        %v3047 = vadd.f32 %v2982, %v3046
        %3048 = vmatmul.f32.gmra.mxu0 %v1820
        %v3049 = vpop.f32.mrf.mxu0
        %v3050 = vadd.f32 %v2985, %v3049
        %3051 = vmatmul.f32.gmra.mxu0 %v1835
        %v3052 = vpop.f32.mrf.mxu0
        %v3053 = vadd.f32 %v2988, %v3052
        %3054 = vmatmul.f32.gmra.mxu0 %v1850
        %v3055 = vpop.f32.mrf.mxu0
        %v3056 = vadd.f32 %v2991, %v3055
        %3057 = vmatmul.f32.gmra.mxu0 %v1865
        %v3058 = vpop.f32.mrf.mxu0
        %v3059 = vadd.f32 %v2994, %v3058
        %3060 = vmatmul.f32.gmra.mxu0 %v1880
        %v3061 = vpop.f32.mrf.mxu0
        %v3062 = vadd.f32 %v2997, %v3061
        %3063 = vmatmul.f32.gmra.mxu0 %v1895
        %v3064 = vpop.f32.mrf.mxu0
        %v3065 = vadd.f32 %v3000, %v3064
        %3066 = vmatmul.f32.gmra.mxu0 %v1910
        %v3067 = vpop.f32.mrf.mxu0
        %v3068 = vadd.f32 %v3003, %v3067
        %3069 = vmatmul.f32.gmra.mxu0 %v1925
        %v3070 = vpop.f32.mrf.mxu0
        %v3071 = vadd.f32 %v3006, %v3070
        %3072 = vmatmul.f32.gmra.mxu0 %v1940
        %v3073 = vpop.f32.mrf.mxu0
        %v3074 = vadd.f32 %v3009, %v3073
        %3075 = vmatmul.f32.gmra.mxu0 %v1955
        %v3076 = vpop.f32.mrf.mxu0
        %v3077 = vadd.f32 %v3012, %v3076
        %3078 = vmatmul.f32.gmra.mxu0 %v1970
        %v3079 = vpop.f32.mrf.mxu0
        %v3080 = vadd.f32 %v3015, %v3079
        %3081 = vmatmul.f32.gmra.mxu0 %v1985
        %v3082 = vpop.f32.mrf.mxu0
        %v3083 = vadd.f32 %v3018, %v3082
        %3084 = vmatmul.f32.gmra.mxu0 %v2000
        %v3085 = vpop.f32.mrf.mxu0
        %v3086 = vadd.f32 %v3021, %v3085
        %3087 = vdwg.mxu0
        %3088 = vmatpush.msra.mxu0 %v2226
        %3089 = vmatpush.msra.mxu0 %v2225
        %3090 = vmatpush.msra.mxu0 %v2224
        %3091 = vmatpush.msra.mxu0 %v2223
        %3092 = vmatpush.msra.mxu0 %v2222
        %3093 = vmatpush.msra.mxu0 %v2221
        %3094 = vmatpush.msra.mxu0 %v2220
        %3095 = vmatpush.msra.mxu0 %v2219
        %3096 = vmatpush.msra.mxu0 %v2218
        %3097 = vmatpush.msra.mxu0 %v2217
        %3098 = vmatpush.msra.mxu0 %v2216
        %3099 = vmatpush.msra.mxu0 %v2215
        %3100 = vmatpush.msra.mxu0 %v2214
        %3101 = vmatpush.msra.mxu0 %v2213
        %3102 = vmatpush.msra.mxu0 %v2212
        %3103 = vmatpush.msra.mxu0 %v2211
        %3104 = vmatmul.f32.gmra.mxu0 %v1776
        %v3105 = vpop.f32.mrf.mxu0
        %v3106 = vadd.f32 %v3041, %v3105
        %3107 = vmatmul.f32.gmra.mxu0 %v1791
        %v3108 = vpop.f32.mrf.mxu0
        %v3109 = vadd.f32 %v3044, %v3108
        %3110 = vmatmul.f32.gmra.mxu0 %v1806
        %v3111 = vpop.f32.mrf.mxu0
        %v3112 = vadd.f32 %v3047, %v3111
        %3113 = vmatmul.f32.gmra.mxu0 %v1821
        %v3114 = vpop.f32.mrf.mxu0
        %v3115 = vadd.f32 %v3050, %v3114
        %3116 = vmatmul.f32.gmra.mxu0 %v1836
        %v3117 = vpop.f32.mrf.mxu0
        %v3118 = vadd.f32 %v3053, %v3117
        %3119 = vmatmul.f32.gmra.mxu0 %v1851
        %v3120 = vpop.f32.mrf.mxu0
        %v3121 = vadd.f32 %v3056, %v3120
        %3122 = vmatmul.f32.gmra.mxu0 %v1866
        %v3123 = vpop.f32.mrf.mxu0
        %v3124 = vadd.f32 %v3059, %v3123
        %3125 = vmatmul.f32.gmra.mxu0 %v1881
        %v3126 = vpop.f32.mrf.mxu0
        %v3127 = vadd.f32 %v3062, %v3126
        %3128 = vmatmul.f32.gmra.mxu0 %v1896
        %v3129 = vpop.f32.mrf.mxu0
        %v3130 = vadd.f32 %v3065, %v3129
        %3131 = vmatmul.f32.gmra.mxu0 %v1911
        %v3132 = vpop.f32.mrf.mxu0
        %v3133 = vadd.f32 %v3068, %v3132
        %3134 = vmatmul.f32.gmra.mxu0 %v1926
        %v3135 = vpop.f32.mrf.mxu0
        %v3136 = vadd.f32 %v3071, %v3135
        %3137 = vmatmul.f32.gmra.mxu0 %v1941
        %v3138 = vpop.f32.mrf.mxu0
        %v3139 = vadd.f32 %v3074, %v3138
        %3140 = vmatmul.f32.gmra.mxu0 %v1956
        %v3141 = vpop.f32.mrf.mxu0
        %v3142 = vadd.f32 %v3077, %v3141
        %3143 = vmatmul.f32.gmra.mxu0 %v1971
        %v3144 = vpop.f32.mrf.mxu0
        %v3145 = vadd.f32 %v3080, %v3144
        %3146 = vmatmul.f32.gmra.mxu0 %v1986
        %v3147 = vpop.f32.mrf.mxu0
        %v3148 = vadd.f32 %v3083, %v3147
        %3149 = vmatmul.f32.gmra.mxu0 %v2001
        %v3150 = vpop.f32.mrf.mxu0
        %v3151 = vadd.f32 %v3086, %v3150
        %3152 = vdwg.mxu0
        %3153 = vmatpush.msra.mxu0 %v2242
        %3154 = vmatpush.msra.mxu0 %v2241
        %3155 = vmatpush.msra.mxu0 %v2240
        %3156 = vmatpush.msra.mxu0 %v2239
        %3157 = vmatpush.msra.mxu0 %v2238
        %3158 = vmatpush.msra.mxu0 %v2237
        %3159 = vmatpush.msra.mxu0 %v2236
        %3160 = vmatpush.msra.mxu0 %v2235
        %3161 = vmatpush.msra.mxu0 %v2234
        %3162 = vmatpush.msra.mxu0 %v2233
        %3163 = vmatpush.msra.mxu0 %v2232
        %3164 = vmatpush.msra.mxu0 %v2231
        %3165 = vmatpush.msra.mxu0 %v2230
        %3166 = vmatpush.msra.mxu0 %v2229
        %3167 = vmatpush.msra.mxu0 %v2228
        %3168 = vmatpush.msra.mxu0 %v2227
        %3169 = vmatmul.f32.gmra.mxu0 %v1777
        %v3170 = vpop.f32.mrf.mxu0
        %v3171 = vadd.f32 %v3106, %v3170
        %3172 = vmatmul.f32.gmra.mxu0 %v1792
        %v3173 = vpop.f32.mrf.mxu0
        %v3174 = vadd.f32 %v3109, %v3173
        %3175 = vmatmul.f32.gmra.mxu0 %v1807
        %v3176 = vpop.f32.mrf.mxu0
        %v3177 = vadd.f32 %v3112, %v3176
        %3178 = vmatmul.f32.gmra.mxu0 %v1822
        %v3179 = vpop.f32.mrf.mxu0
        %v3180 = vadd.f32 %v3115, %v3179
        %3181 = vmatmul.f32.gmra.mxu0 %v1837
        %v3182 = vpop.f32.mrf.mxu0
        %v3183 = vadd.f32 %v3118, %v3182
        %3184 = vmatmul.f32.gmra.mxu0 %v1852
        %v3185 = vpop.f32.mrf.mxu0
        %v3186 = vadd.f32 %v3121, %v3185
        %3187 = vmatmul.f32.gmra.mxu0 %v1867
        %v3188 = vpop.f32.mrf.mxu0
        %v3189 = vadd.f32 %v3124, %v3188
        %3190 = vmatmul.f32.gmra.mxu0 %v1882
        %v3191 = vpop.f32.mrf.mxu0
        %v3192 = vadd.f32 %v3127, %v3191
        %3193 = vmatmul.f32.gmra.mxu0 %v1897
        %v3194 = vpop.f32.mrf.mxu0
        %v3195 = vadd.f32 %v3130, %v3194
        %3196 = vmatmul.f32.gmra.mxu0 %v1912
        %v3197 = vpop.f32.mrf.mxu0
        %v3198 = vadd.f32 %v3133, %v3197
        %3199 = vmatmul.f32.gmra.mxu0 %v1927
        %v3200 = vpop.f32.mrf.mxu0
        %v3201 = vadd.f32 %v3136, %v3200
        %3202 = vmatmul.f32.gmra.mxu0 %v1942
        %v3203 = vpop.f32.mrf.mxu0
        %v3204 = vadd.f32 %v3139, %v3203
        %3205 = vmatmul.f32.gmra.mxu0 %v1957
        %v3206 = vpop.f32.mrf.mxu0
        %v3207 = vadd.f32 %v3142, %v3206
        %3208 = vmatmul.f32.gmra.mxu0 %v1972
        %v3209 = vpop.f32.mrf.mxu0
        %v3210 = vadd.f32 %v3145, %v3209
        %3211 = vmatmul.f32.gmra.mxu0 %v1987
        %v3212 = vpop.f32.mrf.mxu0
        %v3213 = vadd.f32 %v3148, %v3212
        %3214 = vmatmul.f32.gmra.mxu0 %v2002
        %v3215 = vpop.f32.mrf.mxu0
        %v3216 = vadd.f32 %v3151, %v3215
        %3217 = vdwg.mxu0
        %v3218 = vadd.f32 %v1747, %v3171
        %v3219 = vadd.f32 %v1748, %v3174
        %v3220 = vadd.f32 %v1749, %v3177
        %v3221 = vadd.f32 %v1750, %v3180
        %v3222 = vadd.f32 %v1751, %v3183
        %v3223 = vadd.f32 %v1752, %v3186
        %v3224 = vadd.f32 %v1753, %v3189
        %v3225 = vadd.f32 %v1754, %v3192
        %v3226 = vadd.f32 %v1755, %v3195
        %v3227 = vadd.f32 %v1756, %v3198
        %v3228 = vadd.f32 %v1757, %v3201
        %v3229 = vadd.f32 %v1758, %v3204
        %v3230 = vadd.f32 %v1759, %v3207
        %v3231 = vadd.f32 %v1760, %v3210
        %v3232 = vadd.f32 %v1761, %v3213
        %v3233 = vadd.f32 %v1762, %v3216
        %3234 = vst [vmem:[#allocation2] sm:$0xff] %v3218
        %3235 = vst [vmem:[#allocation2 + $0x8] sm:$0xff] %v3219
        %3236 = vst [vmem:[#allocation2 + $0x10] sm:$0xff] %v3220
        %3237 = vst [vmem:[#allocation2 + $0x18] sm:$0xff] %v3221
        %3238 = vst [vmem:[#allocation2 + $0x20] sm:$0xff] %v3222
        %3239 = vst [vmem:[#allocation2 + $0x28] sm:$0xff] %v3223
        %3240 = vst [vmem:[#allocation2 + $0x30] sm:$0xff] %v3224
        %3241 = vst [vmem:[#allocation2 + $0x38] sm:$0xff] %v3225
        %3242 = vst [vmem:[#allocation2 + $0x40] sm:$0xff] %v3226
        %3243 = vst [vmem:[#allocation2 + $0x48] sm:$0xff] %v3227
        %3244 = vst [vmem:[#allocation2 + $0x50] sm:$0xff] %v3228
        %3245 = vst [vmem:[#allocation2 + $0x58] sm:$0xff] %v3229
        %3246 = vst [vmem:[#allocation2 + $0x60] sm:$0xff] %v3230
        %3247 = vst [vmem:[#allocation2 + $0x68] sm:$0xff] %v3231
        %3248 = vst [vmem:[#allocation2 + $0x70] sm:$0xff] %v3232
        %3249 = vst [vmem:[#allocation2 + $0x78] sm:$0xff] %v3233
        %p3250 = scmp.eq.s32.totalorder %s24, 4
        // Predicated region
        $region98: #{encoder_forward.3} parent=84 // pred_check
          %p3251 = pneg %p3250
        $region99: #{encoder_forward.3} parent=84 // pred_check_branch
          %3253 = sbr.rel (%p3251) target = $region101
        $region100: #{encoder_forward.3} parent=84 // pred_region
          %v3254 = vld [vmem:[#allocation2] sm:$0xff]
          %v3255 = vld [vmem:[#allocation2 + $0x8] sm:$0xff]
          %v3256 = vld [vmem:[#allocation2 + $0x10] sm:$0xff]
          %v3257 = vld [vmem:[#allocation2 + $0x18] sm:$0xff]
          %v3258 = vld [vmem:[#allocation2 + $0x20] sm:$0xff]
          %v3259 = vld [vmem:[#allocation2 + $0x28] sm:$0xff]
          %v3260 = vld [vmem:[#allocation2 + $0x30] sm:$0xff]
          %v3261 = vld [vmem:[#allocation2 + $0x38] sm:$0xff]
          %v3262 = vld [vmem:[#allocation2 + $0x40] sm:$0xff]
          %v3263 = vld [vmem:[#allocation2 + $0x48] sm:$0xff]
          %v3264 = vld [vmem:[#allocation2 + $0x50] sm:$0xff]
          %v3265 = vld [vmem:[#allocation2 + $0x58] sm:$0xff]
          %v3266 = vld [vmem:[#allocation2 + $0x60] sm:$0xff]
          %v3267 = vld [vmem:[#allocation2 + $0x68] sm:$0xff]
          %v3268 = vld [vmem:[#allocation2 + $0x70] sm:$0xff]
          %v3269 = vld [vmem:[#allocation2 + $0x78] sm:$0xff]
          %v3270 = vld [vmem:[%s1725] sm:$0x1]
          %v3272 = vperm.slane %v3270, 0
          %v3274 = vadd.f32 %v3254, %v3272
          %v3275 = vadd.f32 %v3255, %v3272
          %v3276 = vadd.f32 %v3256, %v3272
          %v3277 = vadd.f32 %v3257, %v3272
          %v3278 = vadd.f32 %v3258, %v3272
          %v3279 = vadd.f32 %v3259, %v3272
          %v3280 = vadd.f32 %v3260, %v3272
          %v3281 = vadd.f32 %v3261, %v3272
          %v3282 = vadd.f32 %v3262, %v3272
          %v3283 = vadd.f32 %v3263, %v3272
          %v3284 = vadd.f32 %v3264, %v3272
          %v3285 = vadd.f32 %v3265, %v3272
          %v3286 = vadd.f32 %v3266, %v3272
          %v3287 = vadd.f32 %v3267, %v3272
          %v3288 = vadd.f32 %v3268, %v3272
          %v3289 = vadd.f32 %v3269, %v3272
          %3290 = vst [vmem:[%s1719] sm:$0xff] %v3274
          %3291 = vst [vmem:[%s1719 + $0x8] sm:$0xff] %v3275
          %3292 = vst [vmem:[%s1719 + $0x10] sm:$0xff] %v3276
          %3293 = vst [vmem:[%s1719 + $0x18] sm:$0xff] %v3277
          %3294 = vst [vmem:[%s1719 + $0x20] sm:$0xff] %v3278
          %3295 = vst [vmem:[%s1719 + $0x28] sm:$0xff] %v3279
          %3296 = vst [vmem:[%s1719 + $0x30] sm:$0xff] %v3280
          %3297 = vst [vmem:[%s1719 + $0x38] sm:$0xff] %v3281
          %3298 = vst [vmem:[%s1719 + $0x40] sm:$0xff] %v3282
          %3299 = vst [vmem:[%s1719 + $0x48] sm:$0xff] %v3283
          %3300 = vst [vmem:[%s1719 + $0x50] sm:$0xff] %v3284
          %3301 = vst [vmem:[%s1719 + $0x58] sm:$0xff] %v3285
          %3302 = vst [vmem:[%s1719 + $0x60] sm:$0xff] %v3286
          %3303 = vst [vmem:[%s1719 + $0x68] sm:$0xff] %v3287
          %3304 = vst [vmem:[%s1719 + $0x70] sm:$0xff] %v3288
          %3305 = vst [vmem:[%s1719 + $0x78] sm:$0xff] %v3289
        $region101: #{encoder_forward.3} parent=84 // pred_fallthru
          _
        %s3306 = sand.u32 %s128, 1
        %s3307 = scalar_lea.sflag [#allocation6], %s3306
        %s3308 = sand.u32 %s128, 1
        %s3309 = smul.addr %s3308, 128
        %s3310 = scalar_lea.vmem [#allocation5], %s3309
        // Predicated region
        $region102: #{encoder_forward.3} parent=84 // pred_check
          %p3311 = pneg %p138
        $region103: #{encoder_forward.3} parent=84 // pred_check_branch
          %3313 = sbr.rel (%p3311) target = $region105
        $region104: #{encoder_forward.3} parent=84 // pred_region
          %s3314 = smul.u32 16, %s22
          %3316 = vsyncadd %s3307, 0
          %s3317 = smul.addr %s3314, 5
          %s3318 = sadd.s32 %s23, %s3317
          %s3319 = smul.addr %s3318, 8
          %s3320 = scalar_lea.hbm %s3, %s3319
          %s3321 = sshll.u32 %s3310, 4
          %s3322 = int_to_ptr.vmem [resolvable:$true] %s3321
          %s3323 = sshll.u32 %s3320, 4
          %s3324 = int_to_ptr.hbm [resolvable:$true] %s3323
          %3329 = dma.vmem_to_hbm [thread:$0]  %s3322, 2048, %s3324, %s3307, 128, 640, 8
        $region105: #{encoder_forward.3} parent=84 // pred_fallthru
          _
      $region85: #{encoder_forward.3} parent=5 // pred_fallthru
        _
      %p3330 = scmp.le.s32.totalorder 2, %s12
      // Predicated region
      $region106: #{encoder_forward.3} parent=5 // pred_check
        %p3331 = pneg %p3330
      $region107: #{encoder_forward.3} parent=5 // pred_check_branch
        %3333 = sbr.rel (%p3331) target = $region109
      $region108: #{encoder_forward.3} parent=5 // pred_region
        %s3334 = ssub.s32 %s12, 2
        // Predicated region
        $region110: #{encoder_forward.3} parent=108 // pred_check
          %p3335 = pneg %p144
        $region111: #{encoder_forward.3} parent=108 // pred_check_branch
          %3337 = sbr.rel (%p3335) target = $region113
        $region112: #{encoder_forward.3} parent=108 // pred_region
          %s3338 = sand.u32 %s129, 1
          %s3339 = scalar_lea.sflag [#allocation6], %s3338
          %s3340 = sand.u32 %s129, 1
          %s3341 = smul.addr %s3340, 128
          %s3342 = scalar_lea.vmem [#allocation5], %s3341
          %3344 = dma.done %s3339, 2048
        $region113: #{encoder_forward.3} parent=108 // pred_fallthru
          _
      $region109: #{encoder_forward.3} parent=5 // pred_fallthru
        _
    $region6: #{encoder_forward.3} parent=1 // loop_footer
      %s16 = sadd.s32 1, %s12
    $region7: #{encoder_forward.3} parent=1 // loop_footer_branch
      %11 = sbr.rel target = $region3
    $region8: #{encoder_forward.3} parent=1 // loop_exit
      _
    %3345 = vsyncpa [#allocation6], 1
    %s3346 = scalar_lea.sflag [#allocation6], 1
    %3347 = vsyncpa %s3346, 1

</llo_original>
